<compile_context>
chip_gen: v7x
topology: tpu7x:2x2x1
jax: 0.10.0
libtpu: 0.0.40
codegen_flags: <defaults>
</compile_context>

<pallas_src>
import functools
import math

import jax
import jax.numpy as jnp
from jax.experimental import pallas as pl
from jax.experimental.pallas import tpu as pltpu


# ------------------------------ kernel ------------------------------


def _deconv_bn_relu_kernel(x_ref, w_ref, s_ref, b_ref, o_ref, *,
                           tile_rows, w_pix, c2, compute_dtype):
    # x_ref : (tile_rows * W, Cin)      flattened input pixels (row-major over (h, w))
    # w_ref : (Cin, 4*Cout)             deconv weight, columns ordered (ky, kx, cout)
    # s_ref : (1, 4*Cout)  f32          BN scale (gamma / sqrt(var+eps)), tiled over ky,kx
    # b_ref : (1, 4*Cout)  f32          BN bias  (beta - mean*scale), tiled over ky,kx
    # o_ref : (tile_rows, 2, W, 2*Cout) -> memory order (h, ky, w, kx, cout)
    x = x_ref[...]
    if x.dtype != compute_dtype:
        x = x.astype(compute_dtype)           # in-kernel cast: free under memory roofline

    # Single fused matmul for both ky positions; f32 MXU accumulation.
    y = jnp.dot(x, w_ref[...], preferred_element_type=jnp.float32)
    # f32 epilogue (scale, bias, ReLU) -- keep all arithmetic f32 for v5e.
    y = jnp.maximum(y * s_ref[...] + b_ref[...], 0.0)

    # Lane slice at 2*Cout (multiple of 128 -> vreg granular), then split the major
    # axis (tile_rows*W) -> (tile_rows, W).  Layout-free when W is a multiple of 8.
    y0 = y[:, :c2].reshape(tile_rows, w_pix, c2)
    y1 = y[:, c2:].reshape(tile_rows, w_pix, c2)
    o_ref[:, 0, :, :] = y0.astype(o_ref.dtype)   # cast only at the store
    o_ref[:, 1, :, :] = y1.astype(o_ref.dtype)


# ------------------------------ sizing helpers ------------------------------


def _round_up(x, m):
    return (x + m - 1) // m * m


def _num_tensorcores():
    """Best-effort TensorCore count per chip (v7x has 2); conservative default 1."""
    try:
        info = pltpu.get_tpu_info()
        for name in ("num_cores", "core_count", "num_tensorcores", "tensorcore_count"):
            v = getattr(info, name, None)
            if isinstance(v, int) and v > 0:
                return v
    except Exception:
        pass
    try:
        v = getattr(jax.devices()[0], "num_cores", None)
        if isinstance(v, int) and v > 0:
            return v
    except Exception:
        pass
    return 1


def _vmem_budget_bytes():
    """Per-generation VMEM budget for tiles (incl. in-kernel scratch)."""
    try:
        info = pltpu.get_tpu_info()
        cap = getattr(info, "vmem_capacity_bytes", None)
        if isinstance(cap, int) and cap > 0:
            # ~40% of physical VMEM, capped: 128 MiB (v5e/v6e) -> 48 MiB budget,
            # 64 MiB (v7x) -> ~25 MiB budget.
            return int(min(max(cap * 2 // 5, 12 << 20), 48 << 20))
    except Exception:
        pass
    # Conservative fallback: fits the 16 MiB scoped default on every generation.
    return 12 << 20


def _tile_cost(w, cin, cout, x_bytes, o_bytes):
    """(per-row bytes, fixed bytes) of VMEM for one grid step."""
    c2, c4 = 2 * cout, 4 * cout
    per_row = (2 * w * cin * x_bytes        # input tile, double-buffered
               + 2 * 2 * w * c2 * o_bytes   # output tile (ky, w, kx*cout), double-buffered
               + w * c4 * 4)                # in-kernel f32 matmul result (single copy)
    fixed = 2 * cin * c4 * 4 + 4 * c4 * 4   # resident weight + scale/bias (generous, dbl-buf)
    return per_row, fixed


def _pick_tile_rows(nh_rows, w, cin, cout, x_bytes, o_bytes, n_cores,
                    vmem_budget_bytes, target_pixels=8192):
    """Rows (of W pixels) per grid step.  Returns (tile_rows, needs_pad)."""
    per_row, fixed = _tile_cost(w, cin, cout, x_bytes, o_bytes)
    cap = max((vmem_budget_bytes - fixed) // per_row, 1)
    cap = int(min(cap, max(target_pixels // max(w, 1), 1), nh_rows))
    # >= 2 steps per core only matters when the 'parallel' axis is sharded across
    # multiple TensorCores (v7x).  On single-TC chips take the largest tile that fits.
    min_grid = 2 * n_cores if n_cores > 1 else 1

    # Prefer an exact divisor of nh_rows: no padding and no post-kernel slice copy.
    best = 0
    for d in range(1, cap + 1):
        if nh_rows % d:
            continue
        if (d * w) % 8 != 0 and d != nh_rows:     # sublane alignment of the input block
            continue
        if nh_rows // d < min_grid:
            continue
        best = d
    if best:
        return best, False

    # Fallback: padded tiling with sublane-aligned rows.
    step = 8 // math.gcd(w, 8)
    tr = max((cap // step) * step, step)
    if min_grid > 1:
        want = -(-nh_rows // min_grid)
        tr = min(tr, max((want // step) * step, step))
    tr = max(min(tr, _round_up(nh_rows, step)), step)
    return tr, (nh_rows % tr) != 0


# ------------------------------ wrappers ------------------------------


def trans_basic_conv2d_nhwc(x_nhwc, weight, gamma, beta, running_mean, running_var,
                            eps=1e-5, compute_dtype=jnp.bfloat16,
                            out_dtype=jnp.bfloat16, tile_rows=None):
    """x_nhwc: (N, H, W, Cin); weight: (Cin, Cout, 2, 2) -> (N, 2H, 2W, Cout).

    Intended integration path: keep the network NHWC end-to-end.  No layout
    transposes: the kernel writes the upsampled grid directly in
    (n, h, ky, w, kx, cout) memory order, which reshapes for free into NHWC.
    """
    N, H, W, Cin = x_nhwc.shape
    Cout = weight.shape[1]
    C2, C4 = 2 * Cout, 4 * Cout

    # ---- BatchNorm (eval) fold into per-column f32 scale/bias (epilogue-applied) ----
    scale_c = (gamma / jnp.sqrt(running_var + eps)).astype(jnp.float32)
    bias_c = (beta - running_mean * scale_c).astype(jnp.float32)
    scale4 = jnp.tile(scale_c, 4).reshape(1, C4)           # column order (ky, kx, cout)
    bias4 = jnp.tile(bias_c, 4).reshape(1, C4)

    # (Cin, Cout, ky, kx) -> (Cin, ky, kx, Cout) -> (Cin, 4*Cout); un-scaled bf16 weight.
    w_all = jnp.transpose(weight, (0, 2, 3, 1)).reshape(Cin, C4).astype(compute_dtype)

    # ---- tiling over rows of W pixels ----
    NH = N * H
    x_bytes = jnp.dtype(x_nhwc.dtype).itemsize             # x stays in its native dtype
    o_bytes = jnp.dtype(out_dtype).itemsize
    n_cores = _num_tensorcores()
    budget = _vmem_budget_bytes()
    if tile_rows is None:
        tile_rows, needs_pad = _pick_tile_rows(NH, W, Cin, Cout, x_bytes, o_bytes,
                                               n_cores, budget)
    else:
        needs_pad = (NH % tile_rows) != 0

    NH_pad = _round_up(NH, tile_rows) if needs_pad else NH
    x_flat = x_nhwc.reshape(NH * W, Cin)                    # free reshape, no dtype cast
    if NH_pad != NH:
        x_flat = jnp.pad(x_flat, ((0, (NH_pad - NH) * W), (0, 0)))

    grid = (NH_pad // tile_rows,)
    kern = functools.partial(_deconv_bn_relu_kernel, tile_rows=tile_rows, w_pix=W,
                             c2=C2, compute_dtype=compute_dtype)

    # Only override the scoped VMEM default when this tile actually needs it.
    per_row, fixed = _tile_cost(W, Cin, Cout, x_bytes, o_bytes)
    vmem_need = fixed + per_row * tile_rows
    cparams = dict(dimension_semantics=("parallel",))
    if vmem_need > (14 << 20):
        cparams["vmem_limit_bytes"] = int(min(vmem_need + (4 << 20), 48 << 20))

    out4d = pl.pallas_call(
        kern,
        out_shape=jax.ShapeDtypeStruct((NH_pad, 2, W, C2), out_dtype),
        grid_spec=pltpu.PrefetchScalarGridSpec(
            num_scalar_prefetch=0,
            grid=grid,
            in_specs=[
                pl.BlockSpec((tile_rows * W, Cin), lambda i: (i, 0)),
                pl.BlockSpec((Cin, C4), lambda i: (0, 0)),
                pl.BlockSpec((1, C4), lambda i: (0, 0)),
                pl.BlockSpec((1, C4), lambda i: (0, 0)),
            ],
            out_specs=pl.BlockSpec((tile_rows, 2, W, C2), lambda i: (i, 0, 0, 0)),
        ),
        compiler_params=pltpu.CompilerParams(**cparams),
    )(x_flat, w_all, scale4, bias4)

    if NH_pad != NH:   # only on awkward shapes where no divisor tiling was found
        out4d = out4d[:NH]
    # (N*H, ky, W, kx*Cout) is already NHWC memory order: pure reshape, no transpose.
    return out4d.reshape(N, H, 2, W, 2, Cout).reshape(N, 2 * H, 2 * W, Cout)


def trans_basic_conv2d(x_nchw, weight, gamma, beta, running_mean, running_var,
                       eps=1e-5, compute_dtype=jnp.bfloat16, out_dtype=jnp.bfloat16,
                       tile_rows=None):
    """PyTorch-layout wrapper: NCHW in -> NCHW out.

    Layout conversion happens only at the PyTorch boundary; prefer the NHWC entry point
    (`trans_basic_conv2d_nhwc`) for real integration to avoid these transposes.
    """
    x_nhwc = jnp.transpose(x_nchw, (0, 2, 3, 1))
    y = trans_basic_conv2d_nhwc(x_nhwc, weight, gamma, beta, running_mean, running_var,
                                eps=eps, compute_dtype=compute_dtype,
                                out_dtype=out_dtype, tile_rows=tile_rows)
    return jnp.transpose(y, (0, 3, 1, 2))


# ------------------------------ reference & test ------------------------------


def _reference(x_nchw, weight, gamma, beta, running_mean, running_var, eps=1e-5):
    """Plain-JAX reference for ConvTranspose2d(k=2,s=2,p=0,bias=False)+BN(eval)+ReLU."""
    N, Cin, H, W = x_nchw.shape
    Cout = weight.shape[1]
    # y[n,o,2i+k,2j+l] = sum_c x[n,c,i,j] * w[c,o,k,l]
    y = jnp.einsum("ncij,cokl->noikjl", x_nchw, weight,
                   precision=jax.lax.Precision.HIGHEST)
    y = y.reshape(N, Cout, 2 * H, 2 * W)
    scale = (gamma / jnp.sqrt(running_var + eps)).reshape(1, Cout, 1, 1)
    bias = (beta - running_mean * gamma / jnp.sqrt(running_var + eps)).reshape(1, Cout, 1, 1)
    return jnp.maximum(y * scale + bias, 0.0)


if __name__ == "__main__":
    key = jax.random.PRNGKey(0)
    k_x, k_w, k_g, k_b, k_m, k_v = jax.random.split(key, 6)

    # TransBasicConv2d(channel, channel) in OCINet uses channel=128; small spatial dims.
    N, C, H, W = 2, 128, 32, 32

    x = jax.random.normal(k_x, (N, C, H, W), dtype=jnp.float32)
    weight = jax.random.normal(k_w, (C, C, 2, 2), dtype=jnp.float32) * 0.1
    gamma = jax.random.uniform(k_g, (C,), dtype=jnp.float32, minval=0.5, maxval=1.5)
    beta = jax.random.normal(k_b, (C,), dtype=jnp.float32) * 0.1
    running_mean = jax.random.normal(k_m, (C,), dtype=jnp.float32) * 0.1
    running_var = jax.random.uniform(k_v, (C,), dtype=jnp.float32, minval=0.5, maxval=1.5)

    ref = _reference(x, weight, gamma, beta, running_mean, running_var)

    # 1) f32 operands + f32 output: tight numerics check of the fused layout / BN logic.
    out_f32 = trans_basic_conv2d(x, weight, gamma, beta, running_mean, running_var,
                                 compute_dtype=jnp.float32, out_dtype=jnp.float32)
    out_f32 = jax.block_until_ready(out_f32)
    assert out_f32.shape == (N, C, 2 * H, 2 * W), out_f32.shape
    assert jnp.allclose(out_f32, ref, atol=1e-3, rtol=1e-3), \
        float(jnp.max(jnp.abs(out_f32 - ref)))

    # 2) Default path: bf16 operands + bf16 output (halves the dominant HBM write stream).
    out_bf16 = trans_basic_conv2d(x, weight, gamma, beta, running_mean, running_var)
    out_bf16 = jax.block_until_ready(out_bf16)
    assert out_bf16.shape == (N, C, 2 * H, 2 * W), out_bf16.shape
    assert out_bf16.dtype == jnp.bfloat16
    diff = jnp.abs(out_bf16.astype(jnp.float32) - ref)
    assert jnp.allclose(out_bf16.astype(jnp.float32), ref, atol=1e-1, rtol=5e-2), \
        float(jnp.max(diff))

    # 3) NHWC entry point (the intended integration path -- no boundary transposes).
    x_nhwc = jnp.transpose(x, (0, 2, 3, 1))
    out_nhwc = trans_basic_conv2d_nhwc(x_nhwc, weight, gamma, beta,
                                       running_mean, running_var)
    out_nhwc = jax.block_until_ready(out_nhwc)
    ref_nhwc = jnp.transpose(ref, (0, 2, 3, 1))
    assert out_nhwc.shape == (N, 2 * H, 2 * W, C), out_nhwc.shape
    assert jnp.allclose(out_nhwc.astype(jnp.float32), ref_nhwc, atol=1e-1, rtol=5e-2), \
        float(jnp.max(jnp.abs(out_nhwc.astype(jnp.float32) - ref_nhwc)))

    print("KERNEL_OK")
</pallas_src>

<mosaic_0001>
module attributes {stable_mosaic.version = 11 : i64} {
  func.func @_deconv_bn_relu_kernel(%arg0: i32, %arg1: memref<1024x128xf32, #tpu.memory_space<vmem>>, %arg2: memref<128x512xf32, #tpu.memory_space<vmem>>, %arg3: memref<1x512xf32, #tpu.memory_space<vmem>>, %arg4: memref<1x512xf32, #tpu.memory_space<vmem>>, %arg5: memref<32x2x32x256xf32, #tpu.memory_space<vmem>>) attributes {dimension_semantics = [#tpu.dimension_semantics<parallel>], iteration_bounds = array<i64: 2>, scalar_prefetch = 0 : i64, scratch_operands = 0 : i64, tpu.core_type = #tpu.core_type<tc>, window_params = [{transform_indices = @transform_0, window_bounds = array<i64: 1024, 128>}, {pipeline_mode = #tpu.pipeline_mode<synchronous>, transform_indices = @transform_1, window_bounds = array<i64: 128, 512>}, {pipeline_mode = #tpu.pipeline_mode<synchronous>, transform_indices = @transform_2, window_bounds = array<i64: 1, 512>}, {pipeline_mode = #tpu.pipeline_mode<synchronous>, transform_indices = @transform_3, window_bounds = array<i64: 1, 512>}, {transform_indices = @transform_4, window_bounds = array<i64: 32, 2, 32, 256>}]} {
    %c0 = arith.constant 0 : index
    %c0_0 = arith.constant 0 : index
    %0 = vector.load %arg1[%c0, %c0_0] : memref<1024x128xf32, #tpu.memory_space<vmem>>, vector<1024x128xf32>
    %c0_1 = arith.constant 0 : index
    %c0_2 = arith.constant 0 : index
    %1 = vector.load %arg2[%c0_1, %c0_2] : memref<128x512xf32, #tpu.memory_space<vmem>>, vector<128x512xf32>
    %cst = arith.constant dense<0.000000e+00> : vector<1024x512xf32>
    %2 = tpu.matmul %0, %1, %cst {dimension_numbers = #tpu.dot_dimension_numbers<[1], [0], [0], [1], [0, 0, 1, 1], [], []>} : vector<1024x128xf32>, vector<128x512xf32>, vector<1024x512xf32> -> vector<1024x512xf32>
    %c0_3 = arith.constant 0 : index
    %c0_4 = arith.constant 0 : index
    %3 = vector.load %arg3[%c0_3, %c0_4] : memref<1x512xf32, #tpu.memory_space<vmem>>, vector<1x512xf32>
    %4 = vector.broadcast %3 : vector<1x512xf32> to vector<1024x512xf32>
    %5 = arith.mulf %2, %4 : vector<1024x512xf32>
    %c0_5 = arith.constant 0 : index
    %c0_6 = arith.constant 0 : index
    %6 = vector.load %arg4[%c0_5, %c0_6] : memref<1x512xf32, #tpu.memory_space<vmem>>, vector<1x512xf32>
    %7 = vector.broadcast %6 : vector<1x512xf32> to vector<1024x512xf32>
    %8 = arith.addf %5, %7 : vector<1024x512xf32>
    %cst_7 = arith.constant 0.000000e+00 : f32
    %9 = vector.broadcast %cst_7 : f32 to vector<1024x512xf32>
    %10 = arith.maximumf %8, %9 : vector<1024x512xf32>
    %11 = vector.extract_strided_slice %10 {offsets = [0, 0], sizes = [1024, 256], strides = [1, 1]} : vector<1024x512xf32> to vector<1024x256xf32>
    %12 = vector.shape_cast %11 : vector<1024x256xf32> to vector<32x32x256xf32>
    %13 = vector.extract_strided_slice %10 {offsets = [0, 256], sizes = [1024, 256], strides = [1, 1]} : vector<1024x512xf32> to vector<1024x256xf32>
    %14 = vector.shape_cast %13 : vector<1024x256xf32> to vector<32x32x256xf32>
    %c0_8 = arith.constant 0 : index
    %c0_9 = arith.constant 0 : index
    %c0_10 = arith.constant 0 : index
    %c0_11 = arith.constant 0 : index
    %15 = vector.load %arg5[%c0_8, %c0_9, %c0_10, %c0_11] : memref<32x2x32x256xf32, #tpu.memory_space<vmem>>, vector<32x1x32x256xf32>
    %16 = vector.shape_cast %15 : vector<32x1x32x256xf32> to vector<32x32x256xf32>
    %17 = vector.shape_cast %12 : vector<32x32x256xf32> to vector<32x1x32x256xf32>
    tpu.vector_store %arg5[%c0_8, %c0_9, %c0_10, %c0_11], %17 {strides = array<i32>} : memref<32x2x32x256xf32, #tpu.memory_space<vmem>>, vector<32x1x32x256xf32>,
    %c0_12 = arith.constant 0 : index
    %c1 = arith.constant 1 : index
    %c0_13 = arith.constant 0 : index
    %c0_14 = arith.constant 0 : index
    %18 = vector.load %arg5[%c0_12, %c1, %c0_13, %c0_14] : memref<32x2x32x256xf32, #tpu.memory_space<vmem>>, vector<32x1x32x256xf32>
    %19 = vector.shape_cast %18 : vector<32x1x32x256xf32> to vector<32x32x256xf32>
    %20 = vector.shape_cast %14 : vector<32x32x256xf32> to vector<32x1x32x256xf32>
    tpu.vector_store %arg5[%c0_12, %c1, %c0_13, %c0_14], %20 {strides = array<i32>} : memref<32x2x32x256xf32, #tpu.memory_space<vmem>>, vector<32x1x32x256xf32>,
    return
  }
  func.func @transform_0(%arg0: i32) -> (i32, i32) {
    %c0_i32 = arith.constant 0 : i32
    %c0_i32_0 = arith.constant 0 : i32
    return %arg0, %c0_i32 : i32, i32
  }
  func.func @transform_1(%arg0: i32) -> (i32, i32) {
    %c0_i32 = arith.constant 0 : i32
    %c0_i32_0 = arith.constant 0 : i32
    %c0_i32_1 = arith.constant 0 : i32
    return %c0_i32, %c0_i32_0 : i32, i32
  }
  func.func @transform_2(%arg0: i32) -> (i32, i32) {
    %c0_i32 = arith.constant 0 : i32
    %c0_i32_0 = arith.constant 0 : i32
    %c0_i32_1 = arith.constant 0 : i32
    return %c0_i32, %c0_i32_0 : i32, i32
  }
  func.func @transform_3(%arg0: i32) -> (i32, i32) {
    %c0_i32 = arith.constant 0 : i32
    %c0_i32_0 = arith.constant 0 : i32
    %c0_i32_1 = arith.constant 0 : i32
    return %c0_i32, %c0_i32_0 : i32, i32
  }
  func.func @transform_4(%arg0: i32) -> (i32, i32, i32, i32) {
    %c0_i32 = arith.constant 0 : i32
    %c0_i32_0 = arith.constant 0 : i32
    %c0_i32_1 = arith.constant 0 : i32
    %c0_i32_2 = arith.constant 0 : i32
    return %arg0, %c0_i32, %c0_i32_0, %c0_i32_1 : i32, i32, i32, i32
  }
}

</mosaic_0001>

<llo_original>
// kernel: tpu_custom_call.1
$region0: #{tpu_custom_call.1}
  #allocation0 [shape = 'u32[]', space=smem, size = 0x4, offset = 0x4, fixed_abs, tag = 'smem constant byte address 0x4 - core index']
  #allocation1 [shape = 'u32[144,128]{1,0:T(1,128)}', space=vmem, size = 0x12000, scoped, tag = 'internal scratch']
  %s0 = inlined_call_operand.hbm [shape: f32[2048,128], index: 0, kind: input, shape index: {}]
  %s1 = inlined_call_operand.hbm [shape: f32[128,512], index: 1, kind: input, shape index: {}]
  %s2 = inlined_call_operand.hbm [shape: f32[1,512], index: 2, kind: input, shape index: {}]
  %s3 = inlined_call_operand.hbm [shape: f32[1,512], index: 3, kind: input, shape index: {}]
  %s4 = inlined_call_operand.hbm [shape: f32[64,2,32,256], index: 4, kind: output, shape index: {}]
  %s5 = sld [smem:[#allocation0]]
  $region65: #{tpu_custom_call.1} parent=0
    _
  %s7 = ssub.s32 1, %s5
  %s8 = scalar_select 0, %s7, %s5
  $region1: #{tpu_custom_call.1} parent=0
    #allocation2 [shape = 'u8[1048576]{0}', space=vmem, size = 0x100000, scoped, tag = 'input window, operand 0']
    #allocation3 [shape = 's32[2]{0}', space=sflag, size = 0x8, scoped, tag = 'scoped memory for tpu_custom_call.1']
    #allocation4 [shape = 's32[2]{0}', space=sflag, size = 0x8, scoped, tag = 'scoped memory for tpu_custom_call.1']
    #allocation5 [shape = 'u8[262144]{0}', space=vmem, size = 0x40000, scoped, tag = 'input window, operand 1, single buffered']
    #allocation6 [shape = 's32[1]{0}', space=sflag, size = 0x4, scoped, tag = 'scoped memory for tpu_custom_call.1']
    #allocation7 [shape = 'u8[2048]{0}', space=vmem, size = 0x800, scoped, tag = 'input window, operand 2, single buffered']
    #allocation8 [shape = 'u8[2048]{0}', space=vmem, size = 0x800, scoped, tag = 'input window, operand 3, single buffered']
    #allocation9 [shape = 's32[1]{0}', space=sflag, size = 0x4, scoped, tag = 'scoped memory for tpu_custom_call.1']
    #allocation10 [shape = 'u8[4194304]{0}', space=vmem, size = 0x400000, scoped, tag = 'output window, operand 0']
    %9 = vsyncpa [#allocation3], 0
    %s10 = scalar_lea.sflag [#allocation3], 1
    %11 = vsyncpa %s10, 0
    %12 = vsyncpa [#allocation6], 0
    %13 = vsyncpa [#allocation9], 0
    %14 = vsyncpa [#allocation4], 0
    %s15 = scalar_lea.sflag [#allocation4], 1
    %16 = vsyncpa %s15, 0
    loop: start=0, step=1, limit=4
    $region2: #{tpu_custom_call.1} parent=1 // loop_pre_header
      _
    $region3: #{tpu_custom_call.1} parent=1 // loop_header
      %s18 = sphi 0, %s22
      %p19 = scmp.ge.s32.totalorder %s18, 4
      %s28 = sphi 0, %s30
      %s31 = sphi 0, %s28
      %s32 = sphi 0, %s31
      %s48 = sphi 0, %s32
      %s52 = sphi 0, %s52
      %s54 = sphi 0, %s52
      %s55 = sphi 0, %s54
      %s69 = sphi 0, %s55
      %s73 = sphi 0, %s73
      %s75 = sphi 0, %s73
      %s76 = sphi 0, %s75
      %s90 = sphi 0, %s76
      %s94 = sphi 0, %s94
      %s96 = sphi 0, %s94
      %s97 = sphi 0, %s96
      %s111 = sphi 0, %s97
      %s117 = sphi 0, %s119
      %s120 = sphi 0, %s117
      %s121 = sphi 0, %s120
      %s137 = sphi 0, %s121
    $region4: #{tpu_custom_call.1} parent=1 // loop_header_branch
      %21 = sbr.rel (%p19) target = $region8
    $region5: #{tpu_custom_call.1} parent=1 // loop_body
      %s23 = ssub.s32 %s18, 1
      %s24 = ssub.s32 %s18, 2
      %s25 = sadd.s32 %s18, 1
      %s26 = ssub.s32 %s18, %s25
      %p27 = scmp.eq.s32.totalorder %s26, 0
      %s29 = sadd.s32 %s28, 1
      %s30 = scalar_select %p27, %s28, %s29
      %p33 = pneg %p27
      %p34 = scmp.eq.s32.totalorder %s18, 1
      %p35 = por %p33, %p34
      %p36 = scmp.ne.s32.totalorder %s28, %s31
      %p37 = scmp.eq.s32.totalorder %s18, 0
      %p38 = por %p36, %p37
      %p39 = scmp.ne.s32.totalorder %s28, %s31
      %p40 = scmp.eq.s32.totalorder %s23, 1
      %p41 = por %p39, %p40
      %p42 = scmp.ne.s32.totalorder %s31, %s32
      %p43 = scmp.eq.s32.totalorder %s23, 0
      %p44 = por %p42, %p43
      %p45 = scmp.ne.s32.totalorder %s31, %s32
      %p46 = scmp.eq.s32.totalorder %s24, 1
      %p47 = por %p45, %p46
      %p49 = scmp.ne.s32.totalorder %s32, %s48
      %p50 = scmp.eq.s32.totalorder %s24, 0
      %p51 = por %p49, %p50
      %s53 = sadd.s32 %s52, 1
      %p56 = scmp.eq.s32.totalorder %s18, 1
      %p57 = scmp.ne.s32.totalorder %s52, %s54
      %p58 = scmp.eq.s32.totalorder %s18, 0
      %p59 = por %p57, %p58
      %p60 = scmp.ne.s32.totalorder %s52, %s54
      %p61 = scmp.eq.s32.totalorder %s23, 1
      %p62 = por %p60, %p61
      %p63 = scmp.ne.s32.totalorder %s54, %s55
      %p64 = scmp.eq.s32.totalorder %s23, 0
      %p65 = por %p63, %p64
      %p66 = scmp.ne.s32.totalorder %s54, %s55
      %p67 = scmp.eq.s32.totalorder %s24, 1
      %p68 = por %p66, %p67
      %p70 = scmp.ne.s32.totalorder %s55, %s69
      %p71 = scmp.eq.s32.totalorder %s24, 0
      %p72 = por %p70, %p71
      %s74 = sadd.s32 %s73, 1
      %p77 = scmp.eq.s32.totalorder %s18, 1
      %p78 = scmp.ne.s32.totalorder %s73, %s75
      %p79 = scmp.eq.s32.totalorder %s18, 0
      %p80 = por %p78, %p79
      %p81 = scmp.ne.s32.totalorder %s73, %s75
      %p82 = scmp.eq.s32.totalorder %s23, 1
      %p83 = por %p81, %p82
      %p84 = scmp.ne.s32.totalorder %s75, %s76
      %p85 = scmp.eq.s32.totalorder %s23, 0
      %p86 = por %p84, %p85
      %p87 = scmp.ne.s32.totalorder %s75, %s76
      %p88 = scmp.eq.s32.totalorder %s24, 1
      %p89 = por %p87, %p88
      %p91 = scmp.ne.s32.totalorder %s76, %s90
      %p92 = scmp.eq.s32.totalorder %s24, 0
      %p93 = por %p91, %p92
      %s95 = sadd.s32 %s94, 1
      %p98 = scmp.eq.s32.totalorder %s18, 1
      %p99 = scmp.ne.s32.totalorder %s94, %s96
      %p100 = scmp.eq.s32.totalorder %s18, 0
      %p101 = por %p99, %p100
      %p102 = scmp.ne.s32.totalorder %s94, %s96
      %p103 = scmp.eq.s32.totalorder %s23, 1
      %p104 = por %p102, %p103
      %p105 = scmp.ne.s32.totalorder %s96, %s97
      %p106 = scmp.eq.s32.totalorder %s23, 0
      %p107 = por %p105, %p106
      %p108 = scmp.ne.s32.totalorder %s96, %s97
      %p109 = scmp.eq.s32.totalorder %s24, 1
      %p110 = por %p108, %p109
      %p112 = scmp.ne.s32.totalorder %s97, %s111
      %p113 = scmp.eq.s32.totalorder %s24, 0
      %p114 = por %p112, %p113
      %s115 = ssub.s32 %s18, %s25
      %p116 = scmp.eq.s32.totalorder %s115, 0
      %s118 = sadd.s32 %s117, 1
      %s119 = scalar_select %p116, %s117, %s118
      %p122 = pneg %p116
      %p123 = scmp.eq.s32.totalorder %s18, 1
      %p124 = por %p122, %p123
      %p125 = scmp.ne.s32.totalorder %s117, %s120
      %p126 = scmp.eq.s32.totalorder %s18, 0
      %p127 = por %p125, %p126
      %p128 = scmp.ne.s32.totalorder %s117, %s120
      %p129 = scmp.eq.s32.totalorder %s23, 1
      %p130 = por %p128, %p129
      %p131 = scmp.ne.s32.totalorder %s120, %s121
      %p132 = scmp.eq.s32.totalorder %s23, 0
      %p133 = por %p131, %p132
      %p134 = scmp.ne.s32.totalorder %s120, %s121
      %p135 = scmp.eq.s32.totalorder %s24, 1
      %p136 = por %p134, %p135
      %p138 = scmp.ne.s32.totalorder %s121, %s137
      %p139 = scmp.eq.s32.totalorder %s24, 0
      %p140 = por %p138, %p139
      %p141 = scmp.le.s32.totalorder 1, %s18
      %p142 = scmp.lt.s32.totalorder %s18, 3
      %p143 = pnand %p141, %p142
      %p144 = pneg %p143
      // Predicated region
      $region9: #{tpu_custom_call.1} parent=5 // pred_check
        _
      $region10: #{tpu_custom_call.1} parent=5 // pred_check_branch
        %146 = sbr.rel (%p143) target = $region12
      $region11: #{tpu_custom_call.1} parent=5 // pred_region
        %s147 = ssub.s32 %s18, 1
        // Predicated region
        $region13: #{tpu_custom_call.1} parent=11 // pred_check
          %p148 = pneg %p65
        $region14: #{tpu_custom_call.1} parent=11 // pred_check_branch
          %150 = sbr.rel (%p148) target = $region16
        $region15: #{tpu_custom_call.1} parent=11 // pred_region
          %s152 = ssub.s32 8192, 8192
          %153 = vsyncadd [#allocation6], %s152
          %s154 = sshll.u32 [#allocation5], 4
          %s155 = int_to_ptr.vmem [resolvable:$true] %s154
          %160 = dma.hbm_to_vmem [thread:$0]  %s1, 8192, %s155, [#allocation6], 512, 512, 32
        $region16: #{tpu_custom_call.1} parent=11 // pred_fallthru
          _
        // Predicated region
        $region17: #{tpu_custom_call.1} parent=11 // pred_check
          %p161 = pneg %p86
        $region18: #{tpu_custom_call.1} parent=11 // pred_check_branch
          %163 = sbr.rel (%p161) target = $region20
        $region19: #{tpu_custom_call.1} parent=11 // pred_region
          %s165 = ssub.s32 64, 64
          %166 = vsyncadd [#allocation6], %s165
          %s168 = sshll.u32 [#allocation7], 4
          %s169 = int_to_ptr.vmem [resolvable:$true] %s168
          %171 = dma.hbm_to_vmem [thread:$0]  %s2, 64, %s169, [#allocation6]
        $region20: #{tpu_custom_call.1} parent=11 // pred_fallthru
          _
        // Predicated region
        $region21: #{tpu_custom_call.1} parent=11 // pred_check
          %p172 = pneg %p107
        $region22: #{tpu_custom_call.1} parent=11 // pred_check_branch
          %174 = sbr.rel (%p172) target = $region24
        $region23: #{tpu_custom_call.1} parent=11 // pred_region
          %s176 = ssub.s32 64, 64
          %177 = vsyncadd [#allocation9], %s176
          %s179 = sshll.u32 [#allocation8], 4
          %s180 = int_to_ptr.vmem [resolvable:$true] %s179
          %182 = dma.hbm_to_vmem [thread:$0]  %s3, 64, %s180, [#allocation9]
        $region24: #{tpu_custom_call.1} parent=11 // pred_fallthru
          _
      $region12: #{tpu_custom_call.1} parent=5 // pred_fallthru
        _
      %p183 = scmp.lt.s32.totalorder %s18, 2
      // Predicated region
      $region25: #{tpu_custom_call.1} parent=5 // pred_check
        %p184 = pneg %p183
      $region26: #{tpu_custom_call.1} parent=5 // pred_check_branch
        %186 = sbr.rel (%p184) target = $region28
      $region27: #{tpu_custom_call.1} parent=5 // pred_region
        // Predicated region
        $region29: #{tpu_custom_call.1} parent=27 // pred_check
          %p187 = pneg %p38
        $region30: #{tpu_custom_call.1} parent=27 // pred_check_branch
          %189 = sbr.rel (%p187) target = $region32
        $region31: #{tpu_custom_call.1} parent=27 // pred_region
          %s190 = sand.u32 %s28, 1
          %s191 = scalar_lea.sflag [#allocation3], %s190
          %s192 = sand.u32 %s28, 1
          %s193 = smul.addr %s192, 1024
          %s194 = scalar_lea.vmem [#allocation2], %s193
          %s195 = smul.u32 128, %s18
          %s197 = ssub.s32 16384, 16384
          %198 = vsyncadd %s191, %s197
          %s199 = smul.addr %s195, 128
          %s200 = scalar_lea.hbm %s0, %s199
          %s201 = sshll.u32 %s194, 4
          %s202 = int_to_ptr.vmem [resolvable:$true] %s201
          %207 = dma.hbm_to_vmem [thread:$0]  %s200, 16384, %s202, %s191, 128, 128, 8
        $region32: #{tpu_custom_call.1} parent=27 // pred_fallthru
          _
      $region28: #{tpu_custom_call.1} parent=5 // pred_fallthru
        _
      %p208 = scmp.le.s32.totalorder 1, %s18
      %p209 = scmp.lt.s32.totalorder %s18, 3
      %p210 = pnand %p208, %p209
      %p211 = pneg %p210
      // Predicated region
      $region33: #{tpu_custom_call.1} parent=5 // pred_check
        _
      $region34: #{tpu_custom_call.1} parent=5 // pred_check_branch
        %213 = sbr.rel (%p210) target = $region36
      $region35: #{tpu_custom_call.1} parent=5 // pred_region
        %s214 = ssub.s32 %s18, 1
        %s215 = sand.u32 %s31, 1
        %s216 = scalar_lea.sflag [#allocation3], %s215
        %s217 = sand.u32 %s31, 1
        %s218 = smul.addr %s217, 1024
        %s219 = scalar_lea.vmem [#allocation2], %s218
        // Predicated region
        $region37: #{tpu_custom_call.1} parent=35 // pred_check
          %p220 = pneg %p44
        $region38: #{tpu_custom_call.1} parent=35 // pred_check_branch
          %222 = sbr.rel (%p220) target = $region40
        $region39: #{tpu_custom_call.1} parent=35 // pred_region
          %223 = dma.done %s216, 16384
        $region40: #{tpu_custom_call.1} parent=35 // pred_fallthru
          _
        // Predicated region
        $region41: #{tpu_custom_call.1} parent=35 // pred_check
          %p224 = pneg %p65
        $region42: #{tpu_custom_call.1} parent=35 // pred_check_branch
          %226 = sbr.rel (%p224) target = $region44
        $region43: #{tpu_custom_call.1} parent=35 // pred_region
          %227 = dma.done [#allocation6], 8192
        $region44: #{tpu_custom_call.1} parent=35 // pred_fallthru
          _
        // Predicated region
        $region45: #{tpu_custom_call.1} parent=35 // pred_check
          %p228 = pneg %p86
        $region46: #{tpu_custom_call.1} parent=35 // pred_check_branch
          %230 = sbr.rel (%p228) target = $region48
        $region47: #{tpu_custom_call.1} parent=35 // pred_region
          %231 = dma.done [#allocation6], 64
        $region48: #{tpu_custom_call.1} parent=35 // pred_fallthru
          _
        // Predicated region
        $region49: #{tpu_custom_call.1} parent=35 // pred_check
          %p232 = pneg %p107
        $region50: #{tpu_custom_call.1} parent=35 // pred_check_branch
          %234 = sbr.rel (%p232) target = $region52
        $region51: #{tpu_custom_call.1} parent=35 // pred_region
          %235 = dma.done [#allocation9], 64
        $region52: #{tpu_custom_call.1} parent=35 // pred_fallthru
          _
        %s236 = sand.u32 %s31, 1
        %s237 = scalar_lea.sflag [#allocation3], %s236
        %s238 = sand.u32 %s31, 1
        %s239 = smul.addr %s238, 1024
        %s240 = scalar_lea.vmem [#allocation2], %s239
        %p241 = pneg %p44
        %p242 = pneg %p41
        %p243 = pneg %p65
        %p244 = pneg %p62
        %p245 = pneg %p86
        %p246 = pneg %p83
        %p247 = pneg %p107
        %p248 = pneg %p104
        %p249 = pneg %p133
        %p250 = pneg %p130
        %s251 = sand.u32 %s120, 1
        %s252 = scalar_lea.sflag [#allocation4], %s251
        %s253 = sand.u32 %s120, 1
        %s254 = smul.addr %s253, 4096
        %s255 = scalar_lea.vmem [#allocation10], %s254
        %s256 = smul.u32 128, %s23
        %s257 = smul.u32 32, %s23
        %v258 = vld [vmem:[%s219] sm:$0xff]
        %v259 = vld [vmem:[%s219 + $0x8] sm:$0xff]
        %v260 = vld [vmem:[%s219 + $0x10] sm:$0xff]
        %v261 = vld [vmem:[%s219 + $0x18] sm:$0xff]
        %v262 = vld [vmem:[%s219 + $0x20] sm:$0xff]
        %v263 = vld [vmem:[%s219 + $0x28] sm:$0xff]
        %v264 = vld [vmem:[%s219 + $0x30] sm:$0xff]
        %v265 = vld [vmem:[%s219 + $0x38] sm:$0xff]
        %v266 = vld [vmem:[%s219 + $0x40] sm:$0xff]
        %v267 = vld [vmem:[%s219 + $0x48] sm:$0xff]
        %v268 = vld [vmem:[%s219 + $0x50] sm:$0xff]
        %v269 = vld [vmem:[%s219 + $0x58] sm:$0xff]
        %v270 = vld [vmem:[%s219 + $0x60] sm:$0xff]
        %v271 = vld [vmem:[%s219 + $0x68] sm:$0xff]
        %v272 = vld [vmem:[%s219 + $0x70] sm:$0xff]
        %v273 = vld [vmem:[%s219 + $0x78] sm:$0xff]
        %v274 = vld [vmem:[%s219 + $0x80] sm:$0xff]
        %v275 = vld [vmem:[%s219 + $0x88] sm:$0xff]
        %v276 = vld [vmem:[%s219 + $0x90] sm:$0xff]
        %v277 = vld [vmem:[%s219 + $0x98] sm:$0xff]
        %v278 = vld [vmem:[%s219 + $0xa0] sm:$0xff]
        %v279 = vld [vmem:[%s219 + $0xa8] sm:$0xff]
        %v280 = vld [vmem:[%s219 + $0xb0] sm:$0xff]
        %v281 = vld [vmem:[%s219 + $0xb8] sm:$0xff]
        %v282 = vld [vmem:[%s219 + $0xc0] sm:$0xff]
        %v283 = vld [vmem:[%s219 + $0xc8] sm:$0xff]
        %v284 = vld [vmem:[%s219 + $0xd0] sm:$0xff]
        %v285 = vld [vmem:[%s219 + $0xd8] sm:$0xff]
        %v286 = vld [vmem:[%s219 + $0xe0] sm:$0xff]
        %v287 = vld [vmem:[%s219 + $0xe8] sm:$0xff]
        %v288 = vld [vmem:[%s219 + $0xf0] sm:$0xff]
        %v289 = vld [vmem:[%s219 + $0xf8] sm:$0xff]
        %v290 = vld [vmem:[%s219 + $0x100] sm:$0xff]
        %v291 = vld [vmem:[%s219 + $0x108] sm:$0xff]
        %v292 = vld [vmem:[%s219 + $0x110] sm:$0xff]
        %v293 = vld [vmem:[%s219 + $0x118] sm:$0xff]
        %v294 = vld [vmem:[%s219 + $0x120] sm:$0xff]
        %v295 = vld [vmem:[%s219 + $0x128] sm:$0xff]
        %v296 = vld [vmem:[%s219 + $0x130] sm:$0xff]
        %v297 = vld [vmem:[%s219 + $0x138] sm:$0xff]
        %v298 = vld [vmem:[%s219 + $0x140] sm:$0xff]
        %v299 = vld [vmem:[%s219 + $0x148] sm:$0xff]
        %v300 = vld [vmem:[%s219 + $0x150] sm:$0xff]
        %v301 = vld [vmem:[%s219 + $0x158] sm:$0xff]
        %v302 = vld [vmem:[%s219 + $0x160] sm:$0xff]
        %v303 = vld [vmem:[%s219 + $0x168] sm:$0xff]
        %v304 = vld [vmem:[%s219 + $0x170] sm:$0xff]
        %v305 = vld [vmem:[%s219 + $0x178] sm:$0xff]
        %v306 = vld [vmem:[%s219 + $0x180] sm:$0xff]
        %v307 = vld [vmem:[%s219 + $0x188] sm:$0xff]
        %v308 = vld [vmem:[%s219 + $0x190] sm:$0xff]
        %v309 = vld [vmem:[%s219 + $0x198] sm:$0xff]
        %v310 = vld [vmem:[%s219 + $0x1a0] sm:$0xff]
        %v311 = vld [vmem:[%s219 + $0x1a8] sm:$0xff]
        %v312 = vld [vmem:[%s219 + $0x1b0] sm:$0xff]
        %v313 = vld [vmem:[%s219 + $0x1b8] sm:$0xff]
        %v314 = vld [vmem:[%s219 + $0x1c0] sm:$0xff]
        %v315 = vld [vmem:[%s219 + $0x1c8] sm:$0xff]
        %v316 = vld [vmem:[%s219 + $0x1d0] sm:$0xff]
        %v317 = vld [vmem:[%s219 + $0x1d8] sm:$0xff]
        %v318 = vld [vmem:[%s219 + $0x1e0] sm:$0xff]
        %v319 = vld [vmem:[%s219 + $0x1e8] sm:$0xff]
        %v320 = vld [vmem:[%s219 + $0x1f0] sm:$0xff]
        %v321 = vld [vmem:[%s219 + $0x1f8] sm:$0xff]
        %v322 = vld [vmem:[%s219 + $0x200] sm:$0xff]
        %v323 = vld [vmem:[%s219 + $0x208] sm:$0xff]
        %v324 = vld [vmem:[%s219 + $0x210] sm:$0xff]
        %v325 = vld [vmem:[%s219 + $0x218] sm:$0xff]
        %v326 = vld [vmem:[%s219 + $0x220] sm:$0xff]
        %v327 = vld [vmem:[%s219 + $0x228] sm:$0xff]
        %v328 = vld [vmem:[%s219 + $0x230] sm:$0xff]
        %v329 = vld [vmem:[%s219 + $0x238] sm:$0xff]
        %v330 = vld [vmem:[%s219 + $0x240] sm:$0xff]
        %v331 = vld [vmem:[%s219 + $0x248] sm:$0xff]
        %v332 = vld [vmem:[%s219 + $0x250] sm:$0xff]
        %v333 = vld [vmem:[%s219 + $0x258] sm:$0xff]
        %v334 = vld [vmem:[%s219 + $0x260] sm:$0xff]
        %v335 = vld [vmem:[%s219 + $0x268] sm:$0xff]
        %v336 = vld [vmem:[%s219 + $0x270] sm:$0xff]
        %v337 = vld [vmem:[%s219 + $0x278] sm:$0xff]
        %v338 = vld [vmem:[%s219 + $0x280] sm:$0xff]
        %v339 = vld [vmem:[%s219 + $0x288] sm:$0xff]
        %v340 = vld [vmem:[%s219 + $0x290] sm:$0xff]
        %v341 = vld [vmem:[%s219 + $0x298] sm:$0xff]
        %v342 = vld [vmem:[%s219 + $0x2a0] sm:$0xff]
        %v343 = vld [vmem:[%s219 + $0x2a8] sm:$0xff]
        %v344 = vld [vmem:[%s219 + $0x2b0] sm:$0xff]
        %v345 = vld [vmem:[%s219 + $0x2b8] sm:$0xff]
        %v346 = vld [vmem:[%s219 + $0x2c0] sm:$0xff]
        %v347 = vld [vmem:[%s219 + $0x2c8] sm:$0xff]
        %v348 = vld [vmem:[%s219 + $0x2d0] sm:$0xff]
        %v349 = vld [vmem:[%s219 + $0x2d8] sm:$0xff]
        %v350 = vld [vmem:[%s219 + $0x2e0] sm:$0xff]
        %v351 = vld [vmem:[%s219 + $0x2e8] sm:$0xff]
        %v352 = vld [vmem:[%s219 + $0x2f0] sm:$0xff]
        %v353 = vld [vmem:[%s219 + $0x2f8] sm:$0xff]
        %v354 = vld [vmem:[%s219 + $0x300] sm:$0xff]
        %v355 = vld [vmem:[%s219 + $0x308] sm:$0xff]
        %v356 = vld [vmem:[%s219 + $0x310] sm:$0xff]
        %v357 = vld [vmem:[%s219 + $0x318] sm:$0xff]
        %v358 = vld [vmem:[%s219 + $0x320] sm:$0xff]
        %v359 = vld [vmem:[%s219 + $0x328] sm:$0xff]
        %v360 = vld [vmem:[%s219 + $0x330] sm:$0xff]
        %v361 = vld [vmem:[%s219 + $0x338] sm:$0xff]
        %v362 = vld [vmem:[%s219 + $0x340] sm:$0xff]
        %v363 = vld [vmem:[%s219 + $0x348] sm:$0xff]
        %v364 = vld [vmem:[%s219 + $0x350] sm:$0xff]
        %v365 = vld [vmem:[%s219 + $0x358] sm:$0xff]
        %v366 = vld [vmem:[%s219 + $0x360] sm:$0xff]
        %v367 = vld [vmem:[%s219 + $0x368] sm:$0xff]
        %v368 = vld [vmem:[%s219 + $0x370] sm:$0xff]
        %v369 = vld [vmem:[%s219 + $0x378] sm:$0xff]
        %v370 = vld [vmem:[%s219 + $0x380] sm:$0xff]
        %v371 = vld [vmem:[%s219 + $0x388] sm:$0xff]
        %v372 = vld [vmem:[%s219 + $0x390] sm:$0xff]
        %v373 = vld [vmem:[%s219 + $0x398] sm:$0xff]
        %v374 = vld [vmem:[%s219 + $0x3a0] sm:$0xff]
        %v375 = vld [vmem:[%s219 + $0x3a8] sm:$0xff]
        %v376 = vld [vmem:[%s219 + $0x3b0] sm:$0xff]
        %v377 = vld [vmem:[%s219 + $0x3b8] sm:$0xff]
        %v378 = vld [vmem:[%s219 + $0x3c0] sm:$0xff]
        %v379 = vld [vmem:[%s219 + $0x3c8] sm:$0xff]
        %v380 = vld [vmem:[%s219 + $0x3d0] sm:$0xff]
        %v381 = vld [vmem:[%s219 + $0x3d8] sm:$0xff]
        %v382 = vld [vmem:[%s219 + $0x3e0] sm:$0xff]
        %v383 = vld [vmem:[%s219 + $0x3e8] sm:$0xff]
        %v384 = vld [vmem:[%s219 + $0x3f0] sm:$0xff]
        %v385 = vld [vmem:[%s219 + $0x3f8] sm:$0xff]
        %v386 = vld [vmem:[#allocation5] sm:$0xff]
        %v387 = vld [vmem:[#allocation5 + $0x8] sm:$0xff]
        %v388 = vld [vmem:[#allocation5 + $0x10] sm:$0xff]
        %v389 = vld [vmem:[#allocation5 + $0x18] sm:$0xff]
        %v390 = vld [vmem:[#allocation5 + $0x20] sm:$0xff]
        %v391 = vld [vmem:[#allocation5 + $0x28] sm:$0xff]
        %v392 = vld [vmem:[#allocation5 + $0x30] sm:$0xff]
        %v393 = vld [vmem:[#allocation5 + $0x38] sm:$0xff]
        %v394 = vld [vmem:[#allocation5 + $0x40] sm:$0xff]
        %v395 = vld [vmem:[#allocation5 + $0x48] sm:$0xff]
        %v396 = vld [vmem:[#allocation5 + $0x50] sm:$0xff]
        %v397 = vld [vmem:[#allocation5 + $0x58] sm:$0xff]
        %v398 = vld [vmem:[#allocation5 + $0x60] sm:$0xff]
        %v399 = vld [vmem:[#allocation5 + $0x68] sm:$0xff]
        %v400 = vld [vmem:[#allocation5 + $0x70] sm:$0xff]
        %v401 = vld [vmem:[#allocation5 + $0x78] sm:$0xff]
        %v402 = vld [vmem:[#allocation5 + $0x80] sm:$0xff]
        %v403 = vld [vmem:[#allocation5 + $0x88] sm:$0xff]
        %v404 = vld [vmem:[#allocation5 + $0x90] sm:$0xff]
        %v405 = vld [vmem:[#allocation5 + $0x98] sm:$0xff]
        %v406 = vld [vmem:[#allocation5 + $0xa0] sm:$0xff]
        %v407 = vld [vmem:[#allocation5 + $0xa8] sm:$0xff]
        %v408 = vld [vmem:[#allocation5 + $0xb0] sm:$0xff]
        %v409 = vld [vmem:[#allocation5 + $0xb8] sm:$0xff]
        %v410 = vld [vmem:[#allocation5 + $0xc0] sm:$0xff]
        %v411 = vld [vmem:[#allocation5 + $0xc8] sm:$0xff]
        %v412 = vld [vmem:[#allocation5 + $0xd0] sm:$0xff]
        %v413 = vld [vmem:[#allocation5 + $0xd8] sm:$0xff]
        %v414 = vld [vmem:[#allocation5 + $0xe0] sm:$0xff]
        %v415 = vld [vmem:[#allocation5 + $0xe8] sm:$0xff]
        %v416 = vld [vmem:[#allocation5 + $0xf0] sm:$0xff]
        %v417 = vld [vmem:[#allocation5 + $0xf8] sm:$0xff]
        %v418 = vld [vmem:[#allocation5 + $0x100] sm:$0xff]
        %v419 = vld [vmem:[#allocation5 + $0x108] sm:$0xff]
        %v420 = vld [vmem:[#allocation5 + $0x110] sm:$0xff]
        %v421 = vld [vmem:[#allocation5 + $0x118] sm:$0xff]
        %v422 = vld [vmem:[#allocation5 + $0x120] sm:$0xff]
        %v423 = vld [vmem:[#allocation5 + $0x128] sm:$0xff]
        %v424 = vld [vmem:[#allocation5 + $0x130] sm:$0xff]
        %v425 = vld [vmem:[#allocation5 + $0x138] sm:$0xff]
        %v426 = vld [vmem:[#allocation5 + $0x140] sm:$0xff]
        %v427 = vld [vmem:[#allocation5 + $0x148] sm:$0xff]
        %v428 = vld [vmem:[#allocation5 + $0x150] sm:$0xff]
        %v429 = vld [vmem:[#allocation5 + $0x158] sm:$0xff]
        %v430 = vld [vmem:[#allocation5 + $0x160] sm:$0xff]
        %v431 = vld [vmem:[#allocation5 + $0x168] sm:$0xff]
        %v432 = vld [vmem:[#allocation5 + $0x170] sm:$0xff]
        %v433 = vld [vmem:[#allocation5 + $0x178] sm:$0xff]
        %v434 = vld [vmem:[#allocation5 + $0x180] sm:$0xff]
        %v435 = vld [vmem:[#allocation5 + $0x188] sm:$0xff]
        %v436 = vld [vmem:[#allocation5 + $0x190] sm:$0xff]
        %v437 = vld [vmem:[#allocation5 + $0x198] sm:$0xff]
        %v438 = vld [vmem:[#allocation5 + $0x1a0] sm:$0xff]
        %v439 = vld [vmem:[#allocation5 + $0x1a8] sm:$0xff]
        %v440 = vld [vmem:[#allocation5 + $0x1b0] sm:$0xff]
        %v441 = vld [vmem:[#allocation5 + $0x1b8] sm:$0xff]
        %v442 = vld [vmem:[#allocation5 + $0x1c0] sm:$0xff]
        %v443 = vld [vmem:[#allocation5 + $0x1c8] sm:$0xff]
        %v444 = vld [vmem:[#allocation5 + $0x1d0] sm:$0xff]
        %v445 = vld [vmem:[#allocation5 + $0x1d8] sm:$0xff]
        %v446 = vld [vmem:[#allocation5 + $0x1e0] sm:$0xff]
        %v447 = vld [vmem:[#allocation5 + $0x1e8] sm:$0xff]
        %v448 = vld [vmem:[#allocation5 + $0x1f0] sm:$0xff]
        %v449 = vld [vmem:[#allocation5 + $0x1f8] sm:$0xff]
        %450 = vmatprep.subr.mxu0 %v387
        %451 = vmatpush1.msra.mxu0 %v386
        %452 = vmatprep.subr.mxu0 %v391
        %453 = vmatpush1.msra.mxu0 %v390
        %454 = vmatprep.subr.mxu0 %v395
        %455 = vmatpush1.msra.mxu0 %v394
        %456 = vmatprep.subr.mxu0 %v399
        %457 = vmatpush1.msra.mxu0 %v398
        %458 = vmatprep.subr.mxu0 %v403
        %459 = vmatpush1.msra.mxu0 %v402
        %460 = vmatprep.subr.mxu0 %v407
        %461 = vmatpush1.msra.mxu0 %v406
        %462 = vmatprep.subr.mxu0 %v411
        %463 = vmatpush1.msra.mxu0 %v410
        %464 = vmatprep.subr.mxu0 %v415
        %465 = vmatpush1.msra.mxu0 %v414
        %466 = vmatprep.subr.mxu0 %v419
        %467 = vmatpush1.msra.mxu0 %v418
        %468 = vmatprep.subr.mxu0 %v423
        %469 = vmatpush1.msra.mxu0 %v422
        %470 = vmatprep.subr.mxu0 %v427
        %471 = vmatpush1.msra.mxu0 %v426
        %472 = vmatprep.subr.mxu0 %v431
        %473 = vmatpush1.msra.mxu0 %v430
        %474 = vmatprep.subr.mxu0 %v435
        %475 = vmatpush1.msra.mxu0 %v434
        %476 = vmatprep.subr.mxu0 %v439
        %477 = vmatpush1.msra.mxu0 %v438
        %478 = vmatprep.subr.mxu0 %v443
        %479 = vmatpush1.msra.mxu0 %v442
        %480 = vmatprep.subr.mxu0 %v447
        %481 = vmatpush1.msra.mxu0 %v446
        %482 = vmatprep.subr.mxu0 0.0
        %483 = vmatpush1.msra.mxu0 0.0
        %484 = vmatprep.subr.mxu0 0.0
        %485 = vmatpush1.msra.mxu0 0.0
        %486 = vmatprep.subr.mxu0 0.0
        %487 = vmatpush1.msra.mxu0 0.0
        %488 = vmatprep.subr.mxu0 0.0
        %489 = vmatpush1.msra.mxu0 0.0
        %490 = vmatprep.subr.mxu0 0.0
        %491 = vmatpush1.msra.mxu0 0.0
        %492 = vmatprep.subr.mxu0 0.0
        %493 = vmatpush1.msra.mxu0 0.0
        %494 = vmatprep.subr.mxu0 0.0
        %495 = vmatpush1.msra.mxu0 0.0
        %496 = vmatprep.subr.mxu0 0.0
        %497 = vmatpush1.msra.mxu0 0.0
        %498 = vmatprep.subr.mxu0 0.0
        %499 = vmatpush1.msra.mxu0 0.0
        %500 = vmatprep.subr.mxu0 0.0
        %501 = vmatpush1.msra.mxu0 0.0
        %502 = vmatprep.subr.mxu0 0.0
        %503 = vmatpush1.msra.mxu0 0.0
        %504 = vmatprep.subr.mxu0 0.0
        %505 = vmatpush1.msra.mxu0 0.0
        %506 = vmatprep.subr.mxu0 0.0
        %507 = vmatpush1.msra.mxu0 0.0
        %508 = vmatprep.subr.mxu0 0.0
        %509 = vmatpush1.msra.mxu0 0.0
        %510 = vmatprep.subr.mxu0 0.0
        %511 = vmatpush1.msra.mxu0 0.0
        %512 = vmatprep.subr.mxu0 0.0
        %513 = vmatpush1.msra.mxu0 0.0
        %514 = vmatprep.mubr.f32.mxu0 0.0
        %515 = vmatmul.mubr.f32.gmra.mrb[0].mxu0 %v258
        %v516 = vpop.f32.mrb[0].mxu0
        %v517 = vadd.f32 0.0, %v516
        %v518 = vpop.f32.mrb[0].mxu0
        %v519 = vadd.f32 0.0, %v518
        %520 = vmatprep.mubr.f32.mxu0 0.0
        %521 = vmatmul.mubr.f32.gmra.mrb[0].mxu0 %v259
        %v522 = vpop.f32.mrb[0].mxu0
        %v523 = vadd.f32 0.0, %v522
        %v524 = vpop.f32.mrb[0].mxu0
        %v525 = vadd.f32 0.0, %v524
        %526 = vmatprep.mubr.f32.mxu0 0.0
        %527 = vmatmul.mubr.f32.gmra.mrb[0].mxu0 %v260
        %v528 = vpop.f32.mrb[0].mxu0
        %v529 = vadd.f32 0.0, %v528
        %v530 = vpop.f32.mrb[0].mxu0
        %v531 = vadd.f32 0.0, %v530
        %532 = vmatprep.mubr.f32.mxu0 0.0
        %533 = vmatmul.mubr.f32.gmra.mrb[0].mxu0 %v261
        %v534 = vpop.f32.mrb[0].mxu0
        %v535 = vadd.f32 0.0, %v534
        %v536 = vpop.f32.mrb[0].mxu0
        %v537 = vadd.f32 0.0, %v536
        %538 = vmatprep.mubr.f32.mxu0 0.0
        %539 = vmatmul.mubr.f32.gmra.mrb[0].mxu0 %v262
        %v540 = vpop.f32.mrb[0].mxu0
        %v541 = vadd.f32 0.0, %v540
        %v542 = vpop.f32.mrb[0].mxu0
        %v543 = vadd.f32 0.0, %v542
        %544 = vmatprep.mubr.f32.mxu0 0.0
        %545 = vmatmul.mubr.f32.gmra.mrb[0].mxu0 %v263
        %v546 = vpop.f32.mrb[0].mxu0
        %v547 = vadd.f32 0.0, %v546
        %v548 = vpop.f32.mrb[0].mxu0
        %v549 = vadd.f32 0.0, %v548
        %550 = vmatprep.mubr.f32.mxu0 0.0
        %551 = vmatmul.mubr.f32.gmra.mrb[0].mxu0 %v264
        %v552 = vpop.f32.mrb[0].mxu0
        %v553 = vadd.f32 0.0, %v552
        %v554 = vpop.f32.mrb[0].mxu0
        %v555 = vadd.f32 0.0, %v554
        %556 = vmatprep.mubr.f32.mxu0 0.0
        %557 = vmatmul.mubr.f32.gmra.mrb[0].mxu0 %v265
        %v558 = vpop.f32.mrb[0].mxu0
        %v559 = vadd.f32 0.0, %v558
        %v560 = vpop.f32.mrb[0].mxu0
        %v561 = vadd.f32 0.0, %v560
        %562 = vmatprep.mubr.f32.mxu0 0.0
        %563 = vmatmul.mubr.f32.gmra.mrb[0].mxu0 %v266
        %v564 = vpop.f32.mrb[0].mxu0
        %v565 = vadd.f32 0.0, %v564
        %v566 = vpop.f32.mrb[0].mxu0
        %v567 = vadd.f32 0.0, %v566
        %568 = vmatprep.mubr.f32.mxu0 0.0
        %569 = vmatmul.mubr.f32.gmra.mrb[0].mxu0 %v267
        %v570 = vpop.f32.mrb[0].mxu0
        %v571 = vadd.f32 0.0, %v570
        %v572 = vpop.f32.mrb[0].mxu0
        %v573 = vadd.f32 0.0, %v572
        %574 = vmatprep.mubr.f32.mxu0 0.0
        %575 = vmatmul.mubr.f32.gmra.mrb[0].mxu0 %v268
        %v576 = vpop.f32.mrb[0].mxu0
        %v577 = vadd.f32 0.0, %v576
        %v578 = vpop.f32.mrb[0].mxu0
        %v579 = vadd.f32 0.0, %v578
        %580 = vmatprep.mubr.f32.mxu0 0.0
        %581 = vmatmul.mubr.f32.gmra.mrb[0].mxu0 %v269
        %v582 = vpop.f32.mrb[0].mxu0
        %v583 = vadd.f32 0.0, %v582
        %v584 = vpop.f32.mrb[0].mxu0
        %v585 = vadd.f32 0.0, %v584
        %586 = vmatprep.mubr.f32.mxu0 0.0
        %587 = vmatmul.mubr.f32.gmra.mrb[0].mxu0 %v270
        %v588 = vpop.f32.mrb[0].mxu0
        %v589 = vadd.f32 0.0, %v588
        %v590 = vpop.f32.mrb[0].mxu0
        %v591 = vadd.f32 0.0, %v590
        %592 = vmatprep.mubr.f32.mxu0 0.0
        %593 = vmatmul.mubr.f32.gmra.mrb[0].mxu0 %v271
        %v594 = vpop.f32.mrb[0].mxu0
        %v595 = vadd.f32 0.0, %v594
        %v596 = vpop.f32.mrb[0].mxu0
        %v597 = vadd.f32 0.0, %v596
        %598 = vmatprep.mubr.f32.mxu0 0.0
        %599 = vmatmul.mubr.f32.gmra.mrb[0].mxu0 %v272
        %v600 = vpop.f32.mrb[0].mxu0
        %v601 = vadd.f32 0.0, %v600
        %v602 = vpop.f32.mrb[0].mxu0
        %v603 = vadd.f32 0.0, %v602
        %604 = vmatprep.mubr.f32.mxu0 0.0
        %605 = vmatmul.mubr.f32.gmra.mrb[0].mxu0 %v273
        %v606 = vpop.f32.mrb[0].mxu0
        %v607 = vadd.f32 0.0, %v606
        %v608 = vpop.f32.mrb[0].mxu0
        %v609 = vadd.f32 0.0, %v608
        %610 = vmatprep.mubr.f32.mxu0 0.0
        %611 = vmatmul.mubr.f32.gmra.mrb[0].mxu0 %v274
        %v612 = vpop.f32.mrb[0].mxu0
        %v613 = vadd.f32 0.0, %v612
        %v614 = vpop.f32.mrb[0].mxu0
        %v615 = vadd.f32 0.0, %v614
        %616 = vmatprep.mubr.f32.mxu0 0.0
        %617 = vmatmul.mubr.f32.gmra.mrb[0].mxu0 %v275
        %v618 = vpop.f32.mrb[0].mxu0
        %v619 = vadd.f32 0.0, %v618
        %v620 = vpop.f32.mrb[0].mxu0
        %v621 = vadd.f32 0.0, %v620
        %622 = vmatprep.mubr.f32.mxu0 0.0
        %623 = vmatmul.mubr.f32.gmra.mrb[0].mxu0 %v276
        %v624 = vpop.f32.mrb[0].mxu0
        %v625 = vadd.f32 0.0, %v624
        %v626 = vpop.f32.mrb[0].mxu0
        %v627 = vadd.f32 0.0, %v626
        %628 = vmatprep.mubr.f32.mxu0 0.0
        %629 = vmatmul.mubr.f32.gmra.mrb[0].mxu0 %v277
        %v630 = vpop.f32.mrb[0].mxu0
        %v631 = vadd.f32 0.0, %v630
        %v632 = vpop.f32.mrb[0].mxu0
        %v633 = vadd.f32 0.0, %v632
        %634 = vmatprep.mubr.f32.mxu0 0.0
        %635 = vmatmul.mubr.f32.gmra.mrb[0].mxu0 %v278
        %v636 = vpop.f32.mrb[0].mxu0
        %v637 = vadd.f32 0.0, %v636
        %v638 = vpop.f32.mrb[0].mxu0
        %v639 = vadd.f32 0.0, %v638
        %640 = vmatprep.mubr.f32.mxu0 0.0
        %641 = vmatmul.mubr.f32.gmra.mrb[0].mxu0 %v279
        %v642 = vpop.f32.mrb[0].mxu0
        %v643 = vadd.f32 0.0, %v642
        %v644 = vpop.f32.mrb[0].mxu0
        %v645 = vadd.f32 0.0, %v644
        %646 = vmatprep.mubr.f32.mxu0 0.0
        %647 = vmatmul.mubr.f32.gmra.mrb[0].mxu0 %v280
        %v648 = vpop.f32.mrb[0].mxu0
        %v649 = vadd.f32 0.0, %v648
        %v650 = vpop.f32.mrb[0].mxu0
        %v651 = vadd.f32 0.0, %v650
        %652 = vmatprep.mubr.f32.mxu0 0.0
        %653 = vmatmul.mubr.f32.gmra.mrb[0].mxu0 %v281
        %v654 = vpop.f32.mrb[0].mxu0
        %v655 = vadd.f32 0.0, %v654
        %v656 = vpop.f32.mrb[0].mxu0
        %v657 = vadd.f32 0.0, %v656
        %658 = vmatprep.mubr.f32.mxu0 0.0
        %659 = vmatmul.mubr.f32.gmra.mrb[0].mxu0 %v282
        %v660 = vpop.f32.mrb[0].mxu0
        %v661 = vadd.f32 0.0, %v660
        %v662 = vpop.f32.mrb[0].mxu0
        %v663 = vadd.f32 0.0, %v662
        %664 = vmatprep.mubr.f32.mxu0 0.0
        %665 = vmatmul.mubr.f32.gmra.mrb[0].mxu0 %v283
        %v666 = vpop.f32.mrb[0].mxu0
        %v667 = vadd.f32 0.0, %v666
        %v668 = vpop.f32.mrb[0].mxu0
        %v669 = vadd.f32 0.0, %v668
        %670 = vmatprep.mubr.f32.mxu0 0.0
        %671 = vmatmul.mubr.f32.gmra.mrb[0].mxu0 %v284
        %v672 = vpop.f32.mrb[0].mxu0
        %v673 = vadd.f32 0.0, %v672
        %v674 = vpop.f32.mrb[0].mxu0
        %v675 = vadd.f32 0.0, %v674
        %676 = vmatprep.mubr.f32.mxu0 0.0
        %677 = vmatmul.mubr.f32.gmra.mrb[0].mxu0 %v285
        %v678 = vpop.f32.mrb[0].mxu0
        %v679 = vadd.f32 0.0, %v678
        %v680 = vpop.f32.mrb[0].mxu0
        %v681 = vadd.f32 0.0, %v680
        %682 = vmatprep.mubr.f32.mxu0 0.0
        %683 = vmatmul.mubr.f32.gmra.mrb[0].mxu0 %v286
        %v684 = vpop.f32.mrb[0].mxu0
        %v685 = vadd.f32 0.0, %v684
        %v686 = vpop.f32.mrb[0].mxu0
        %v687 = vadd.f32 0.0, %v686
        %688 = vmatprep.mubr.f32.mxu0 0.0
        %689 = vmatmul.mubr.f32.gmra.mrb[0].mxu0 %v287
        %v690 = vpop.f32.mrb[0].mxu0
        %v691 = vadd.f32 0.0, %v690
        %v692 = vpop.f32.mrb[0].mxu0
        %v693 = vadd.f32 0.0, %v692
        %694 = vmatprep.mubr.f32.mxu0 0.0
        %695 = vmatmul.mubr.f32.gmra.mrb[0].mxu0 %v288
        %v696 = vpop.f32.mrb[0].mxu0
        %v697 = vadd.f32 0.0, %v696
        %v698 = vpop.f32.mrb[0].mxu0
        %v699 = vadd.f32 0.0, %v698
        %700 = vmatprep.mubr.f32.mxu0 0.0
        %701 = vmatmul.mubr.f32.gmra.mrb[0].mxu0 %v289
        %v702 = vpop.f32.mrb[0].mxu0
        %v703 = vadd.f32 0.0, %v702
        %v704 = vpop.f32.mrb[0].mxu0
        %v705 = vadd.f32 0.0, %v704
        %706 = vmatprep.mubr.f32.mxu0 0.0
        %707 = vmatmul.mubr.f32.gmra.mrb[0].mxu0 %v290
        %v708 = vpop.f32.mrb[0].mxu0
        %v709 = vadd.f32 0.0, %v708
        %v710 = vpop.f32.mrb[0].mxu0
        %v711 = vadd.f32 0.0, %v710
        %712 = vmatprep.mubr.f32.mxu0 0.0
        %713 = vmatmul.mubr.f32.gmra.mrb[0].mxu0 %v291
        %v714 = vpop.f32.mrb[0].mxu0
        %v715 = vadd.f32 0.0, %v714
        %v716 = vpop.f32.mrb[0].mxu0
        %v717 = vadd.f32 0.0, %v716
        %718 = vmatprep.mubr.f32.mxu0 0.0
        %719 = vmatmul.mubr.f32.gmra.mrb[0].mxu0 %v292
        %v720 = vpop.f32.mrb[0].mxu0
        %v721 = vadd.f32 0.0, %v720
        %v722 = vpop.f32.mrb[0].mxu0
        %v723 = vadd.f32 0.0, %v722
        %724 = vmatprep.mubr.f32.mxu0 0.0
        %725 = vmatmul.mubr.f32.gmra.mrb[0].mxu0 %v293
        %v726 = vpop.f32.mrb[0].mxu0
        %v727 = vadd.f32 0.0, %v726
        %v728 = vpop.f32.mrb[0].mxu0
        %v729 = vadd.f32 0.0, %v728
        %730 = vmatprep.mubr.f32.mxu0 0.0
        %731 = vmatmul.mubr.f32.gmra.mrb[0].mxu0 %v294
        %v732 = vpop.f32.mrb[0].mxu0
        %v733 = vadd.f32 0.0, %v732
        %v734 = vpop.f32.mrb[0].mxu0
        %v735 = vadd.f32 0.0, %v734
        %736 = vmatprep.mubr.f32.mxu0 0.0
        %737 = vmatmul.mubr.f32.gmra.mrb[0].mxu0 %v295
        %v738 = vpop.f32.mrb[0].mxu0
        %v739 = vadd.f32 0.0, %v738
        %v740 = vpop.f32.mrb[0].mxu0
        %v741 = vadd.f32 0.0, %v740
        %742 = vmatprep.mubr.f32.mxu0 0.0
        %743 = vmatmul.mubr.f32.gmra.mrb[0].mxu0 %v296
        %v744 = vpop.f32.mrb[0].mxu0
        %v745 = vadd.f32 0.0, %v744
        %v746 = vpop.f32.mrb[0].mxu0
        %v747 = vadd.f32 0.0, %v746
        %748 = vmatprep.mubr.f32.mxu0 0.0
        %749 = vmatmul.mubr.f32.gmra.mrb[0].mxu0 %v297
        %v750 = vpop.f32.mrb[0].mxu0
        %v751 = vadd.f32 0.0, %v750
        %v752 = vpop.f32.mrb[0].mxu0
        %v753 = vadd.f32 0.0, %v752
        %754 = vmatprep.mubr.f32.mxu0 0.0
        %755 = vmatmul.mubr.f32.gmra.mrb[0].mxu0 %v298
        %v756 = vpop.f32.mrb[0].mxu0
        %v757 = vadd.f32 0.0, %v756
        %v758 = vpop.f32.mrb[0].mxu0
        %v759 = vadd.f32 0.0, %v758
        %760 = vmatprep.mubr.f32.mxu0 0.0
        %761 = vmatmul.mubr.f32.gmra.mrb[0].mxu0 %v299
        %v762 = vpop.f32.mrb[0].mxu0
        %v763 = vadd.f32 0.0, %v762
        %v764 = vpop.f32.mrb[0].mxu0
        %v765 = vadd.f32 0.0, %v764
        %766 = vmatprep.mubr.f32.mxu0 0.0
        %767 = vmatmul.mubr.f32.gmra.mrb[0].mxu0 %v300
        %v768 = vpop.f32.mrb[0].mxu0
        %v769 = vadd.f32 0.0, %v768
        %v770 = vpop.f32.mrb[0].mxu0
        %v771 = vadd.f32 0.0, %v770
        %772 = vmatprep.mubr.f32.mxu0 0.0
        %773 = vmatmul.mubr.f32.gmra.mrb[0].mxu0 %v301
        %v774 = vpop.f32.mrb[0].mxu0
        %v775 = vadd.f32 0.0, %v774
        %v776 = vpop.f32.mrb[0].mxu0
        %v777 = vadd.f32 0.0, %v776
        %778 = vmatprep.mubr.f32.mxu0 0.0
        %779 = vmatmul.mubr.f32.gmra.mrb[0].mxu0 %v302
        %v780 = vpop.f32.mrb[0].mxu0
        %v781 = vadd.f32 0.0, %v780
        %v782 = vpop.f32.mrb[0].mxu0
        %v783 = vadd.f32 0.0, %v782
        %784 = vmatprep.mubr.f32.mxu0 0.0
        %785 = vmatmul.mubr.f32.gmra.mrb[0].mxu0 %v303
        %v786 = vpop.f32.mrb[0].mxu0
        %v787 = vadd.f32 0.0, %v786
        %v788 = vpop.f32.mrb[0].mxu0
        %v789 = vadd.f32 0.0, %v788
        %790 = vmatprep.mubr.f32.mxu0 0.0
        %791 = vmatmul.mubr.f32.gmra.mrb[0].mxu0 %v304
        %v792 = vpop.f32.mrb[0].mxu0
        %v793 = vadd.f32 0.0, %v792
        %v794 = vpop.f32.mrb[0].mxu0
        %v795 = vadd.f32 0.0, %v794
        %796 = vmatprep.mubr.f32.mxu0 0.0
        %797 = vmatmul.mubr.f32.gmra.mrb[0].mxu0 %v305
        %v798 = vpop.f32.mrb[0].mxu0
        %v799 = vadd.f32 0.0, %v798
        %v800 = vpop.f32.mrb[0].mxu0
        %v801 = vadd.f32 0.0, %v800
        %802 = vmatprep.mubr.f32.mxu0 0.0
        %803 = vmatmul.mubr.f32.gmra.mrb[0].mxu0 %v306
        %v804 = vpop.f32.mrb[0].mxu0
        %v805 = vadd.f32 0.0, %v804
        %v806 = vpop.f32.mrb[0].mxu0
        %v807 = vadd.f32 0.0, %v806
        %808 = vmatprep.mubr.f32.mxu0 0.0
        %809 = vmatmul.mubr.f32.gmra.mrb[0].mxu0 %v307
        %v810 = vpop.f32.mrb[0].mxu0
        %v811 = vadd.f32 0.0, %v810
        %v812 = vpop.f32.mrb[0].mxu0
        %v813 = vadd.f32 0.0, %v812
        %814 = vmatprep.mubr.f32.mxu0 0.0
        %815 = vmatmul.mubr.f32.gmra.mrb[0].mxu0 %v308
        %v816 = vpop.f32.mrb[0].mxu0
        %v817 = vadd.f32 0.0, %v816
        %v818 = vpop.f32.mrb[0].mxu0
        %v819 = vadd.f32 0.0, %v818
        %820 = vmatprep.mubr.f32.mxu0 0.0
        %821 = vmatmul.mubr.f32.gmra.mrb[0].mxu0 %v309
        %v822 = vpop.f32.mrb[0].mxu0
        %v823 = vadd.f32 0.0, %v822
        %v824 = vpop.f32.mrb[0].mxu0
        %v825 = vadd.f32 0.0, %v824
        %826 = vmatprep.mubr.f32.mxu0 0.0
        %827 = vmatmul.mubr.f32.gmra.mrb[0].mxu0 %v310
        %v828 = vpop.f32.mrb[0].mxu0
        %v829 = vadd.f32 0.0, %v828
        %v830 = vpop.f32.mrb[0].mxu0
        %v831 = vadd.f32 0.0, %v830
        %832 = vmatprep.mubr.f32.mxu0 0.0
        %833 = vmatmul.mubr.f32.gmra.mrb[0].mxu0 %v311
        %v834 = vpop.f32.mrb[0].mxu0
        %v835 = vadd.f32 0.0, %v834
        %v836 = vpop.f32.mrb[0].mxu0
        %v837 = vadd.f32 0.0, %v836
        %838 = vmatprep.mubr.f32.mxu0 0.0
        %839 = vmatmul.mubr.f32.gmra.mrb[0].mxu0 %v312
        %v840 = vpop.f32.mrb[0].mxu0
        %v841 = vadd.f32 0.0, %v840
        %v842 = vpop.f32.mrb[0].mxu0
        %v843 = vadd.f32 0.0, %v842
        %844 = vmatprep.mubr.f32.mxu0 0.0
        %845 = vmatmul.mubr.f32.gmra.mrb[0].mxu0 %v313
        %v846 = vpop.f32.mrb[0].mxu0
        %v847 = vadd.f32 0.0, %v846
        %v848 = vpop.f32.mrb[0].mxu0
        %v849 = vadd.f32 0.0, %v848
        %850 = vmatprep.mubr.f32.mxu0 0.0
        %851 = vmatmul.mubr.f32.gmra.mrb[0].mxu0 %v314
        %v852 = vpop.f32.mrb[0].mxu0
        %v853 = vadd.f32 0.0, %v852
        %v854 = vpop.f32.mrb[0].mxu0
        %v855 = vadd.f32 0.0, %v854
        %856 = vmatprep.mubr.f32.mxu0 0.0
        %857 = vmatmul.mubr.f32.gmra.mrb[0].mxu0 %v315
        %v858 = vpop.f32.mrb[0].mxu0
        %v859 = vadd.f32 0.0, %v858
        %v860 = vpop.f32.mrb[0].mxu0
        %v861 = vadd.f32 0.0, %v860
        %862 = vmatprep.mubr.f32.mxu0 0.0
        %863 = vmatmul.mubr.f32.gmra.mrb[0].mxu0 %v316
        %v864 = vpop.f32.mrb[0].mxu0
        %v865 = vadd.f32 0.0, %v864
        %v866 = vpop.f32.mrb[0].mxu0
        %v867 = vadd.f32 0.0, %v866
        %868 = vmatprep.mubr.f32.mxu0 0.0
        %869 = vmatmul.mubr.f32.gmra.mrb[0].mxu0 %v317
        %v870 = vpop.f32.mrb[0].mxu0
        %v871 = vadd.f32 0.0, %v870
        %v872 = vpop.f32.mrb[0].mxu0
        %v873 = vadd.f32 0.0, %v872
        %874 = vmatprep.mubr.f32.mxu0 0.0
        %875 = vmatmul.mubr.f32.gmra.mrb[0].mxu0 %v318
        %v876 = vpop.f32.mrb[0].mxu0
        %v877 = vadd.f32 0.0, %v876
        %v878 = vpop.f32.mrb[0].mxu0
        %v879 = vadd.f32 0.0, %v878
        %880 = vmatprep.mubr.f32.mxu0 0.0
        %881 = vmatmul.mubr.f32.gmra.mrb[0].mxu0 %v319
        %v882 = vpop.f32.mrb[0].mxu0
        %v883 = vadd.f32 0.0, %v882
        %v884 = vpop.f32.mrb[0].mxu0
        %v885 = vadd.f32 0.0, %v884
        %886 = vmatprep.mubr.f32.mxu0 0.0
        %887 = vmatmul.mubr.f32.gmra.mrb[0].mxu0 %v320
        %v888 = vpop.f32.mrb[0].mxu0
        %v889 = vadd.f32 0.0, %v888
        %v890 = vpop.f32.mrb[0].mxu0
        %v891 = vadd.f32 0.0, %v890
        %892 = vmatprep.mubr.f32.mxu0 0.0
        %893 = vmatmul.mubr.f32.gmra.mrb[0].mxu0 %v321
        %v894 = vpop.f32.mrb[0].mxu0
        %v895 = vadd.f32 0.0, %v894
        %v896 = vpop.f32.mrb[0].mxu0
        %v897 = vadd.f32 0.0, %v896
        %898 = vmatprep.mubr.f32.mxu0 0.0
        %899 = vmatmul.mubr.f32.gmra.mrb[0].mxu0 %v322
        %v900 = vpop.f32.mrb[0].mxu0
        %v901 = vadd.f32 0.0, %v900
        %v902 = vpop.f32.mrb[0].mxu0
        %v903 = vadd.f32 0.0, %v902
        %904 = vmatprep.mubr.f32.mxu0 0.0
        %905 = vmatmul.mubr.f32.gmra.mrb[0].mxu0 %v323
        %v906 = vpop.f32.mrb[0].mxu0
        %v907 = vadd.f32 0.0, %v906
        %v908 = vpop.f32.mrb[0].mxu0
        %v909 = vadd.f32 0.0, %v908
        %910 = vmatprep.mubr.f32.mxu0 0.0
        %911 = vmatmul.mubr.f32.gmra.mrb[0].mxu0 %v324
        %v912 = vpop.f32.mrb[0].mxu0
        %v913 = vadd.f32 0.0, %v912
        %v914 = vpop.f32.mrb[0].mxu0
        %v915 = vadd.f32 0.0, %v914
        %916 = vmatprep.mubr.f32.mxu0 0.0
        %917 = vmatmul.mubr.f32.gmra.mrb[0].mxu0 %v325
        %v918 = vpop.f32.mrb[0].mxu0
        %v919 = vadd.f32 0.0, %v918
        %v920 = vpop.f32.mrb[0].mxu0
        %v921 = vadd.f32 0.0, %v920
        %922 = vmatprep.mubr.f32.mxu0 0.0
        %923 = vmatmul.mubr.f32.gmra.mrb[0].mxu0 %v326
        %v924 = vpop.f32.mrb[0].mxu0
        %v925 = vadd.f32 0.0, %v924
        %v926 = vpop.f32.mrb[0].mxu0
        %v927 = vadd.f32 0.0, %v926
        %928 = vmatprep.mubr.f32.mxu0 0.0
        %929 = vmatmul.mubr.f32.gmra.mrb[0].mxu0 %v327
        %v930 = vpop.f32.mrb[0].mxu0
        %v931 = vadd.f32 0.0, %v930
        %v932 = vpop.f32.mrb[0].mxu0
        %v933 = vadd.f32 0.0, %v932
        %934 = vmatprep.mubr.f32.mxu0 0.0
        %935 = vmatmul.mubr.f32.gmra.mrb[0].mxu0 %v328
        %v936 = vpop.f32.mrb[0].mxu0
        %v937 = vadd.f32 0.0, %v936
        %v938 = vpop.f32.mrb[0].mxu0
        %v939 = vadd.f32 0.0, %v938
        %940 = vmatprep.mubr.f32.mxu0 0.0
        %941 = vmatmul.mubr.f32.gmra.mrb[0].mxu0 %v329
        %v942 = vpop.f32.mrb[0].mxu0
        %v943 = vadd.f32 0.0, %v942
        %v944 = vpop.f32.mrb[0].mxu0
        %v945 = vadd.f32 0.0, %v944
        %946 = vmatprep.mubr.f32.mxu0 0.0
        %947 = vmatmul.mubr.f32.gmra.mrb[0].mxu0 %v330
        %v948 = vpop.f32.mrb[0].mxu0
        %v949 = vadd.f32 0.0, %v948
        %v950 = vpop.f32.mrb[0].mxu0
        %v951 = vadd.f32 0.0, %v950
        %952 = vmatprep.mubr.f32.mxu0 0.0
        %953 = vmatmul.mubr.f32.gmra.mrb[0].mxu0 %v331
        %v954 = vpop.f32.mrb[0].mxu0
        %v955 = vadd.f32 0.0, %v954
        %v956 = vpop.f32.mrb[0].mxu0
        %v957 = vadd.f32 0.0, %v956
        %958 = vmatprep.mubr.f32.mxu0 0.0
        %959 = vmatmul.mubr.f32.gmra.mrb[0].mxu0 %v332
        %v960 = vpop.f32.mrb[0].mxu0
        %v961 = vadd.f32 0.0, %v960
        %v962 = vpop.f32.mrb[0].mxu0
        %v963 = vadd.f32 0.0, %v962
        %964 = vmatprep.mubr.f32.mxu0 0.0
        %965 = vmatmul.mubr.f32.gmra.mrb[0].mxu0 %v333
        %v966 = vpop.f32.mrb[0].mxu0
        %v967 = vadd.f32 0.0, %v966
        %v968 = vpop.f32.mrb[0].mxu0
        %v969 = vadd.f32 0.0, %v968
        %970 = vmatprep.mubr.f32.mxu0 0.0
        %971 = vmatmul.mubr.f32.gmra.mrb[0].mxu0 %v334
        %v972 = vpop.f32.mrb[0].mxu0
        %v973 = vadd.f32 0.0, %v972
        %v974 = vpop.f32.mrb[0].mxu0
        %v975 = vadd.f32 0.0, %v974
        %976 = vmatprep.mubr.f32.mxu0 0.0
        %977 = vmatmul.mubr.f32.gmra.mrb[0].mxu0 %v335
        %v978 = vpop.f32.mrb[0].mxu0
        %v979 = vadd.f32 0.0, %v978
        %v980 = vpop.f32.mrb[0].mxu0
        %v981 = vadd.f32 0.0, %v980
        %982 = vmatprep.mubr.f32.mxu0 0.0
        %983 = vmatmul.mubr.f32.gmra.mrb[0].mxu0 %v336
        %v984 = vpop.f32.mrb[0].mxu0
        %v985 = vadd.f32 0.0, %v984
        %v986 = vpop.f32.mrb[0].mxu0
        %v987 = vadd.f32 0.0, %v986
        %988 = vmatprep.mubr.f32.mxu0 0.0
        %989 = vmatmul.mubr.f32.gmra.mrb[0].mxu0 %v337
        %v990 = vpop.f32.mrb[0].mxu0
        %v991 = vadd.f32 0.0, %v990
        %v992 = vpop.f32.mrb[0].mxu0
        %v993 = vadd.f32 0.0, %v992
        %994 = vmatprep.mubr.f32.mxu0 0.0
        %995 = vmatmul.mubr.f32.gmra.mrb[0].mxu0 %v338
        %v996 = vpop.f32.mrb[0].mxu0
        %v997 = vadd.f32 0.0, %v996
        %v998 = vpop.f32.mrb[0].mxu0
        %v999 = vadd.f32 0.0, %v998
        %1000 = vmatprep.mubr.f32.mxu0 0.0
        %1001 = vmatmul.mubr.f32.gmra.mrb[0].mxu0 %v339
        %v1002 = vpop.f32.mrb[0].mxu0
        %v1003 = vadd.f32 0.0, %v1002
        %v1004 = vpop.f32.mrb[0].mxu0
        %v1005 = vadd.f32 0.0, %v1004
        %1006 = vmatprep.mubr.f32.mxu0 0.0
        %1007 = vmatmul.mubr.f32.gmra.mrb[0].mxu0 %v340
        %v1008 = vpop.f32.mrb[0].mxu0
        %v1009 = vadd.f32 0.0, %v1008
        %v1010 = vpop.f32.mrb[0].mxu0
        %v1011 = vadd.f32 0.0, %v1010
        %1012 = vmatprep.mubr.f32.mxu0 0.0
        %1013 = vmatmul.mubr.f32.gmra.mrb[0].mxu0 %v341
        %v1014 = vpop.f32.mrb[0].mxu0
        %v1015 = vadd.f32 0.0, %v1014
        %v1016 = vpop.f32.mrb[0].mxu0
        %v1017 = vadd.f32 0.0, %v1016
        %1018 = vmatprep.mubr.f32.mxu0 0.0
        %1019 = vmatmul.mubr.f32.gmra.mrb[0].mxu0 %v342
        %v1020 = vpop.f32.mrb[0].mxu0
        %v1021 = vadd.f32 0.0, %v1020
        %v1022 = vpop.f32.mrb[0].mxu0
        %v1023 = vadd.f32 0.0, %v1022
        %1024 = vmatprep.mubr.f32.mxu0 0.0
        %1025 = vmatmul.mubr.f32.gmra.mrb[0].mxu0 %v343
        %v1026 = vpop.f32.mrb[0].mxu0
        %v1027 = vadd.f32 0.0, %v1026
        %v1028 = vpop.f32.mrb[0].mxu0
        %v1029 = vadd.f32 0.0, %v1028
        %1030 = vmatprep.mubr.f32.mxu0 0.0
        %1031 = vmatmul.mubr.f32.gmra.mrb[0].mxu0 %v344
        %v1032 = vpop.f32.mrb[0].mxu0
        %v1033 = vadd.f32 0.0, %v1032
        %v1034 = vpop.f32.mrb[0].mxu0
        %v1035 = vadd.f32 0.0, %v1034
        %1036 = vmatprep.mubr.f32.mxu0 0.0
        %1037 = vmatmul.mubr.f32.gmra.mrb[0].mxu0 %v345
        %v1038 = vpop.f32.mrb[0].mxu0
        %v1039 = vadd.f32 0.0, %v1038
        %v1040 = vpop.f32.mrb[0].mxu0
        %v1041 = vadd.f32 0.0, %v1040
        %1042 = vmatprep.mubr.f32.mxu0 0.0
        %1043 = vmatmul.mubr.f32.gmra.mrb[0].mxu0 %v346
        %v1044 = vpop.f32.mrb[0].mxu0
        %v1045 = vadd.f32 0.0, %v1044
        %v1046 = vpop.f32.mrb[0].mxu0
        %v1047 = vadd.f32 0.0, %v1046
        %1048 = vmatprep.mubr.f32.mxu0 0.0
        %1049 = vmatmul.mubr.f32.gmra.mrb[0].mxu0 %v347
        %v1050 = vpop.f32.mrb[0].mxu0
        %v1051 = vadd.f32 0.0, %v1050
        %v1052 = vpop.f32.mrb[0].mxu0
        %v1053 = vadd.f32 0.0, %v1052
        %1054 = vmatprep.mubr.f32.mxu0 0.0
        %1055 = vmatmul.mubr.f32.gmra.mrb[0].mxu0 %v348
        %v1056 = vpop.f32.mrb[0].mxu0
        %v1057 = vadd.f32 0.0, %v1056
        %v1058 = vpop.f32.mrb[0].mxu0
        %v1059 = vadd.f32 0.0, %v1058
        %1060 = vmatprep.mubr.f32.mxu0 0.0
        %1061 = vmatmul.mubr.f32.gmra.mrb[0].mxu0 %v349
        %v1062 = vpop.f32.mrb[0].mxu0
        %v1063 = vadd.f32 0.0, %v1062
        %v1064 = vpop.f32.mrb[0].mxu0
        %v1065 = vadd.f32 0.0, %v1064
        %1066 = vmatprep.mubr.f32.mxu0 0.0
        %1067 = vmatmul.mubr.f32.gmra.mrb[0].mxu0 %v350
        %v1068 = vpop.f32.mrb[0].mxu0
        %v1069 = vadd.f32 0.0, %v1068
        %v1070 = vpop.f32.mrb[0].mxu0
        %v1071 = vadd.f32 0.0, %v1070
        %1072 = vmatprep.mubr.f32.mxu0 0.0
        %1073 = vmatmul.mubr.f32.gmra.mrb[0].mxu0 %v351
        %v1074 = vpop.f32.mrb[0].mxu0
        %v1075 = vadd.f32 0.0, %v1074
        %v1076 = vpop.f32.mrb[0].mxu0
        %v1077 = vadd.f32 0.0, %v1076
        %1078 = vmatprep.mubr.f32.mxu0 0.0
        %1079 = vmatmul.mubr.f32.gmra.mrb[0].mxu0 %v352
        %v1080 = vpop.f32.mrb[0].mxu0
        %v1081 = vadd.f32 0.0, %v1080
        %v1082 = vpop.f32.mrb[0].mxu0
        %v1083 = vadd.f32 0.0, %v1082
        %1084 = vmatprep.mubr.f32.mxu0 0.0
        %1085 = vmatmul.mubr.f32.gmra.mrb[0].mxu0 %v353
        %v1086 = vpop.f32.mrb[0].mxu0
        %v1087 = vadd.f32 0.0, %v1086
        %v1088 = vpop.f32.mrb[0].mxu0
        %v1089 = vadd.f32 0.0, %v1088
        %1090 = vmatprep.mubr.f32.mxu0 0.0
        %1091 = vmatmul.mubr.f32.gmra.mrb[0].mxu0 %v354
        %v1092 = vpop.f32.mrb[0].mxu0
        %v1093 = vadd.f32 0.0, %v1092
        %v1094 = vpop.f32.mrb[0].mxu0
        %v1095 = vadd.f32 0.0, %v1094
        %1096 = vmatprep.mubr.f32.mxu0 0.0
        %1097 = vmatmul.mubr.f32.gmra.mrb[0].mxu0 %v355
        %v1098 = vpop.f32.mrb[0].mxu0
        %v1099 = vadd.f32 0.0, %v1098
        %v1100 = vpop.f32.mrb[0].mxu0
        %v1101 = vadd.f32 0.0, %v1100
        %1102 = vmatprep.mubr.f32.mxu0 0.0
        %1103 = vmatmul.mubr.f32.gmra.mrb[0].mxu0 %v356
        %v1104 = vpop.f32.mrb[0].mxu0
        %v1105 = vadd.f32 0.0, %v1104
        %v1106 = vpop.f32.mrb[0].mxu0
        %v1107 = vadd.f32 0.0, %v1106
        %1108 = vmatprep.mubr.f32.mxu0 0.0
        %1109 = vmatmul.mubr.f32.gmra.mrb[0].mxu0 %v357
        %v1110 = vpop.f32.mrb[0].mxu0
        %v1111 = vadd.f32 0.0, %v1110
        %v1112 = vpop.f32.mrb[0].mxu0
        %v1113 = vadd.f32 0.0, %v1112
        %1114 = vmatprep.mubr.f32.mxu0 0.0
        %1115 = vmatmul.mubr.f32.gmra.mrb[0].mxu0 %v358
        %v1116 = vpop.f32.mrb[0].mxu0
        %v1117 = vadd.f32 0.0, %v1116
        %v1118 = vpop.f32.mrb[0].mxu0
        %v1119 = vadd.f32 0.0, %v1118
        %1120 = vmatprep.mubr.f32.mxu0 0.0
        %1121 = vmatmul.mubr.f32.gmra.mrb[0].mxu0 %v359
        %v1122 = vpop.f32.mrb[0].mxu0
        %v1123 = vadd.f32 0.0, %v1122
        %v1124 = vpop.f32.mrb[0].mxu0
        %v1125 = vadd.f32 0.0, %v1124
        %1126 = vmatprep.mubr.f32.mxu0 0.0
        %1127 = vmatmul.mubr.f32.gmra.mrb[0].mxu0 %v360
        %v1128 = vpop.f32.mrb[0].mxu0
        %v1129 = vadd.f32 0.0, %v1128
        %v1130 = vpop.f32.mrb[0].mxu0
        %v1131 = vadd.f32 0.0, %v1130
        %1132 = vmatprep.mubr.f32.mxu0 0.0
        %1133 = vmatmul.mubr.f32.gmra.mrb[0].mxu0 %v361
        %v1134 = vpop.f32.mrb[0].mxu0
        %v1135 = vadd.f32 0.0, %v1134
        %v1136 = vpop.f32.mrb[0].mxu0
        %v1137 = vadd.f32 0.0, %v1136
        %1138 = vmatprep.mubr.f32.mxu0 0.0
        %1139 = vmatmul.mubr.f32.gmra.mrb[0].mxu0 %v362
        %v1140 = vpop.f32.mrb[0].mxu0
        %v1141 = vadd.f32 0.0, %v1140
        %v1142 = vpop.f32.mrb[0].mxu0
        %v1143 = vadd.f32 0.0, %v1142
        %1144 = vmatprep.mubr.f32.mxu0 0.0
        %1145 = vmatmul.mubr.f32.gmra.mrb[0].mxu0 %v363
        %v1146 = vpop.f32.mrb[0].mxu0
        %v1147 = vadd.f32 0.0, %v1146
        %v1148 = vpop.f32.mrb[0].mxu0
        %v1149 = vadd.f32 0.0, %v1148
        %1150 = vmatprep.mubr.f32.mxu0 0.0
        %1151 = vmatmul.mubr.f32.gmra.mrb[0].mxu0 %v364
        %v1152 = vpop.f32.mrb[0].mxu0
        %v1153 = vadd.f32 0.0, %v1152
        %v1154 = vpop.f32.mrb[0].mxu0
        %v1155 = vadd.f32 0.0, %v1154
        %1156 = vmatprep.mubr.f32.mxu0 0.0
        %1157 = vmatmul.mubr.f32.gmra.mrb[0].mxu0 %v365
        %v1158 = vpop.f32.mrb[0].mxu0
        %v1159 = vadd.f32 0.0, %v1158
        %v1160 = vpop.f32.mrb[0].mxu0
        %v1161 = vadd.f32 0.0, %v1160
        %1162 = vmatprep.mubr.f32.mxu0 0.0
        %1163 = vmatmul.mubr.f32.gmra.mrb[0].mxu0 %v366
        %v1164 = vpop.f32.mrb[0].mxu0
        %v1165 = vadd.f32 0.0, %v1164
        %v1166 = vpop.f32.mrb[0].mxu0
        %v1167 = vadd.f32 0.0, %v1166
        %1168 = vmatprep.mubr.f32.mxu0 0.0
        %1169 = vmatmul.mubr.f32.gmra.mrb[0].mxu0 %v367
        %v1170 = vpop.f32.mrb[0].mxu0
        %v1171 = vadd.f32 0.0, %v1170
        %v1172 = vpop.f32.mrb[0].mxu0
        %v1173 = vadd.f32 0.0, %v1172
        %1174 = vmatprep.mubr.f32.mxu0 0.0
        %1175 = vmatmul.mubr.f32.gmra.mrb[0].mxu0 %v368
        %v1176 = vpop.f32.mrb[0].mxu0
        %v1177 = vadd.f32 0.0, %v1176
        %v1178 = vpop.f32.mrb[0].mxu0
        %v1179 = vadd.f32 0.0, %v1178
        %1180 = vmatprep.mubr.f32.mxu0 0.0
        %1181 = vmatmul.mubr.f32.gmra.mrb[0].mxu0 %v369
        %v1182 = vpop.f32.mrb[0].mxu0
        %v1183 = vadd.f32 0.0, %v1182
        %v1184 = vpop.f32.mrb[0].mxu0
        %v1185 = vadd.f32 0.0, %v1184
        %1186 = vmatprep.mubr.f32.mxu0 0.0
        %1187 = vmatmul.mubr.f32.gmra.mrb[0].mxu0 %v370
        %v1188 = vpop.f32.mrb[0].mxu0
        %v1189 = vadd.f32 0.0, %v1188
        %v1190 = vpop.f32.mrb[0].mxu0
        %v1191 = vadd.f32 0.0, %v1190
        %1192 = vmatprep.mubr.f32.mxu0 0.0
        %1193 = vmatmul.mubr.f32.gmra.mrb[0].mxu0 %v371
        %v1194 = vpop.f32.mrb[0].mxu0
        %v1195 = vadd.f32 0.0, %v1194
        %v1196 = vpop.f32.mrb[0].mxu0
        %v1197 = vadd.f32 0.0, %v1196
        %1198 = vmatprep.mubr.f32.mxu0 0.0
        %1199 = vmatmul.mubr.f32.gmra.mrb[0].mxu0 %v372
        %v1200 = vpop.f32.mrb[0].mxu0
        %v1201 = vadd.f32 0.0, %v1200
        %v1202 = vpop.f32.mrb[0].mxu0
        %v1203 = vadd.f32 0.0, %v1202
        %1204 = vmatprep.mubr.f32.mxu0 0.0
        %1205 = vmatmul.mubr.f32.gmra.mrb[0].mxu0 %v373
        %v1206 = vpop.f32.mrb[0].mxu0
        %v1207 = vadd.f32 0.0, %v1206
        %v1208 = vpop.f32.mrb[0].mxu0
        %v1209 = vadd.f32 0.0, %v1208
        %1210 = vmatprep.mubr.f32.mxu0 0.0
        %1211 = vmatmul.mubr.f32.gmra.mrb[0].mxu0 %v374
        %v1212 = vpop.f32.mrb[0].mxu0
        %v1213 = vadd.f32 0.0, %v1212
        %v1214 = vpop.f32.mrb[0].mxu0
        %v1215 = vadd.f32 0.0, %v1214
        %1216 = vmatprep.mubr.f32.mxu0 0.0
        %1217 = vmatmul.mubr.f32.gmra.mrb[0].mxu0 %v375
        %v1218 = vpop.f32.mrb[0].mxu0
        %v1219 = vadd.f32 0.0, %v1218
        %v1220 = vpop.f32.mrb[0].mxu0
        %v1221 = vadd.f32 0.0, %v1220
        %1222 = vmatprep.mubr.f32.mxu0 0.0
        %1223 = vmatmul.mubr.f32.gmra.mrb[0].mxu0 %v376
        %v1224 = vpop.f32.mrb[0].mxu0
        %v1225 = vadd.f32 0.0, %v1224
        %v1226 = vpop.f32.mrb[0].mxu0
        %v1227 = vadd.f32 0.0, %v1226
        %1228 = vmatprep.mubr.f32.mxu0 0.0
        %1229 = vmatmul.mubr.f32.gmra.mrb[0].mxu0 %v377
        %v1230 = vpop.f32.mrb[0].mxu0
        %v1231 = vadd.f32 0.0, %v1230
        %v1232 = vpop.f32.mrb[0].mxu0
        %v1233 = vadd.f32 0.0, %v1232
        %1234 = vmatprep.mubr.f32.mxu0 0.0
        %1235 = vmatmul.mubr.f32.gmra.mrb[0].mxu0 %v378
        %v1236 = vpop.f32.mrb[0].mxu0
        %v1237 = vadd.f32 0.0, %v1236
        %v1238 = vpop.f32.mrb[0].mxu0
        %v1239 = vadd.f32 0.0, %v1238
        %1240 = vmatprep.mubr.f32.mxu0 0.0
        %1241 = vmatmul.mubr.f32.gmra.mrb[0].mxu0 %v379
        %v1242 = vpop.f32.mrb[0].mxu0
        %v1243 = vadd.f32 0.0, %v1242
        %v1244 = vpop.f32.mrb[0].mxu0
        %v1245 = vadd.f32 0.0, %v1244
        %1246 = vmatprep.mubr.f32.mxu0 0.0
        %1247 = vmatmul.mubr.f32.gmra.mrb[0].mxu0 %v380
        %v1248 = vpop.f32.mrb[0].mxu0
        %v1249 = vadd.f32 0.0, %v1248
        %v1250 = vpop.f32.mrb[0].mxu0
        %v1251 = vadd.f32 0.0, %v1250
        %1252 = vmatprep.mubr.f32.mxu0 0.0
        %1253 = vmatmul.mubr.f32.gmra.mrb[0].mxu0 %v381
        %v1254 = vpop.f32.mrb[0].mxu0
        %v1255 = vadd.f32 0.0, %v1254
        %v1256 = vpop.f32.mrb[0].mxu0
        %v1257 = vadd.f32 0.0, %v1256
        %1258 = vmatprep.mubr.f32.mxu0 0.0
        %1259 = vmatmul.mubr.f32.gmra.mrb[0].mxu0 %v382
        %v1260 = vpop.f32.mrb[0].mxu0
        %v1261 = vadd.f32 0.0, %v1260
        %v1262 = vpop.f32.mrb[0].mxu0
        %v1263 = vadd.f32 0.0, %v1262
        %1264 = vmatprep.mubr.f32.mxu0 0.0
        %1265 = vmatmul.mubr.f32.gmra.mrb[0].mxu0 %v383
        %v1266 = vpop.f32.mrb[0].mxu0
        %v1267 = vadd.f32 0.0, %v1266
        %v1268 = vpop.f32.mrb[0].mxu0
        %v1269 = vadd.f32 0.0, %v1268
        %1270 = vmatprep.mubr.f32.mxu0 0.0
        %1271 = vmatmul.mubr.f32.gmra.mrb[0].mxu0 %v384
        %v1272 = vpop.f32.mrb[0].mxu0
        %v1273 = vadd.f32 0.0, %v1272
        %v1274 = vpop.f32.mrb[0].mxu0
        %v1275 = vadd.f32 0.0, %v1274
        %1276 = vmatprep.mubr.f32.mxu0 0.0
        %1277 = vmatmul.mubr.f32.gmra.mrb[0].mxu0 %v385
        %v1278 = vpop.f32.mrb[0].mxu0
        %v1279 = vadd.f32 0.0, %v1278
        %v1280 = vpop.f32.mrb[0].mxu0
        %v1281 = vadd.f32 0.0, %v1280
        %1282 = vdwg.mxu0
        %1283 = vmatprep.subr.mxu0 %v389
        %1284 = vmatpush1.msra.mxu0 %v388
        %1285 = vmatprep.subr.mxu0 %v393
        %1286 = vmatpush1.msra.mxu0 %v392
        %1287 = vmatprep.subr.mxu0 %v397
        %1288 = vmatpush1.msra.mxu0 %v396
        %1289 = vmatprep.subr.mxu0 %v401
        %1290 = vmatpush1.msra.mxu0 %v400
        %1291 = vmatprep.subr.mxu0 %v405
        %1292 = vmatpush1.msra.mxu0 %v404
        %1293 = vmatprep.subr.mxu0 %v409
        %1294 = vmatpush1.msra.mxu0 %v408
        %1295 = vmatprep.subr.mxu0 %v413
        %1296 = vmatpush1.msra.mxu0 %v412
        %1297 = vmatprep.subr.mxu0 %v417
        %1298 = vmatpush1.msra.mxu0 %v416
        %1299 = vmatprep.subr.mxu0 %v421
        %1300 = vmatpush1.msra.mxu0 %v420
        %1301 = vmatprep.subr.mxu0 %v425
        %1302 = vmatpush1.msra.mxu0 %v424
        %1303 = vmatprep.subr.mxu0 %v429
        %1304 = vmatpush1.msra.mxu0 %v428
        %1305 = vmatprep.subr.mxu0 %v433
        %1306 = vmatpush1.msra.mxu0 %v432
        %1307 = vmatprep.subr.mxu0 %v437
        %1308 = vmatpush1.msra.mxu0 %v436
        %1309 = vmatprep.subr.mxu0 %v441
        %1310 = vmatpush1.msra.mxu0 %v440
        %1311 = vmatprep.subr.mxu0 %v445
        %1312 = vmatpush1.msra.mxu0 %v444
        %1313 = vmatprep.subr.mxu0 %v449
        %1314 = vmatpush1.msra.mxu0 %v448
        %1315 = vmatprep.subr.mxu0 0.0
        %1316 = vmatpush1.msra.mxu0 0.0
        %1317 = vmatprep.subr.mxu0 0.0
        %1318 = vmatpush1.msra.mxu0 0.0
        %1319 = vmatprep.subr.mxu0 0.0
        %1320 = vmatpush1.msra.mxu0 0.0
        %1321 = vmatprep.subr.mxu0 0.0
        %1322 = vmatpush1.msra.mxu0 0.0
        %1323 = vmatprep.subr.mxu0 0.0
        %1324 = vmatpush1.msra.mxu0 0.0
        %1325 = vmatprep.subr.mxu0 0.0
        %1326 = vmatpush1.msra.mxu0 0.0
        %1327 = vmatprep.subr.mxu0 0.0
        %1328 = vmatpush1.msra.mxu0 0.0
        %1329 = vmatprep.subr.mxu0 0.0
        %1330 = vmatpush1.msra.mxu0 0.0
        %1331 = vmatprep.subr.mxu0 0.0
        %1332 = vmatpush1.msra.mxu0 0.0
        %1333 = vmatprep.subr.mxu0 0.0
        %1334 = vmatpush1.msra.mxu0 0.0
        %1335 = vmatprep.subr.mxu0 0.0
        %1336 = vmatpush1.msra.mxu0 0.0
        %1337 = vmatprep.subr.mxu0 0.0
        %1338 = vmatpush1.msra.mxu0 0.0
        %1339 = vmatprep.subr.mxu0 0.0
        %1340 = vmatpush1.msra.mxu0 0.0
        %1341 = vmatprep.subr.mxu0 0.0
        %1342 = vmatpush1.msra.mxu0 0.0
        %1343 = vmatprep.subr.mxu0 0.0
        %1344 = vmatpush1.msra.mxu0 0.0
        %1345 = vmatprep.subr.mxu0 0.0
        %1346 = vmatpush1.msra.mxu0 0.0
        %1347 = vmatprep.mubr.f32.mxu0 0.0
        %1348 = vmatmul.mubr.f32.gmra.mrb[0].mxu0 %v258
        %v1349 = vpop.f32.mrb[0].mxu0
        %v1350 = vadd.f32 0.0, %v1349
        %v1351 = vpop.f32.mrb[0].mxu0
        %v1352 = vadd.f32 0.0, %v1351
        %1353 = vmatprep.mubr.f32.mxu0 0.0
        %1354 = vmatmul.mubr.f32.gmra.mrb[0].mxu0 %v259
        %v1355 = vpop.f32.mrb[0].mxu0
        %v1356 = vadd.f32 0.0, %v1355
        %v1357 = vpop.f32.mrb[0].mxu0
        %v1358 = vadd.f32 0.0, %v1357
        %1359 = vmatprep.mubr.f32.mxu0 0.0
        %1360 = vmatmul.mubr.f32.gmra.mrb[0].mxu0 %v260
        %v1361 = vpop.f32.mrb[0].mxu0
        %v1362 = vadd.f32 0.0, %v1361
        %v1363 = vpop.f32.mrb[0].mxu0
        %v1364 = vadd.f32 0.0, %v1363
        %1365 = vmatprep.mubr.f32.mxu0 0.0
        %1366 = vmatmul.mubr.f32.gmra.mrb[0].mxu0 %v261
        %v1367 = vpop.f32.mrb[0].mxu0
        %v1368 = vadd.f32 0.0, %v1367
        %v1369 = vpop.f32.mrb[0].mxu0
        %v1370 = vadd.f32 0.0, %v1369
        %1371 = vmatprep.mubr.f32.mxu0 0.0
        %1372 = vmatmul.mubr.f32.gmra.mrb[0].mxu0 %v262
        %v1373 = vpop.f32.mrb[0].mxu0
        %v1374 = vadd.f32 0.0, %v1373
        %v1375 = vpop.f32.mrb[0].mxu0
        %v1376 = vadd.f32 0.0, %v1375
        %1377 = vmatprep.mubr.f32.mxu0 0.0
        %1378 = vmatmul.mubr.f32.gmra.mrb[0].mxu0 %v263
        %v1379 = vpop.f32.mrb[0].mxu0
        %v1380 = vadd.f32 0.0, %v1379
        %v1381 = vpop.f32.mrb[0].mxu0
        %v1382 = vadd.f32 0.0, %v1381
        %1383 = vmatprep.mubr.f32.mxu0 0.0
        %1384 = vmatmul.mubr.f32.gmra.mrb[0].mxu0 %v264
        %v1385 = vpop.f32.mrb[0].mxu0
        %v1386 = vadd.f32 0.0, %v1385
        %v1387 = vpop.f32.mrb[0].mxu0
        %v1388 = vadd.f32 0.0, %v1387
        %1389 = vmatprep.mubr.f32.mxu0 0.0
        %1390 = vmatmul.mubr.f32.gmra.mrb[0].mxu0 %v265
        %v1391 = vpop.f32.mrb[0].mxu0
        %v1392 = vadd.f32 0.0, %v1391
        %v1393 = vpop.f32.mrb[0].mxu0
        %v1394 = vadd.f32 0.0, %v1393
        %1395 = vmatprep.mubr.f32.mxu0 0.0
        %1396 = vmatmul.mubr.f32.gmra.mrb[0].mxu0 %v266
        %v1397 = vpop.f32.mrb[0].mxu0
        %v1398 = vadd.f32 0.0, %v1397
        %v1399 = vpop.f32.mrb[0].mxu0
        %v1400 = vadd.f32 0.0, %v1399
        %1401 = vmatprep.mubr.f32.mxu0 0.0
        %1402 = vmatmul.mubr.f32.gmra.mrb[0].mxu0 %v267
        %v1403 = vpop.f32.mrb[0].mxu0
        %v1404 = vadd.f32 0.0, %v1403
        %v1405 = vpop.f32.mrb[0].mxu0
        %v1406 = vadd.f32 0.0, %v1405
        %1407 = vmatprep.mubr.f32.mxu0 0.0
        %1408 = vmatmul.mubr.f32.gmra.mrb[0].mxu0 %v268
        %v1409 = vpop.f32.mrb[0].mxu0
        %v1410 = vadd.f32 0.0, %v1409
        %v1411 = vpop.f32.mrb[0].mxu0
        %v1412 = vadd.f32 0.0, %v1411
        %1413 = vmatprep.mubr.f32.mxu0 0.0
        %1414 = vmatmul.mubr.f32.gmra.mrb[0].mxu0 %v269
        %v1415 = vpop.f32.mrb[0].mxu0
        %v1416 = vadd.f32 0.0, %v1415
        %v1417 = vpop.f32.mrb[0].mxu0
        %v1418 = vadd.f32 0.0, %v1417
        %1419 = vmatprep.mubr.f32.mxu0 0.0
        %1420 = vmatmul.mubr.f32.gmra.mrb[0].mxu0 %v270
        %v1421 = vpop.f32.mrb[0].mxu0
        %v1422 = vadd.f32 0.0, %v1421
        %v1423 = vpop.f32.mrb[0].mxu0
        %v1424 = vadd.f32 0.0, %v1423
        %1425 = vmatprep.mubr.f32.mxu0 0.0
        %1426 = vmatmul.mubr.f32.gmra.mrb[0].mxu0 %v271
        %v1427 = vpop.f32.mrb[0].mxu0
        %v1428 = vadd.f32 0.0, %v1427
        %v1429 = vpop.f32.mrb[0].mxu0
        %v1430 = vadd.f32 0.0, %v1429
        %1431 = vmatprep.mubr.f32.mxu0 0.0
        %1432 = vmatmul.mubr.f32.gmra.mrb[0].mxu0 %v272
        %v1433 = vpop.f32.mrb[0].mxu0
        %v1434 = vadd.f32 0.0, %v1433
        %v1435 = vpop.f32.mrb[0].mxu0
        %v1436 = vadd.f32 0.0, %v1435
        %1437 = vmatprep.mubr.f32.mxu0 0.0
        %1438 = vmatmul.mubr.f32.gmra.mrb[0].mxu0 %v273
        %v1439 = vpop.f32.mrb[0].mxu0
        %v1440 = vadd.f32 0.0, %v1439
        %v1441 = vpop.f32.mrb[0].mxu0
        %v1442 = vadd.f32 0.0, %v1441
        %1443 = vmatprep.mubr.f32.mxu0 0.0
        %1444 = vmatmul.mubr.f32.gmra.mrb[0].mxu0 %v274
        %v1445 = vpop.f32.mrb[0].mxu0
        %v1446 = vadd.f32 0.0, %v1445
        %v1447 = vpop.f32.mrb[0].mxu0
        %v1448 = vadd.f32 0.0, %v1447
        %1449 = vmatprep.mubr.f32.mxu0 0.0
        %1450 = vmatmul.mubr.f32.gmra.mrb[0].mxu0 %v275
        %v1451 = vpop.f32.mrb[0].mxu0
        %v1452 = vadd.f32 0.0, %v1451
        %v1453 = vpop.f32.mrb[0].mxu0
        %v1454 = vadd.f32 0.0, %v1453
        %1455 = vmatprep.mubr.f32.mxu0 0.0
        %1456 = vmatmul.mubr.f32.gmra.mrb[0].mxu0 %v276
        %v1457 = vpop.f32.mrb[0].mxu0
        %v1458 = vadd.f32 0.0, %v1457
        %v1459 = vpop.f32.mrb[0].mxu0
        %v1460 = vadd.f32 0.0, %v1459
        %1461 = vmatprep.mubr.f32.mxu0 0.0
        %1462 = vmatmul.mubr.f32.gmra.mrb[0].mxu0 %v277
        %v1463 = vpop.f32.mrb[0].mxu0
        %v1464 = vadd.f32 0.0, %v1463
        %v1465 = vpop.f32.mrb[0].mxu0
        %v1466 = vadd.f32 0.0, %v1465
        %1467 = vmatprep.mubr.f32.mxu0 0.0
        %1468 = vmatmul.mubr.f32.gmra.mrb[0].mxu0 %v278
        %v1469 = vpop.f32.mrb[0].mxu0
        %v1470 = vadd.f32 0.0, %v1469
        %v1471 = vpop.f32.mrb[0].mxu0
        %v1472 = vadd.f32 0.0, %v1471
        %1473 = vmatprep.mubr.f32.mxu0 0.0
        %1474 = vmatmul.mubr.f32.gmra.mrb[0].mxu0 %v279
        %v1475 = vpop.f32.mrb[0].mxu0
        %v1476 = vadd.f32 0.0, %v1475
        %v1477 = vpop.f32.mrb[0].mxu0
        %v1478 = vadd.f32 0.0, %v1477
        %1479 = vmatprep.mubr.f32.mxu0 0.0
        %1480 = vmatmul.mubr.f32.gmra.mrb[0].mxu0 %v280
        %v1481 = vpop.f32.mrb[0].mxu0
        %v1482 = vadd.f32 0.0, %v1481
        %v1483 = vpop.f32.mrb[0].mxu0
        %v1484 = vadd.f32 0.0, %v1483
        %1485 = vmatprep.mubr.f32.mxu0 0.0
        %1486 = vmatmul.mubr.f32.gmra.mrb[0].mxu0 %v281
        %v1487 = vpop.f32.mrb[0].mxu0
        %v1488 = vadd.f32 0.0, %v1487
        %v1489 = vpop.f32.mrb[0].mxu0
        %v1490 = vadd.f32 0.0, %v1489
        %1491 = vmatprep.mubr.f32.mxu0 0.0
        %1492 = vmatmul.mubr.f32.gmra.mrb[0].mxu0 %v282
        %v1493 = vpop.f32.mrb[0].mxu0
        %v1494 = vadd.f32 0.0, %v1493
        %v1495 = vpop.f32.mrb[0].mxu0
        %v1496 = vadd.f32 0.0, %v1495
        %1497 = vmatprep.mubr.f32.mxu0 0.0
        %1498 = vmatmul.mubr.f32.gmra.mrb[0].mxu0 %v283
        %v1499 = vpop.f32.mrb[0].mxu0
        %v1500 = vadd.f32 0.0, %v1499
        %v1501 = vpop.f32.mrb[0].mxu0
        %v1502 = vadd.f32 0.0, %v1501
        %1503 = vmatprep.mubr.f32.mxu0 0.0
        %1504 = vmatmul.mubr.f32.gmra.mrb[0].mxu0 %v284
        %v1505 = vpop.f32.mrb[0].mxu0
        %v1506 = vadd.f32 0.0, %v1505
        %v1507 = vpop.f32.mrb[0].mxu0
        %v1508 = vadd.f32 0.0, %v1507
        %1509 = vmatprep.mubr.f32.mxu0 0.0
        %1510 = vmatmul.mubr.f32.gmra.mrb[0].mxu0 %v285
        %v1511 = vpop.f32.mrb[0].mxu0
        %v1512 = vadd.f32 0.0, %v1511
        %v1513 = vpop.f32.mrb[0].mxu0
        %v1514 = vadd.f32 0.0, %v1513
        %1515 = vmatprep.mubr.f32.mxu0 0.0
        %1516 = vmatmul.mubr.f32.gmra.mrb[0].mxu0 %v286
        %v1517 = vpop.f32.mrb[0].mxu0
        %v1518 = vadd.f32 0.0, %v1517
        %v1519 = vpop.f32.mrb[0].mxu0
        %v1520 = vadd.f32 0.0, %v1519
        %1521 = vmatprep.mubr.f32.mxu0 0.0
        %1522 = vmatmul.mubr.f32.gmra.mrb[0].mxu0 %v287
        %v1523 = vpop.f32.mrb[0].mxu0
        %v1524 = vadd.f32 0.0, %v1523
        %v1525 = vpop.f32.mrb[0].mxu0
        %v1526 = vadd.f32 0.0, %v1525
        %1527 = vmatprep.mubr.f32.mxu0 0.0
        %1528 = vmatmul.mubr.f32.gmra.mrb[0].mxu0 %v288
        %v1529 = vpop.f32.mrb[0].mxu0
        %v1530 = vadd.f32 0.0, %v1529
        %v1531 = vpop.f32.mrb[0].mxu0
        %v1532 = vadd.f32 0.0, %v1531
        %1533 = vmatprep.mubr.f32.mxu0 0.0
        %1534 = vmatmul.mubr.f32.gmra.mrb[0].mxu0 %v289
        %v1535 = vpop.f32.mrb[0].mxu0
        %v1536 = vadd.f32 0.0, %v1535
        %v1537 = vpop.f32.mrb[0].mxu0
        %v1538 = vadd.f32 0.0, %v1537
        %1539 = vmatprep.mubr.f32.mxu0 0.0
        %1540 = vmatmul.mubr.f32.gmra.mrb[0].mxu0 %v290
        %v1541 = vpop.f32.mrb[0].mxu0
        %v1542 = vadd.f32 0.0, %v1541
        %v1543 = vpop.f32.mrb[0].mxu0
        %v1544 = vadd.f32 0.0, %v1543
        %1545 = vmatprep.mubr.f32.mxu0 0.0
        %1546 = vmatmul.mubr.f32.gmra.mrb[0].mxu0 %v291
        %v1547 = vpop.f32.mrb[0].mxu0
        %v1548 = vadd.f32 0.0, %v1547
        %v1549 = vpop.f32.mrb[0].mxu0
        %v1550 = vadd.f32 0.0, %v1549
        %1551 = vmatprep.mubr.f32.mxu0 0.0
        %1552 = vmatmul.mubr.f32.gmra.mrb[0].mxu0 %v292
        %v1553 = vpop.f32.mrb[0].mxu0
        %v1554 = vadd.f32 0.0, %v1553
        %v1555 = vpop.f32.mrb[0].mxu0
        %v1556 = vadd.f32 0.0, %v1555
        %1557 = vmatprep.mubr.f32.mxu0 0.0
        %1558 = vmatmul.mubr.f32.gmra.mrb[0].mxu0 %v293
        %v1559 = vpop.f32.mrb[0].mxu0
        %v1560 = vadd.f32 0.0, %v1559
        %v1561 = vpop.f32.mrb[0].mxu0
        %v1562 = vadd.f32 0.0, %v1561
        %1563 = vmatprep.mubr.f32.mxu0 0.0
        %1564 = vmatmul.mubr.f32.gmra.mrb[0].mxu0 %v294
        %v1565 = vpop.f32.mrb[0].mxu0
        %v1566 = vadd.f32 0.0, %v1565
        %v1567 = vpop.f32.mrb[0].mxu0
        %v1568 = vadd.f32 0.0, %v1567
        %1569 = vmatprep.mubr.f32.mxu0 0.0
        %1570 = vmatmul.mubr.f32.gmra.mrb[0].mxu0 %v295
        %v1571 = vpop.f32.mrb[0].mxu0
        %v1572 = vadd.f32 0.0, %v1571
        %v1573 = vpop.f32.mrb[0].mxu0
        %v1574 = vadd.f32 0.0, %v1573
        %1575 = vmatprep.mubr.f32.mxu0 0.0
        %1576 = vmatmul.mubr.f32.gmra.mrb[0].mxu0 %v296
        %v1577 = vpop.f32.mrb[0].mxu0
        %v1578 = vadd.f32 0.0, %v1577
        %v1579 = vpop.f32.mrb[0].mxu0
        %v1580 = vadd.f32 0.0, %v1579
        %1581 = vmatprep.mubr.f32.mxu0 0.0
        %1582 = vmatmul.mubr.f32.gmra.mrb[0].mxu0 %v297
        %v1583 = vpop.f32.mrb[0].mxu0
        %v1584 = vadd.f32 0.0, %v1583
        %v1585 = vpop.f32.mrb[0].mxu0
        %v1586 = vadd.f32 0.0, %v1585
        %1587 = vmatprep.mubr.f32.mxu0 0.0
        %1588 = vmatmul.mubr.f32.gmra.mrb[0].mxu0 %v298
        %v1589 = vpop.f32.mrb[0].mxu0
        %v1590 = vadd.f32 0.0, %v1589
        %v1591 = vpop.f32.mrb[0].mxu0
        %v1592 = vadd.f32 0.0, %v1591
        %1593 = vmatprep.mubr.f32.mxu0 0.0
        %1594 = vmatmul.mubr.f32.gmra.mrb[0].mxu0 %v299
        %v1595 = vpop.f32.mrb[0].mxu0
        %v1596 = vadd.f32 0.0, %v1595
        %v1597 = vpop.f32.mrb[0].mxu0
        %v1598 = vadd.f32 0.0, %v1597
        %1599 = vmatprep.mubr.f32.mxu0 0.0
        %1600 = vmatmul.mubr.f32.gmra.mrb[0].mxu0 %v300
        %v1601 = vpop.f32.mrb[0].mxu0
        %v1602 = vadd.f32 0.0, %v1601
        %v1603 = vpop.f32.mrb[0].mxu0
        %v1604 = vadd.f32 0.0, %v1603
        %1605 = vmatprep.mubr.f32.mxu0 0.0
        %1606 = vmatmul.mubr.f32.gmra.mrb[0].mxu0 %v301
        %v1607 = vpop.f32.mrb[0].mxu0
        %v1608 = vadd.f32 0.0, %v1607
        %v1609 = vpop.f32.mrb[0].mxu0
        %v1610 = vadd.f32 0.0, %v1609
        %1611 = vmatprep.mubr.f32.mxu0 0.0
        %1612 = vmatmul.mubr.f32.gmra.mrb[0].mxu0 %v302
        %v1613 = vpop.f32.mrb[0].mxu0
        %v1614 = vadd.f32 0.0, %v1613
        %v1615 = vpop.f32.mrb[0].mxu0
        %v1616 = vadd.f32 0.0, %v1615
        %1617 = vmatprep.mubr.f32.mxu0 0.0
        %1618 = vmatmul.mubr.f32.gmra.mrb[0].mxu0 %v303
        %v1619 = vpop.f32.mrb[0].mxu0
        %v1620 = vadd.f32 0.0, %v1619
        %v1621 = vpop.f32.mrb[0].mxu0
        %v1622 = vadd.f32 0.0, %v1621
        %1623 = vmatprep.mubr.f32.mxu0 0.0
        %1624 = vmatmul.mubr.f32.gmra.mrb[0].mxu0 %v304
        %v1625 = vpop.f32.mrb[0].mxu0
        %v1626 = vadd.f32 0.0, %v1625
        %v1627 = vpop.f32.mrb[0].mxu0
        %v1628 = vadd.f32 0.0, %v1627
        %1629 = vmatprep.mubr.f32.mxu0 0.0
        %1630 = vmatmul.mubr.f32.gmra.mrb[0].mxu0 %v305
        %v1631 = vpop.f32.mrb[0].mxu0
        %v1632 = vadd.f32 0.0, %v1631
        %v1633 = vpop.f32.mrb[0].mxu0
        %v1634 = vadd.f32 0.0, %v1633
        %1635 = vmatprep.mubr.f32.mxu0 0.0
        %1636 = vmatmul.mubr.f32.gmra.mrb[0].mxu0 %v306
        %v1637 = vpop.f32.mrb[0].mxu0
        %v1638 = vadd.f32 0.0, %v1637
        %v1639 = vpop.f32.mrb[0].mxu0
        %v1640 = vadd.f32 0.0, %v1639
        %1641 = vmatprep.mubr.f32.mxu0 0.0
        %1642 = vmatmul.mubr.f32.gmra.mrb[0].mxu0 %v307
        %v1643 = vpop.f32.mrb[0].mxu0
        %v1644 = vadd.f32 0.0, %v1643
        %v1645 = vpop.f32.mrb[0].mxu0
        %v1646 = vadd.f32 0.0, %v1645
        %1647 = vmatprep.mubr.f32.mxu0 0.0
        %1648 = vmatmul.mubr.f32.gmra.mrb[0].mxu0 %v308
        %v1649 = vpop.f32.mrb[0].mxu0
        %v1650 = vadd.f32 0.0, %v1649
        %v1651 = vpop.f32.mrb[0].mxu0
        %v1652 = vadd.f32 0.0, %v1651
        %1653 = vmatprep.mubr.f32.mxu0 0.0
        %1654 = vmatmul.mubr.f32.gmra.mrb[0].mxu0 %v309
        %v1655 = vpop.f32.mrb[0].mxu0
        %v1656 = vadd.f32 0.0, %v1655
        %v1657 = vpop.f32.mrb[0].mxu0
        %v1658 = vadd.f32 0.0, %v1657
        %1659 = vmatprep.mubr.f32.mxu0 0.0
        %1660 = vmatmul.mubr.f32.gmra.mrb[0].mxu0 %v310
        %v1661 = vpop.f32.mrb[0].mxu0
        %v1662 = vadd.f32 0.0, %v1661
        %v1663 = vpop.f32.mrb[0].mxu0
        %v1664 = vadd.f32 0.0, %v1663
        %1665 = vmatprep.mubr.f32.mxu0 0.0
        %1666 = vmatmul.mubr.f32.gmra.mrb[0].mxu0 %v311
        %v1667 = vpop.f32.mrb[0].mxu0
        %v1668 = vadd.f32 0.0, %v1667
        %v1669 = vpop.f32.mrb[0].mxu0
        %v1670 = vadd.f32 0.0, %v1669
        %1671 = vmatprep.mubr.f32.mxu0 0.0
        %1672 = vmatmul.mubr.f32.gmra.mrb[0].mxu0 %v312
        %v1673 = vpop.f32.mrb[0].mxu0
        %v1674 = vadd.f32 0.0, %v1673
        %v1675 = vpop.f32.mrb[0].mxu0
        %v1676 = vadd.f32 0.0, %v1675
        %1677 = vmatprep.mubr.f32.mxu0 0.0
        %1678 = vmatmul.mubr.f32.gmra.mrb[0].mxu0 %v313
        %v1679 = vpop.f32.mrb[0].mxu0
        %v1680 = vadd.f32 0.0, %v1679
        %v1681 = vpop.f32.mrb[0].mxu0
        %v1682 = vadd.f32 0.0, %v1681
        %1683 = vmatprep.mubr.f32.mxu0 0.0
        %1684 = vmatmul.mubr.f32.gmra.mrb[0].mxu0 %v314
        %v1685 = vpop.f32.mrb[0].mxu0
        %v1686 = vadd.f32 0.0, %v1685
        %v1687 = vpop.f32.mrb[0].mxu0
        %v1688 = vadd.f32 0.0, %v1687
        %1689 = vmatprep.mubr.f32.mxu0 0.0
        %1690 = vmatmul.mubr.f32.gmra.mrb[0].mxu0 %v315
        %v1691 = vpop.f32.mrb[0].mxu0
        %v1692 = vadd.f32 0.0, %v1691
        %v1693 = vpop.f32.mrb[0].mxu0
        %v1694 = vadd.f32 0.0, %v1693
        %1695 = vmatprep.mubr.f32.mxu0 0.0
        %1696 = vmatmul.mubr.f32.gmra.mrb[0].mxu0 %v316
        %v1697 = vpop.f32.mrb[0].mxu0
        %v1698 = vadd.f32 0.0, %v1697
        %v1699 = vpop.f32.mrb[0].mxu0
        %v1700 = vadd.f32 0.0, %v1699
        %1701 = vmatprep.mubr.f32.mxu0 0.0
        %1702 = vmatmul.mubr.f32.gmra.mrb[0].mxu0 %v317
        %v1703 = vpop.f32.mrb[0].mxu0
        %v1704 = vadd.f32 0.0, %v1703
        %v1705 = vpop.f32.mrb[0].mxu0
        %v1706 = vadd.f32 0.0, %v1705
        %1707 = vmatprep.mubr.f32.mxu0 0.0
        %1708 = vmatmul.mubr.f32.gmra.mrb[0].mxu0 %v318
        %v1709 = vpop.f32.mrb[0].mxu0
        %v1710 = vadd.f32 0.0, %v1709
        %v1711 = vpop.f32.mrb[0].mxu0
        %v1712 = vadd.f32 0.0, %v1711
        %1713 = vmatprep.mubr.f32.mxu0 0.0
        %1714 = vmatmul.mubr.f32.gmra.mrb[0].mxu0 %v319
        %v1715 = vpop.f32.mrb[0].mxu0
        %v1716 = vadd.f32 0.0, %v1715
        %v1717 = vpop.f32.mrb[0].mxu0
        %v1718 = vadd.f32 0.0, %v1717
        %1719 = vmatprep.mubr.f32.mxu0 0.0
        %1720 = vmatmul.mubr.f32.gmra.mrb[0].mxu0 %v320
        %v1721 = vpop.f32.mrb[0].mxu0
        %v1722 = vadd.f32 0.0, %v1721
        %v1723 = vpop.f32.mrb[0].mxu0
        %v1724 = vadd.f32 0.0, %v1723
        %1725 = vmatprep.mubr.f32.mxu0 0.0
        %1726 = vmatmul.mubr.f32.gmra.mrb[0].mxu0 %v321
        %v1727 = vpop.f32.mrb[0].mxu0
        %v1728 = vadd.f32 0.0, %v1727
        %v1729 = vpop.f32.mrb[0].mxu0
        %v1730 = vadd.f32 0.0, %v1729
        %1731 = vmatprep.mubr.f32.mxu0 0.0
        %1732 = vmatmul.mubr.f32.gmra.mrb[0].mxu0 %v322
        %v1733 = vpop.f32.mrb[0].mxu0
        %v1734 = vadd.f32 0.0, %v1733
        %v1735 = vpop.f32.mrb[0].mxu0
        %v1736 = vadd.f32 0.0, %v1735
        %1737 = vmatprep.mubr.f32.mxu0 0.0
        %1738 = vmatmul.mubr.f32.gmra.mrb[0].mxu0 %v323
        %v1739 = vpop.f32.mrb[0].mxu0
        %v1740 = vadd.f32 0.0, %v1739
        %v1741 = vpop.f32.mrb[0].mxu0
        %v1742 = vadd.f32 0.0, %v1741
        %1743 = vmatprep.mubr.f32.mxu0 0.0
        %1744 = vmatmul.mubr.f32.gmra.mrb[0].mxu0 %v324
        %v1745 = vpop.f32.mrb[0].mxu0
        %v1746 = vadd.f32 0.0, %v1745
        %v1747 = vpop.f32.mrb[0].mxu0
        %v1748 = vadd.f32 0.0, %v1747
        %1749 = vmatprep.mubr.f32.mxu0 0.0
        %1750 = vmatmul.mubr.f32.gmra.mrb[0].mxu0 %v325
        %v1751 = vpop.f32.mrb[0].mxu0
        %v1752 = vadd.f32 0.0, %v1751
        %v1753 = vpop.f32.mrb[0].mxu0
        %v1754 = vadd.f32 0.0, %v1753
        %1755 = vmatprep.mubr.f32.mxu0 0.0
        %1756 = vmatmul.mubr.f32.gmra.mrb[0].mxu0 %v326
        %v1757 = vpop.f32.mrb[0].mxu0
        %v1758 = vadd.f32 0.0, %v1757
        %v1759 = vpop.f32.mrb[0].mxu0
        %v1760 = vadd.f32 0.0, %v1759
        %1761 = vmatprep.mubr.f32.mxu0 0.0
        %1762 = vmatmul.mubr.f32.gmra.mrb[0].mxu0 %v327
        %v1763 = vpop.f32.mrb[0].mxu0
        %v1764 = vadd.f32 0.0, %v1763
        %v1765 = vpop.f32.mrb[0].mxu0
        %v1766 = vadd.f32 0.0, %v1765
        %1767 = vmatprep.mubr.f32.mxu0 0.0
        %1768 = vmatmul.mubr.f32.gmra.mrb[0].mxu0 %v328
        %v1769 = vpop.f32.mrb[0].mxu0
        %v1770 = vadd.f32 0.0, %v1769
        %v1771 = vpop.f32.mrb[0].mxu0
        %v1772 = vadd.f32 0.0, %v1771
        %1773 = vmatprep.mubr.f32.mxu0 0.0
        %1774 = vmatmul.mubr.f32.gmra.mrb[0].mxu0 %v329
        %v1775 = vpop.f32.mrb[0].mxu0
        %v1776 = vadd.f32 0.0, %v1775
        %v1777 = vpop.f32.mrb[0].mxu0
        %v1778 = vadd.f32 0.0, %v1777
        %1779 = vmatprep.mubr.f32.mxu0 0.0
        %1780 = vmatmul.mubr.f32.gmra.mrb[0].mxu0 %v330
        %v1781 = vpop.f32.mrb[0].mxu0
        %v1782 = vadd.f32 0.0, %v1781
        %v1783 = vpop.f32.mrb[0].mxu0
        %v1784 = vadd.f32 0.0, %v1783
        %1785 = vmatprep.mubr.f32.mxu0 0.0
        %1786 = vmatmul.mubr.f32.gmra.mrb[0].mxu0 %v331
        %v1787 = vpop.f32.mrb[0].mxu0
        %v1788 = vadd.f32 0.0, %v1787
        %v1789 = vpop.f32.mrb[0].mxu0
        %v1790 = vadd.f32 0.0, %v1789
        %1791 = vmatprep.mubr.f32.mxu0 0.0
        %1792 = vmatmul.mubr.f32.gmra.mrb[0].mxu0 %v332
        %v1793 = vpop.f32.mrb[0].mxu0
        %v1794 = vadd.f32 0.0, %v1793
        %v1795 = vpop.f32.mrb[0].mxu0
        %v1796 = vadd.f32 0.0, %v1795
        %1797 = vmatprep.mubr.f32.mxu0 0.0
        %1798 = vmatmul.mubr.f32.gmra.mrb[0].mxu0 %v333
        %v1799 = vpop.f32.mrb[0].mxu0
        %v1800 = vadd.f32 0.0, %v1799
        %v1801 = vpop.f32.mrb[0].mxu0
        %v1802 = vadd.f32 0.0, %v1801
        %1803 = vmatprep.mubr.f32.mxu0 0.0
        %1804 = vmatmul.mubr.f32.gmra.mrb[0].mxu0 %v334
        %v1805 = vpop.f32.mrb[0].mxu0
        %v1806 = vadd.f32 0.0, %v1805
        %v1807 = vpop.f32.mrb[0].mxu0
        %v1808 = vadd.f32 0.0, %v1807
        %1809 = vmatprep.mubr.f32.mxu0 0.0
        %1810 = vmatmul.mubr.f32.gmra.mrb[0].mxu0 %v335
        %v1811 = vpop.f32.mrb[0].mxu0
        %v1812 = vadd.f32 0.0, %v1811
        %v1813 = vpop.f32.mrb[0].mxu0
        %v1814 = vadd.f32 0.0, %v1813
        %1815 = vmatprep.mubr.f32.mxu0 0.0
        %1816 = vmatmul.mubr.f32.gmra.mrb[0].mxu0 %v336
        %v1817 = vpop.f32.mrb[0].mxu0
        %v1818 = vadd.f32 0.0, %v1817
        %v1819 = vpop.f32.mrb[0].mxu0
        %v1820 = vadd.f32 0.0, %v1819
        %1821 = vmatprep.mubr.f32.mxu0 0.0
        %1822 = vmatmul.mubr.f32.gmra.mrb[0].mxu0 %v337
        %v1823 = vpop.f32.mrb[0].mxu0
        %v1824 = vadd.f32 0.0, %v1823
        %v1825 = vpop.f32.mrb[0].mxu0
        %v1826 = vadd.f32 0.0, %v1825
        %1827 = vmatprep.mubr.f32.mxu0 0.0
        %1828 = vmatmul.mubr.f32.gmra.mrb[0].mxu0 %v338
        %v1829 = vpop.f32.mrb[0].mxu0
        %v1830 = vadd.f32 0.0, %v1829
        %v1831 = vpop.f32.mrb[0].mxu0
        %v1832 = vadd.f32 0.0, %v1831
        %1833 = vmatprep.mubr.f32.mxu0 0.0
        %1834 = vmatmul.mubr.f32.gmra.mrb[0].mxu0 %v339
        %v1835 = vpop.f32.mrb[0].mxu0
        %v1836 = vadd.f32 0.0, %v1835
        %v1837 = vpop.f32.mrb[0].mxu0
        %v1838 = vadd.f32 0.0, %v1837
        %1839 = vmatprep.mubr.f32.mxu0 0.0
        %1840 = vmatmul.mubr.f32.gmra.mrb[0].mxu0 %v340
        %v1841 = vpop.f32.mrb[0].mxu0
        %v1842 = vadd.f32 0.0, %v1841
        %v1843 = vpop.f32.mrb[0].mxu0
        %v1844 = vadd.f32 0.0, %v1843
        %1845 = vmatprep.mubr.f32.mxu0 0.0
        %1846 = vmatmul.mubr.f32.gmra.mrb[0].mxu0 %v341
        %v1847 = vpop.f32.mrb[0].mxu0
        %v1848 = vadd.f32 0.0, %v1847
        %v1849 = vpop.f32.mrb[0].mxu0
        %v1850 = vadd.f32 0.0, %v1849
        %1851 = vmatprep.mubr.f32.mxu0 0.0
        %1852 = vmatmul.mubr.f32.gmra.mrb[0].mxu0 %v342
        %v1853 = vpop.f32.mrb[0].mxu0
        %v1854 = vadd.f32 0.0, %v1853
        %v1855 = vpop.f32.mrb[0].mxu0
        %v1856 = vadd.f32 0.0, %v1855
        %1857 = vmatprep.mubr.f32.mxu0 0.0
        %1858 = vmatmul.mubr.f32.gmra.mrb[0].mxu0 %v343
        %v1859 = vpop.f32.mrb[0].mxu0
        %v1860 = vadd.f32 0.0, %v1859
        %v1861 = vpop.f32.mrb[0].mxu0
        %v1862 = vadd.f32 0.0, %v1861
        %1863 = vmatprep.mubr.f32.mxu0 0.0
        %1864 = vmatmul.mubr.f32.gmra.mrb[0].mxu0 %v344
        %v1865 = vpop.f32.mrb[0].mxu0
        %v1866 = vadd.f32 0.0, %v1865
        %v1867 = vpop.f32.mrb[0].mxu0
        %v1868 = vadd.f32 0.0, %v1867
        %1869 = vmatprep.mubr.f32.mxu0 0.0
        %1870 = vmatmul.mubr.f32.gmra.mrb[0].mxu0 %v345
        %v1871 = vpop.f32.mrb[0].mxu0
        %v1872 = vadd.f32 0.0, %v1871
        %v1873 = vpop.f32.mrb[0].mxu0
        %v1874 = vadd.f32 0.0, %v1873
        %1875 = vmatprep.mubr.f32.mxu0 0.0
        %1876 = vmatmul.mubr.f32.gmra.mrb[0].mxu0 %v346
        %v1877 = vpop.f32.mrb[0].mxu0
        %v1878 = vadd.f32 0.0, %v1877
        %v1879 = vpop.f32.mrb[0].mxu0
        %v1880 = vadd.f32 0.0, %v1879
        %1881 = vmatprep.mubr.f32.mxu0 0.0
        %1882 = vmatmul.mubr.f32.gmra.mrb[0].mxu0 %v347
        %v1883 = vpop.f32.mrb[0].mxu0
        %v1884 = vadd.f32 0.0, %v1883
        %v1885 = vpop.f32.mrb[0].mxu0
        %v1886 = vadd.f32 0.0, %v1885
        %1887 = vmatprep.mubr.f32.mxu0 0.0
        %1888 = vmatmul.mubr.f32.gmra.mrb[0].mxu0 %v348
        %v1889 = vpop.f32.mrb[0].mxu0
        %v1890 = vadd.f32 0.0, %v1889
        %v1891 = vpop.f32.mrb[0].mxu0
        %v1892 = vadd.f32 0.0, %v1891
        %1893 = vmatprep.mubr.f32.mxu0 0.0
        %1894 = vmatmul.mubr.f32.gmra.mrb[0].mxu0 %v349
        %v1895 = vpop.f32.mrb[0].mxu0
        %v1896 = vadd.f32 0.0, %v1895
        %v1897 = vpop.f32.mrb[0].mxu0
        %v1898 = vadd.f32 0.0, %v1897
        %1899 = vmatprep.mubr.f32.mxu0 0.0
        %1900 = vmatmul.mubr.f32.gmra.mrb[0].mxu0 %v350
        %v1901 = vpop.f32.mrb[0].mxu0
        %v1902 = vadd.f32 0.0, %v1901
        %v1903 = vpop.f32.mrb[0].mxu0
        %v1904 = vadd.f32 0.0, %v1903
        %1905 = vmatprep.mubr.f32.mxu0 0.0
        %1906 = vmatmul.mubr.f32.gmra.mrb[0].mxu0 %v351
        %v1907 = vpop.f32.mrb[0].mxu0
        %v1908 = vadd.f32 0.0, %v1907
        %v1909 = vpop.f32.mrb[0].mxu0
        %v1910 = vadd.f32 0.0, %v1909
        %1911 = vmatprep.mubr.f32.mxu0 0.0
        %1912 = vmatmul.mubr.f32.gmra.mrb[0].mxu0 %v352
        %v1913 = vpop.f32.mrb[0].mxu0
        %v1914 = vadd.f32 0.0, %v1913
        %v1915 = vpop.f32.mrb[0].mxu0
        %v1916 = vadd.f32 0.0, %v1915
        %1917 = vmatprep.mubr.f32.mxu0 0.0
        %1918 = vmatmul.mubr.f32.gmra.mrb[0].mxu0 %v353
        %v1919 = vpop.f32.mrb[0].mxu0
        %v1920 = vadd.f32 0.0, %v1919
        %v1921 = vpop.f32.mrb[0].mxu0
        %v1922 = vadd.f32 0.0, %v1921
        %1923 = vmatprep.mubr.f32.mxu0 0.0
        %1924 = vmatmul.mubr.f32.gmra.mrb[0].mxu0 %v354
        %v1925 = vpop.f32.mrb[0].mxu0
        %v1926 = vadd.f32 0.0, %v1925
        %v1927 = vpop.f32.mrb[0].mxu0
        %v1928 = vadd.f32 0.0, %v1927
        %1929 = vmatprep.mubr.f32.mxu0 0.0
        %1930 = vmatmul.mubr.f32.gmra.mrb[0].mxu0 %v355
        %v1931 = vpop.f32.mrb[0].mxu0
        %v1932 = vadd.f32 0.0, %v1931
        %v1933 = vpop.f32.mrb[0].mxu0
        %v1934 = vadd.f32 0.0, %v1933
        %1935 = vmatprep.mubr.f32.mxu0 0.0
        %1936 = vmatmul.mubr.f32.gmra.mrb[0].mxu0 %v356
        %v1937 = vpop.f32.mrb[0].mxu0
        %v1938 = vadd.f32 0.0, %v1937
        %v1939 = vpop.f32.mrb[0].mxu0
        %v1940 = vadd.f32 0.0, %v1939
        %1941 = vmatprep.mubr.f32.mxu0 0.0
        %1942 = vmatmul.mubr.f32.gmra.mrb[0].mxu0 %v357
        %v1943 = vpop.f32.mrb[0].mxu0
        %v1944 = vadd.f32 0.0, %v1943
        %v1945 = vpop.f32.mrb[0].mxu0
        %v1946 = vadd.f32 0.0, %v1945
        %1947 = vmatprep.mubr.f32.mxu0 0.0
        %1948 = vmatmul.mubr.f32.gmra.mrb[0].mxu0 %v358
        %v1949 = vpop.f32.mrb[0].mxu0
        %v1950 = vadd.f32 0.0, %v1949
        %v1951 = vpop.f32.mrb[0].mxu0
        %v1952 = vadd.f32 0.0, %v1951
        %1953 = vmatprep.mubr.f32.mxu0 0.0
        %1954 = vmatmul.mubr.f32.gmra.mrb[0].mxu0 %v359
        %v1955 = vpop.f32.mrb[0].mxu0
        %v1956 = vadd.f32 0.0, %v1955
        %v1957 = vpop.f32.mrb[0].mxu0
        %v1958 = vadd.f32 0.0, %v1957
        %1959 = vmatprep.mubr.f32.mxu0 0.0
        %1960 = vmatmul.mubr.f32.gmra.mrb[0].mxu0 %v360
        %v1961 = vpop.f32.mrb[0].mxu0
        %v1962 = vadd.f32 0.0, %v1961
        %v1963 = vpop.f32.mrb[0].mxu0
        %v1964 = vadd.f32 0.0, %v1963
        %1965 = vmatprep.mubr.f32.mxu0 0.0
        %1966 = vmatmul.mubr.f32.gmra.mrb[0].mxu0 %v361
        %v1967 = vpop.f32.mrb[0].mxu0
        %v1968 = vadd.f32 0.0, %v1967
        %v1969 = vpop.f32.mrb[0].mxu0
        %v1970 = vadd.f32 0.0, %v1969
        %1971 = vmatprep.mubr.f32.mxu0 0.0
        %1972 = vmatmul.mubr.f32.gmra.mrb[0].mxu0 %v362
        %v1973 = vpop.f32.mrb[0].mxu0
        %v1974 = vadd.f32 0.0, %v1973
        %v1975 = vpop.f32.mrb[0].mxu0
        %v1976 = vadd.f32 0.0, %v1975
        %1977 = vmatprep.mubr.f32.mxu0 0.0
        %1978 = vmatmul.mubr.f32.gmra.mrb[0].mxu0 %v363
        %v1979 = vpop.f32.mrb[0].mxu0
        %v1980 = vadd.f32 0.0, %v1979
        %v1981 = vpop.f32.mrb[0].mxu0
        %v1982 = vadd.f32 0.0, %v1981
        %1983 = vmatprep.mubr.f32.mxu0 0.0
        %1984 = vmatmul.mubr.f32.gmra.mrb[0].mxu0 %v364
        %v1985 = vpop.f32.mrb[0].mxu0
        %v1986 = vadd.f32 0.0, %v1985
        %v1987 = vpop.f32.mrb[0].mxu0
        %v1988 = vadd.f32 0.0, %v1987
        %1989 = vmatprep.mubr.f32.mxu0 0.0
        %1990 = vmatmul.mubr.f32.gmra.mrb[0].mxu0 %v365
        %v1991 = vpop.f32.mrb[0].mxu0
        %v1992 = vadd.f32 0.0, %v1991
        %v1993 = vpop.f32.mrb[0].mxu0
        %v1994 = vadd.f32 0.0, %v1993
        %1995 = vmatprep.mubr.f32.mxu0 0.0
        %1996 = vmatmul.mubr.f32.gmra.mrb[0].mxu0 %v366
        %v1997 = vpop.f32.mrb[0].mxu0
        %v1998 = vadd.f32 0.0, %v1997
        %v1999 = vpop.f32.mrb[0].mxu0
        %v2000 = vadd.f32 0.0, %v1999
        %2001 = vmatprep.mubr.f32.mxu0 0.0
        %2002 = vmatmul.mubr.f32.gmra.mrb[0].mxu0 %v367
        %v2003 = vpop.f32.mrb[0].mxu0
        %v2004 = vadd.f32 0.0, %v2003
        %v2005 = vpop.f32.mrb[0].mxu0
        %v2006 = vadd.f32 0.0, %v2005
        %2007 = vmatprep.mubr.f32.mxu0 0.0
        %2008 = vmatmul.mubr.f32.gmra.mrb[0].mxu0 %v368
        %v2009 = vpop.f32.mrb[0].mxu0
        %v2010 = vadd.f32 0.0, %v2009
        %v2011 = vpop.f32.mrb[0].mxu0
        %v2012 = vadd.f32 0.0, %v2011
        %2013 = vmatprep.mubr.f32.mxu0 0.0
        %2014 = vmatmul.mubr.f32.gmra.mrb[0].mxu0 %v369
        %v2015 = vpop.f32.mrb[0].mxu0
        %v2016 = vadd.f32 0.0, %v2015
        %v2017 = vpop.f32.mrb[0].mxu0
        %v2018 = vadd.f32 0.0, %v2017
        %2019 = vmatprep.mubr.f32.mxu0 0.0
        %2020 = vmatmul.mubr.f32.gmra.mrb[0].mxu0 %v370
        %v2021 = vpop.f32.mrb[0].mxu0
        %v2022 = vadd.f32 0.0, %v2021
        %v2023 = vpop.f32.mrb[0].mxu0
        %v2024 = vadd.f32 0.0, %v2023
        %2025 = vmatprep.mubr.f32.mxu0 0.0
        %2026 = vmatmul.mubr.f32.gmra.mrb[0].mxu0 %v371
        %v2027 = vpop.f32.mrb[0].mxu0
        %v2028 = vadd.f32 0.0, %v2027
        %v2029 = vpop.f32.mrb[0].mxu0
        %v2030 = vadd.f32 0.0, %v2029
        %2031 = vmatprep.mubr.f32.mxu0 0.0
        %2032 = vmatmul.mubr.f32.gmra.mrb[0].mxu0 %v372
        %v2033 = vpop.f32.mrb[0].mxu0
        %v2034 = vadd.f32 0.0, %v2033
        %v2035 = vpop.f32.mrb[0].mxu0
        %v2036 = vadd.f32 0.0, %v2035
        %2037 = vmatprep.mubr.f32.mxu0 0.0
        %2038 = vmatmul.mubr.f32.gmra.mrb[0].mxu0 %v373
        %v2039 = vpop.f32.mrb[0].mxu0
        %v2040 = vadd.f32 0.0, %v2039
        %v2041 = vpop.f32.mrb[0].mxu0
        %v2042 = vadd.f32 0.0, %v2041
        %2043 = vmatprep.mubr.f32.mxu0 0.0
        %2044 = vmatmul.mubr.f32.gmra.mrb[0].mxu0 %v374
        %v2045 = vpop.f32.mrb[0].mxu0
        %v2046 = vadd.f32 0.0, %v2045
        %v2047 = vpop.f32.mrb[0].mxu0
        %v2048 = vadd.f32 0.0, %v2047
        %2049 = vmatprep.mubr.f32.mxu0 0.0
        %2050 = vmatmul.mubr.f32.gmra.mrb[0].mxu0 %v375
        %v2051 = vpop.f32.mrb[0].mxu0
        %v2052 = vadd.f32 0.0, %v2051
        %v2053 = vpop.f32.mrb[0].mxu0
        %v2054 = vadd.f32 0.0, %v2053
        %2055 = vmatprep.mubr.f32.mxu0 0.0
        %2056 = vmatmul.mubr.f32.gmra.mrb[0].mxu0 %v376
        %v2057 = vpop.f32.mrb[0].mxu0
        %v2058 = vadd.f32 0.0, %v2057
        %v2059 = vpop.f32.mrb[0].mxu0
        %v2060 = vadd.f32 0.0, %v2059
        %2061 = vmatprep.mubr.f32.mxu0 0.0
        %2062 = vmatmul.mubr.f32.gmra.mrb[0].mxu0 %v377
        %v2063 = vpop.f32.mrb[0].mxu0
        %v2064 = vadd.f32 0.0, %v2063
        %v2065 = vpop.f32.mrb[0].mxu0
        %v2066 = vadd.f32 0.0, %v2065
        %2067 = vmatprep.mubr.f32.mxu0 0.0
        %2068 = vmatmul.mubr.f32.gmra.mrb[0].mxu0 %v378
        %v2069 = vpop.f32.mrb[0].mxu0
        %v2070 = vadd.f32 0.0, %v2069
        %v2071 = vpop.f32.mrb[0].mxu0
        %v2072 = vadd.f32 0.0, %v2071
        %2073 = vmatprep.mubr.f32.mxu0 0.0
        %2074 = vmatmul.mubr.f32.gmra.mrb[0].mxu0 %v379
        %v2075 = vpop.f32.mrb[0].mxu0
        %v2076 = vadd.f32 0.0, %v2075
        %v2077 = vpop.f32.mrb[0].mxu0
        %v2078 = vadd.f32 0.0, %v2077
        %2079 = vmatprep.mubr.f32.mxu0 0.0
        %2080 = vmatmul.mubr.f32.gmra.mrb[0].mxu0 %v380
        %v2081 = vpop.f32.mrb[0].mxu0
        %v2082 = vadd.f32 0.0, %v2081
        %v2083 = vpop.f32.mrb[0].mxu0
        %v2084 = vadd.f32 0.0, %v2083
        %2085 = vmatprep.mubr.f32.mxu0 0.0
        %2086 = vmatmul.mubr.f32.gmra.mrb[0].mxu0 %v381
        %v2087 = vpop.f32.mrb[0].mxu0
        %v2088 = vadd.f32 0.0, %v2087
        %v2089 = vpop.f32.mrb[0].mxu0
        %v2090 = vadd.f32 0.0, %v2089
        %2091 = vmatprep.mubr.f32.mxu0 0.0
        %2092 = vmatmul.mubr.f32.gmra.mrb[0].mxu0 %v382
        %v2093 = vpop.f32.mrb[0].mxu0
        %v2094 = vadd.f32 0.0, %v2093
        %v2095 = vpop.f32.mrb[0].mxu0
        %v2096 = vadd.f32 0.0, %v2095
        %2097 = vmatprep.mubr.f32.mxu0 0.0
        %2098 = vmatmul.mubr.f32.gmra.mrb[0].mxu0 %v383
        %v2099 = vpop.f32.mrb[0].mxu0
        %v2100 = vadd.f32 0.0, %v2099
        %v2101 = vpop.f32.mrb[0].mxu0
        %v2102 = vadd.f32 0.0, %v2101
        %2103 = vmatprep.mubr.f32.mxu0 0.0
        %2104 = vmatmul.mubr.f32.gmra.mrb[0].mxu0 %v384
        %v2105 = vpop.f32.mrb[0].mxu0
        %v2106 = vadd.f32 0.0, %v2105
        %v2107 = vpop.f32.mrb[0].mxu0
        %v2108 = vadd.f32 0.0, %v2107
        %2109 = vmatprep.mubr.f32.mxu0 0.0
        %2110 = vmatmul.mubr.f32.gmra.mrb[0].mxu0 %v385
        %v2111 = vpop.f32.mrb[0].mxu0
        %v2112 = vadd.f32 0.0, %v2111
        %v2113 = vpop.f32.mrb[0].mxu0
        %v2114 = vadd.f32 0.0, %v2113
        %2115 = vdwg.mxu0
        %v2116 = vld [vmem:[#allocation7] sm:$0xf]
        %v2118 = vlaneseq
        %v2119 = vshrl.u32 %v2118, 7
        %v2120 = vsub.s32 0, %v2119
        %v2121 = vrot.slane %v2116, %v2120
        %v2122 = vlaneseq
        %v2123 = vshrl.u32 %v2122, 7
        %v2124 = vsub.s32 1, %v2123
        %v2125 = vrot.slane %v2116, %v2124
        %v2126 = vlaneseq
        %v2127 = vshrl.u32 %v2126, 7
        %v2128 = vsub.s32 2, %v2127
        %v2129 = vrot.slane %v2116, %v2128
        %v2130 = vlaneseq
        %v2131 = vshrl.u32 %v2130, 7
        %v2132 = vsub.s32 3, %v2131
        %v2133 = vrot.slane %v2116, %v2132
        %v2138 = vmul.f32 %v517, %v2121
        %v2139 = vmul.f32 %v519, %v2125
        %v2140 = vmul.f32 %v1350, %v2129
        %v2141 = vmul.f32 %v1352, %v2133
        %v2142 = vmul.f32 %v523, %v2121
        %v2143 = vmul.f32 %v525, %v2125
        %v2144 = vmul.f32 %v1356, %v2129
        %v2145 = vmul.f32 %v1358, %v2133
        %v2146 = vmul.f32 %v529, %v2121
        %v2147 = vmul.f32 %v531, %v2125
        %v2148 = vmul.f32 %v1362, %v2129
        %v2149 = vmul.f32 %v1364, %v2133
        %v2150 = vmul.f32 %v535, %v2121
        %v2151 = vmul.f32 %v537, %v2125
        %v2152 = vmul.f32 %v1368, %v2129
        %v2153 = vmul.f32 %v1370, %v2133
        %v2154 = vmul.f32 %v541, %v2121
        %v2155 = vmul.f32 %v543, %v2125
        %v2156 = vmul.f32 %v1374, %v2129
        %v2157 = vmul.f32 %v1376, %v2133
        %v2158 = vmul.f32 %v547, %v2121
        %v2159 = vmul.f32 %v549, %v2125
        %v2160 = vmul.f32 %v1380, %v2129
        %v2161 = vmul.f32 %v1382, %v2133
        %v2162 = vmul.f32 %v553, %v2121
        %v2163 = vmul.f32 %v555, %v2125
        %v2164 = vmul.f32 %v1386, %v2129
        %v2165 = vmul.f32 %v1388, %v2133
        %v2166 = vmul.f32 %v559, %v2121
        %v2167 = vmul.f32 %v561, %v2125
        %v2168 = vmul.f32 %v1392, %v2129
        %v2169 = vmul.f32 %v1394, %v2133
        %v2170 = vmul.f32 %v565, %v2121
        %v2171 = vmul.f32 %v567, %v2125
        %v2172 = vmul.f32 %v1398, %v2129
        %v2173 = vmul.f32 %v1400, %v2133
        %v2174 = vmul.f32 %v571, %v2121
        %v2175 = vmul.f32 %v573, %v2125
        %v2176 = vmul.f32 %v1404, %v2129
        %v2177 = vmul.f32 %v1406, %v2133
        %v2178 = vmul.f32 %v577, %v2121
        %v2179 = vmul.f32 %v579, %v2125
        %v2180 = vmul.f32 %v1410, %v2129
        %v2181 = vmul.f32 %v1412, %v2133
        %v2182 = vmul.f32 %v583, %v2121
        %v2183 = vmul.f32 %v585, %v2125
        %v2184 = vmul.f32 %v1416, %v2129
        %v2185 = vmul.f32 %v1418, %v2133
        %v2186 = vmul.f32 %v589, %v2121
        %v2187 = vmul.f32 %v591, %v2125
        %v2188 = vmul.f32 %v1422, %v2129
        %v2189 = vmul.f32 %v1424, %v2133
        %v2190 = vmul.f32 %v595, %v2121
        %v2191 = vmul.f32 %v597, %v2125
        %v2192 = vmul.f32 %v1428, %v2129
        %v2193 = vmul.f32 %v1430, %v2133
        %v2194 = vmul.f32 %v601, %v2121
        %v2195 = vmul.f32 %v603, %v2125
        %v2196 = vmul.f32 %v1434, %v2129
        %v2197 = vmul.f32 %v1436, %v2133
        %v2198 = vmul.f32 %v607, %v2121
        %v2199 = vmul.f32 %v609, %v2125
        %v2200 = vmul.f32 %v1440, %v2129
        %v2201 = vmul.f32 %v1442, %v2133
        %v2202 = vmul.f32 %v613, %v2121
        %v2203 = vmul.f32 %v615, %v2125
        %v2204 = vmul.f32 %v1446, %v2129
        %v2205 = vmul.f32 %v1448, %v2133
        %v2206 = vmul.f32 %v619, %v2121
        %v2207 = vmul.f32 %v621, %v2125
        %v2208 = vmul.f32 %v1452, %v2129
        %v2209 = vmul.f32 %v1454, %v2133
        %v2210 = vmul.f32 %v625, %v2121
        %v2211 = vmul.f32 %v627, %v2125
        %v2212 = vmul.f32 %v1458, %v2129
        %v2213 = vmul.f32 %v1460, %v2133
        %v2214 = vmul.f32 %v631, %v2121
        %v2215 = vmul.f32 %v633, %v2125
        %v2216 = vmul.f32 %v1464, %v2129
        %v2217 = vmul.f32 %v1466, %v2133
        %v2218 = vmul.f32 %v637, %v2121
        %v2219 = vmul.f32 %v639, %v2125
        %v2220 = vmul.f32 %v1470, %v2129
        %v2221 = vmul.f32 %v1472, %v2133
        %v2222 = vmul.f32 %v643, %v2121
        %v2223 = vmul.f32 %v645, %v2125
        %v2224 = vmul.f32 %v1476, %v2129
        %v2225 = vmul.f32 %v1478, %v2133
        %v2226 = vmul.f32 %v649, %v2121
        %v2227 = vmul.f32 %v651, %v2125
        %v2228 = vmul.f32 %v1482, %v2129
        %v2229 = vmul.f32 %v1484, %v2133
        %v2230 = vmul.f32 %v655, %v2121
        %v2231 = vmul.f32 %v657, %v2125
        %v2232 = vmul.f32 %v1488, %v2129
        %v2233 = vmul.f32 %v1490, %v2133
        %v2234 = vmul.f32 %v661, %v2121
        %v2235 = vmul.f32 %v663, %v2125
        %v2236 = vmul.f32 %v1494, %v2129
        %v2237 = vmul.f32 %v1496, %v2133
        %v2238 = vmul.f32 %v667, %v2121
        %v2239 = vmul.f32 %v669, %v2125
        %v2240 = vmul.f32 %v1500, %v2129
        %v2241 = vmul.f32 %v1502, %v2133
        %v2242 = vmul.f32 %v673, %v2121
        %v2243 = vmul.f32 %v675, %v2125
        %v2244 = vmul.f32 %v1506, %v2129
        %v2245 = vmul.f32 %v1508, %v2133
        %v2246 = vmul.f32 %v679, %v2121
        %v2247 = vmul.f32 %v681, %v2125
        %v2248 = vmul.f32 %v1512, %v2129
        %v2249 = vmul.f32 %v1514, %v2133
        %v2250 = vmul.f32 %v685, %v2121
        %v2251 = vmul.f32 %v687, %v2125
        %v2252 = vmul.f32 %v1518, %v2129
        %v2253 = vmul.f32 %v1520, %v2133
        %v2254 = vmul.f32 %v691, %v2121
        %v2255 = vmul.f32 %v693, %v2125
        %v2256 = vmul.f32 %v1524, %v2129
        %v2257 = vmul.f32 %v1526, %v2133
        %v2258 = vmul.f32 %v697, %v2121
        %v2259 = vmul.f32 %v699, %v2125
        %v2260 = vmul.f32 %v1530, %v2129
        %v2261 = vmul.f32 %v1532, %v2133
        %v2262 = vmul.f32 %v703, %v2121
        %v2263 = vmul.f32 %v705, %v2125
        %v2264 = vmul.f32 %v1536, %v2129
        %v2265 = vmul.f32 %v1538, %v2133
        %v2266 = vmul.f32 %v709, %v2121
        %v2267 = vmul.f32 %v711, %v2125
        %v2268 = vmul.f32 %v1542, %v2129
        %v2269 = vmul.f32 %v1544, %v2133
        %v2270 = vmul.f32 %v715, %v2121
        %v2271 = vmul.f32 %v717, %v2125
        %v2272 = vmul.f32 %v1548, %v2129
        %v2273 = vmul.f32 %v1550, %v2133
        %v2274 = vmul.f32 %v721, %v2121
        %v2275 = vmul.f32 %v723, %v2125
        %v2276 = vmul.f32 %v1554, %v2129
        %v2277 = vmul.f32 %v1556, %v2133
        %v2278 = vmul.f32 %v727, %v2121
        %v2279 = vmul.f32 %v729, %v2125
        %v2280 = vmul.f32 %v1560, %v2129
        %v2281 = vmul.f32 %v1562, %v2133
        %v2282 = vmul.f32 %v733, %v2121
        %v2283 = vmul.f32 %v735, %v2125
        %v2284 = vmul.f32 %v1566, %v2129
        %v2285 = vmul.f32 %v1568, %v2133
        %v2286 = vmul.f32 %v739, %v2121
        %v2287 = vmul.f32 %v741, %v2125
        %v2288 = vmul.f32 %v1572, %v2129
        %v2289 = vmul.f32 %v1574, %v2133
        %v2290 = vmul.f32 %v745, %v2121
        %v2291 = vmul.f32 %v747, %v2125
        %v2292 = vmul.f32 %v1578, %v2129
        %v2293 = vmul.f32 %v1580, %v2133
        %v2294 = vmul.f32 %v751, %v2121
        %v2295 = vmul.f32 %v753, %v2125
        %v2296 = vmul.f32 %v1584, %v2129
        %v2297 = vmul.f32 %v1586, %v2133
        %v2298 = vmul.f32 %v757, %v2121
        %v2299 = vmul.f32 %v759, %v2125
        %v2300 = vmul.f32 %v1590, %v2129
        %v2301 = vmul.f32 %v1592, %v2133
        %v2302 = vmul.f32 %v763, %v2121
        %v2303 = vmul.f32 %v765, %v2125
        %v2304 = vmul.f32 %v1596, %v2129
        %v2305 = vmul.f32 %v1598, %v2133
        %v2306 = vmul.f32 %v769, %v2121
        %v2307 = vmul.f32 %v771, %v2125
        %v2308 = vmul.f32 %v1602, %v2129
        %v2309 = vmul.f32 %v1604, %v2133
        %v2310 = vmul.f32 %v775, %v2121
        %v2311 = vmul.f32 %v777, %v2125
        %v2312 = vmul.f32 %v1608, %v2129
        %v2313 = vmul.f32 %v1610, %v2133
        %v2314 = vmul.f32 %v781, %v2121
        %v2315 = vmul.f32 %v783, %v2125
        %v2316 = vmul.f32 %v1614, %v2129
        %v2317 = vmul.f32 %v1616, %v2133
        %v2318 = vmul.f32 %v787, %v2121
        %v2319 = vmul.f32 %v789, %v2125
        %v2320 = vmul.f32 %v1620, %v2129
        %v2321 = vmul.f32 %v1622, %v2133
        %v2322 = vmul.f32 %v793, %v2121
        %v2323 = vmul.f32 %v795, %v2125
        %v2324 = vmul.f32 %v1626, %v2129
        %v2325 = vmul.f32 %v1628, %v2133
        %v2326 = vmul.f32 %v799, %v2121
        %v2327 = vmul.f32 %v801, %v2125
        %v2328 = vmul.f32 %v1632, %v2129
        %v2329 = vmul.f32 %v1634, %v2133
        %v2330 = vmul.f32 %v805, %v2121
        %v2331 = vmul.f32 %v807, %v2125
        %v2332 = vmul.f32 %v1638, %v2129
        %v2333 = vmul.f32 %v1640, %v2133
        %v2334 = vmul.f32 %v811, %v2121
        %v2335 = vmul.f32 %v813, %v2125
        %v2336 = vmul.f32 %v1644, %v2129
        %v2337 = vmul.f32 %v1646, %v2133
        %v2338 = vmul.f32 %v817, %v2121
        %v2339 = vmul.f32 %v819, %v2125
        %v2340 = vmul.f32 %v1650, %v2129
        %v2341 = vmul.f32 %v1652, %v2133
        %v2342 = vmul.f32 %v823, %v2121
        %v2343 = vmul.f32 %v825, %v2125
        %v2344 = vmul.f32 %v1656, %v2129
        %v2345 = vmul.f32 %v1658, %v2133
        %v2346 = vmul.f32 %v829, %v2121
        %v2347 = vmul.f32 %v831, %v2125
        %v2348 = vmul.f32 %v1662, %v2129
        %v2349 = vmul.f32 %v1664, %v2133
        %v2350 = vmul.f32 %v835, %v2121
        %v2351 = vmul.f32 %v837, %v2125
        %v2352 = vmul.f32 %v1668, %v2129
        %v2353 = vmul.f32 %v1670, %v2133
        %v2354 = vmul.f32 %v841, %v2121
        %v2355 = vmul.f32 %v843, %v2125
        %v2356 = vmul.f32 %v1674, %v2129
        %v2357 = vmul.f32 %v1676, %v2133
        %v2358 = vmul.f32 %v847, %v2121
        %v2359 = vmul.f32 %v849, %v2125
        %v2360 = vmul.f32 %v1680, %v2129
        %v2361 = vmul.f32 %v1682, %v2133
        %v2362 = vmul.f32 %v853, %v2121
        %v2363 = vmul.f32 %v855, %v2125
        %v2364 = vmul.f32 %v1686, %v2129
        %v2365 = vmul.f32 %v1688, %v2133
        %v2366 = vmul.f32 %v859, %v2121
        %v2367 = vmul.f32 %v861, %v2125
        %v2368 = vmul.f32 %v1692, %v2129
        %v2369 = vmul.f32 %v1694, %v2133
        %v2370 = vmul.f32 %v865, %v2121
        %v2371 = vmul.f32 %v867, %v2125
        %v2372 = vmul.f32 %v1698, %v2129
        %v2373 = vmul.f32 %v1700, %v2133
        %v2374 = vmul.f32 %v871, %v2121
        %v2375 = vmul.f32 %v873, %v2125
        %v2376 = vmul.f32 %v1704, %v2129
        %v2377 = vmul.f32 %v1706, %v2133
        %v2378 = vmul.f32 %v877, %v2121
        %v2379 = vmul.f32 %v879, %v2125
        %v2380 = vmul.f32 %v1710, %v2129
        %v2381 = vmul.f32 %v1712, %v2133
        %v2382 = vmul.f32 %v883, %v2121
        %v2383 = vmul.f32 %v885, %v2125
        %v2384 = vmul.f32 %v1716, %v2129
        %v2385 = vmul.f32 %v1718, %v2133
        %v2386 = vmul.f32 %v889, %v2121
        %v2387 = vmul.f32 %v891, %v2125
        %v2388 = vmul.f32 %v1722, %v2129
        %v2389 = vmul.f32 %v1724, %v2133
        %v2390 = vmul.f32 %v895, %v2121
        %v2391 = vmul.f32 %v897, %v2125
        %v2392 = vmul.f32 %v1728, %v2129
        %v2393 = vmul.f32 %v1730, %v2133
        %v2394 = vmul.f32 %v901, %v2121
        %v2395 = vmul.f32 %v903, %v2125
        %v2396 = vmul.f32 %v1734, %v2129
        %v2397 = vmul.f32 %v1736, %v2133
        %v2398 = vmul.f32 %v907, %v2121
        %v2399 = vmul.f32 %v909, %v2125
        %v2400 = vmul.f32 %v1740, %v2129
        %v2401 = vmul.f32 %v1742, %v2133
        %v2402 = vmul.f32 %v913, %v2121
        %v2403 = vmul.f32 %v915, %v2125
        %v2404 = vmul.f32 %v1746, %v2129
        %v2405 = vmul.f32 %v1748, %v2133
        %v2406 = vmul.f32 %v919, %v2121
        %v2407 = vmul.f32 %v921, %v2125
        %v2408 = vmul.f32 %v1752, %v2129
        %v2409 = vmul.f32 %v1754, %v2133
        %v2410 = vmul.f32 %v925, %v2121
        %v2411 = vmul.f32 %v927, %v2125
        %v2412 = vmul.f32 %v1758, %v2129
        %v2413 = vmul.f32 %v1760, %v2133
        %v2414 = vmul.f32 %v931, %v2121
        %v2415 = vmul.f32 %v933, %v2125
        %v2416 = vmul.f32 %v1764, %v2129
        %v2417 = vmul.f32 %v1766, %v2133
        %v2418 = vmul.f32 %v937, %v2121
        %v2419 = vmul.f32 %v939, %v2125
        %v2420 = vmul.f32 %v1770, %v2129
        %v2421 = vmul.f32 %v1772, %v2133
        %v2422 = vmul.f32 %v943, %v2121
        %v2423 = vmul.f32 %v945, %v2125
        %v2424 = vmul.f32 %v1776, %v2129
        %v2425 = vmul.f32 %v1778, %v2133
        %v2426 = vmul.f32 %v949, %v2121
        %v2427 = vmul.f32 %v951, %v2125
        %v2428 = vmul.f32 %v1782, %v2129
        %v2429 = vmul.f32 %v1784, %v2133
        %v2430 = vmul.f32 %v955, %v2121
        %v2431 = vmul.f32 %v957, %v2125
        %v2432 = vmul.f32 %v1788, %v2129
        %v2433 = vmul.f32 %v1790, %v2133
        %v2434 = vmul.f32 %v961, %v2121
        %v2435 = vmul.f32 %v963, %v2125
        %v2436 = vmul.f32 %v1794, %v2129
        %v2437 = vmul.f32 %v1796, %v2133
        %v2438 = vmul.f32 %v967, %v2121
        %v2439 = vmul.f32 %v969, %v2125
        %v2440 = vmul.f32 %v1800, %v2129
        %v2441 = vmul.f32 %v1802, %v2133
        %v2442 = vmul.f32 %v973, %v2121
        %v2443 = vmul.f32 %v975, %v2125
        %v2444 = vmul.f32 %v1806, %v2129
        %v2445 = vmul.f32 %v1808, %v2133
        %v2446 = vmul.f32 %v979, %v2121
        %v2447 = vmul.f32 %v981, %v2125
        %v2448 = vmul.f32 %v1812, %v2129
        %v2449 = vmul.f32 %v1814, %v2133
        %v2450 = vmul.f32 %v985, %v2121
        %v2451 = vmul.f32 %v987, %v2125
        %v2452 = vmul.f32 %v1818, %v2129
        %v2453 = vmul.f32 %v1820, %v2133
        %v2454 = vmul.f32 %v991, %v2121
        %v2455 = vmul.f32 %v993, %v2125
        %v2456 = vmul.f32 %v1824, %v2129
        %v2457 = vmul.f32 %v1826, %v2133
        %v2458 = vmul.f32 %v997, %v2121
        %v2459 = vmul.f32 %v999, %v2125
        %v2460 = vmul.f32 %v1830, %v2129
        %v2461 = vmul.f32 %v1832, %v2133
        %v2462 = vmul.f32 %v1003, %v2121
        %v2463 = vmul.f32 %v1005, %v2125
        %v2464 = vmul.f32 %v1836, %v2129
        %v2465 = vmul.f32 %v1838, %v2133
        %v2466 = vmul.f32 %v1009, %v2121
        %v2467 = vmul.f32 %v1011, %v2125
        %v2468 = vmul.f32 %v1842, %v2129
        %v2469 = vmul.f32 %v1844, %v2133
        %v2470 = vmul.f32 %v1015, %v2121
        %v2471 = vmul.f32 %v1017, %v2125
        %v2472 = vmul.f32 %v1848, %v2129
        %v2473 = vmul.f32 %v1850, %v2133
        %v2474 = vmul.f32 %v1021, %v2121
        %v2475 = vmul.f32 %v1023, %v2125
        %v2476 = vmul.f32 %v1854, %v2129
        %v2477 = vmul.f32 %v1856, %v2133
        %v2478 = vmul.f32 %v1027, %v2121
        %v2479 = vmul.f32 %v1029, %v2125
        %v2480 = vmul.f32 %v1860, %v2129
        %v2481 = vmul.f32 %v1862, %v2133
        %v2482 = vmul.f32 %v1033, %v2121
        %v2483 = vmul.f32 %v1035, %v2125
        %v2484 = vmul.f32 %v1866, %v2129
        %v2485 = vmul.f32 %v1868, %v2133
        %v2486 = vmul.f32 %v1039, %v2121
        %v2487 = vmul.f32 %v1041, %v2125
        %v2488 = vmul.f32 %v1872, %v2129
        %v2489 = vmul.f32 %v1874, %v2133
        %v2490 = vmul.f32 %v1045, %v2121
        %v2491 = vmul.f32 %v1047, %v2125
        %v2492 = vmul.f32 %v1878, %v2129
        %v2493 = vmul.f32 %v1880, %v2133
        %v2494 = vmul.f32 %v1051, %v2121
        %v2495 = vmul.f32 %v1053, %v2125
        %v2496 = vmul.f32 %v1884, %v2129
        %v2497 = vmul.f32 %v1886, %v2133
        %v2498 = vmul.f32 %v1057, %v2121
        %v2499 = vmul.f32 %v1059, %v2125
        %v2500 = vmul.f32 %v1890, %v2129
        %v2501 = vmul.f32 %v1892, %v2133
        %v2502 = vmul.f32 %v1063, %v2121
        %v2503 = vmul.f32 %v1065, %v2125
        %v2504 = vmul.f32 %v1896, %v2129
        %v2505 = vmul.f32 %v1898, %v2133
        %v2506 = vmul.f32 %v1069, %v2121
        %v2507 = vmul.f32 %v1071, %v2125
        %v2508 = vmul.f32 %v1902, %v2129
        %v2509 = vmul.f32 %v1904, %v2133
        %v2510 = vmul.f32 %v1075, %v2121
        %v2511 = vmul.f32 %v1077, %v2125
        %v2512 = vmul.f32 %v1908, %v2129
        %v2513 = vmul.f32 %v1910, %v2133
        %v2514 = vmul.f32 %v1081, %v2121
        %v2515 = vmul.f32 %v1083, %v2125
        %v2516 = vmul.f32 %v1914, %v2129
        %v2517 = vmul.f32 %v1916, %v2133
        %v2518 = vmul.f32 %v1087, %v2121
        %v2519 = vmul.f32 %v1089, %v2125
        %v2520 = vmul.f32 %v1920, %v2129
        %v2521 = vmul.f32 %v1922, %v2133
        %v2522 = vmul.f32 %v1093, %v2121
        %v2523 = vmul.f32 %v1095, %v2125
        %v2524 = vmul.f32 %v1926, %v2129
        %v2525 = vmul.f32 %v1928, %v2133
        %v2526 = vmul.f32 %v1099, %v2121
        %v2527 = vmul.f32 %v1101, %v2125
        %v2528 = vmul.f32 %v1932, %v2129
        %v2529 = vmul.f32 %v1934, %v2133
        %v2530 = vmul.f32 %v1105, %v2121
        %v2531 = vmul.f32 %v1107, %v2125
        %v2532 = vmul.f32 %v1938, %v2129
        %v2533 = vmul.f32 %v1940, %v2133
        %v2534 = vmul.f32 %v1111, %v2121
        %v2535 = vmul.f32 %v1113, %v2125
        %v2536 = vmul.f32 %v1944, %v2129
        %v2537 = vmul.f32 %v1946, %v2133
        %v2538 = vmul.f32 %v1117, %v2121
        %v2539 = vmul.f32 %v1119, %v2125
        %v2540 = vmul.f32 %v1950, %v2129
        %v2541 = vmul.f32 %v1952, %v2133
        %v2542 = vmul.f32 %v1123, %v2121
        %v2543 = vmul.f32 %v1125, %v2125
        %v2544 = vmul.f32 %v1956, %v2129
        %v2545 = vmul.f32 %v1958, %v2133
        %v2546 = vmul.f32 %v1129, %v2121
        %v2547 = vmul.f32 %v1131, %v2125
        %v2548 = vmul.f32 %v1962, %v2129
        %v2549 = vmul.f32 %v1964, %v2133
        %v2550 = vmul.f32 %v1135, %v2121
        %v2551 = vmul.f32 %v1137, %v2125
        %v2552 = vmul.f32 %v1968, %v2129
        %v2553 = vmul.f32 %v1970, %v2133
        %v2554 = vmul.f32 %v1141, %v2121
        %v2555 = vmul.f32 %v1143, %v2125
        %v2556 = vmul.f32 %v1974, %v2129
        %v2557 = vmul.f32 %v1976, %v2133
        %v2558 = vmul.f32 %v1147, %v2121
        %v2559 = vmul.f32 %v1149, %v2125
        %v2560 = vmul.f32 %v1980, %v2129
        %v2561 = vmul.f32 %v1982, %v2133
        %v2562 = vmul.f32 %v1153, %v2121
        %v2563 = vmul.f32 %v1155, %v2125
        %v2564 = vmul.f32 %v1986, %v2129
        %v2565 = vmul.f32 %v1988, %v2133
        %v2566 = vmul.f32 %v1159, %v2121
        %v2567 = vmul.f32 %v1161, %v2125
        %v2568 = vmul.f32 %v1992, %v2129
        %v2569 = vmul.f32 %v1994, %v2133
        %v2570 = vmul.f32 %v1165, %v2121
        %v2571 = vmul.f32 %v1167, %v2125
        %v2572 = vmul.f32 %v1998, %v2129
        %v2573 = vmul.f32 %v2000, %v2133
        %v2574 = vmul.f32 %v1171, %v2121
        %v2575 = vmul.f32 %v1173, %v2125
        %v2576 = vmul.f32 %v2004, %v2129
        %v2577 = vmul.f32 %v2006, %v2133
        %v2578 = vmul.f32 %v1177, %v2121
        %v2579 = vmul.f32 %v1179, %v2125
        %v2580 = vmul.f32 %v2010, %v2129
        %v2581 = vmul.f32 %v2012, %v2133
        %v2582 = vmul.f32 %v1183, %v2121
        %v2583 = vmul.f32 %v1185, %v2125
        %v2584 = vmul.f32 %v2016, %v2129
        %v2585 = vmul.f32 %v2018, %v2133
        %v2586 = vmul.f32 %v1189, %v2121
        %v2587 = vmul.f32 %v1191, %v2125
        %v2588 = vmul.f32 %v2022, %v2129
        %v2589 = vmul.f32 %v2024, %v2133
        %v2590 = vmul.f32 %v1195, %v2121
        %v2591 = vmul.f32 %v1197, %v2125
        %v2592 = vmul.f32 %v2028, %v2129
        %v2593 = vmul.f32 %v2030, %v2133
        %v2594 = vmul.f32 %v1201, %v2121
        %v2595 = vmul.f32 %v1203, %v2125
        %v2596 = vmul.f32 %v2034, %v2129
        %v2597 = vmul.f32 %v2036, %v2133
        %v2598 = vmul.f32 %v1207, %v2121
        %v2599 = vmul.f32 %v1209, %v2125
        %v2600 = vmul.f32 %v2040, %v2129
        %v2601 = vmul.f32 %v2042, %v2133
        %v2602 = vmul.f32 %v1213, %v2121
        %v2603 = vmul.f32 %v1215, %v2125
        %v2604 = vmul.f32 %v2046, %v2129
        %v2605 = vmul.f32 %v2048, %v2133
        %v2606 = vmul.f32 %v1219, %v2121
        %v2607 = vmul.f32 %v1221, %v2125
        %v2608 = vmul.f32 %v2052, %v2129
        %v2609 = vmul.f32 %v2054, %v2133
        %v2610 = vmul.f32 %v1225, %v2121
        %v2611 = vmul.f32 %v1227, %v2125
        %v2612 = vmul.f32 %v2058, %v2129
        %v2613 = vmul.f32 %v2060, %v2133
        %v2614 = vmul.f32 %v1231, %v2121
        %v2615 = vmul.f32 %v1233, %v2125
        %v2616 = vmul.f32 %v2064, %v2129
        %v2617 = vmul.f32 %v2066, %v2133
        %v2618 = vmul.f32 %v1237, %v2121
        %v2619 = vmul.f32 %v1239, %v2125
        %v2620 = vmul.f32 %v2070, %v2129
        %v2621 = vmul.f32 %v2072, %v2133
        %v2622 = vmul.f32 %v1243, %v2121
        %v2623 = vmul.f32 %v1245, %v2125
        %v2624 = vmul.f32 %v2076, %v2129
        %v2625 = vmul.f32 %v2078, %v2133
        %v2626 = vmul.f32 %v1249, %v2121
        %v2627 = vmul.f32 %v1251, %v2125
        %v2628 = vmul.f32 %v2082, %v2129
        %v2629 = vmul.f32 %v2084, %v2133
        %v2630 = vmul.f32 %v1255, %v2121
        %v2631 = vmul.f32 %v1257, %v2125
        %v2632 = vmul.f32 %v2088, %v2129
        %v2633 = vmul.f32 %v2090, %v2133
        %v2634 = vmul.f32 %v1261, %v2121
        %v2635 = vmul.f32 %v1263, %v2125
        %v2636 = vmul.f32 %v2094, %v2129
        %v2637 = vmul.f32 %v2096, %v2133
        %v2638 = vmul.f32 %v1267, %v2121
        %v2639 = vmul.f32 %v1269, %v2125
        %v2640 = vmul.f32 %v2100, %v2129
        %v2641 = vmul.f32 %v2102, %v2133
        %v2642 = vmul.f32 %v1273, %v2121
        %v2643 = vmul.f32 %v1275, %v2125
        %v2644 = vmul.f32 %v2106, %v2129
        %v2645 = vmul.f32 %v2108, %v2133
        %v2646 = vmul.f32 %v1279, %v2121
        %v2647 = vmul.f32 %v1281, %v2125
        %v2648 = vmul.f32 %v2112, %v2129
        %v2649 = vmul.f32 %v2114, %v2133
        %v2650 = vld [vmem:[#allocation8] sm:$0xf]
        %v2652 = vlaneseq
        %v2653 = vshrl.u32 %v2652, 7
        %v2654 = vsub.s32 0, %v2653
        %v2655 = vrot.slane %v2650, %v2654
        %v2656 = vlaneseq
        %v2657 = vshrl.u32 %v2656, 7
        %v2658 = vsub.s32 1, %v2657
        %v2659 = vrot.slane %v2650, %v2658
        %v2660 = vlaneseq
        %v2661 = vshrl.u32 %v2660, 7
        %v2662 = vsub.s32 2, %v2661
        %v2663 = vrot.slane %v2650, %v2662
        %v2664 = vlaneseq
        %v2665 = vshrl.u32 %v2664, 7
        %v2666 = vsub.s32 3, %v2665
        %v2667 = vrot.slane %v2650, %v2666
        %v2672 = vadd.f32 %v2138, %v2655
        %v2673 = vadd.f32 %v2139, %v2659
        %v2674 = vadd.f32 %v2140, %v2663
        %v2675 = vadd.f32 %v2141, %v2667
        %v2676 = vadd.f32 %v2142, %v2655
        %v2677 = vadd.f32 %v2143, %v2659
        %v2678 = vadd.f32 %v2144, %v2663
        %v2679 = vadd.f32 %v2145, %v2667
        %v2680 = vadd.f32 %v2146, %v2655
        %v2681 = vadd.f32 %v2147, %v2659
        %v2682 = vadd.f32 %v2148, %v2663
        %v2683 = vadd.f32 %v2149, %v2667
        %v2684 = vadd.f32 %v2150, %v2655
        %v2685 = vadd.f32 %v2151, %v2659
        %v2686 = vadd.f32 %v2152, %v2663
        %v2687 = vadd.f32 %v2153, %v2667
        %v2688 = vadd.f32 %v2154, %v2655
        %v2689 = vadd.f32 %v2155, %v2659
        %v2690 = vadd.f32 %v2156, %v2663
        %v2691 = vadd.f32 %v2157, %v2667
        %v2692 = vadd.f32 %v2158, %v2655
        %v2693 = vadd.f32 %v2159, %v2659
        %v2694 = vadd.f32 %v2160, %v2663
        %v2695 = vadd.f32 %v2161, %v2667
        %v2696 = vadd.f32 %v2162, %v2655
        %v2697 = vadd.f32 %v2163, %v2659
        %v2698 = vadd.f32 %v2164, %v2663
        %v2699 = vadd.f32 %v2165, %v2667
        %v2700 = vadd.f32 %v2166, %v2655
        %v2701 = vadd.f32 %v2167, %v2659
        %v2702 = vadd.f32 %v2168, %v2663
        %v2703 = vadd.f32 %v2169, %v2667
        %v2704 = vadd.f32 %v2170, %v2655
        %v2705 = vadd.f32 %v2171, %v2659
        %v2706 = vadd.f32 %v2172, %v2663
        %v2707 = vadd.f32 %v2173, %v2667
        %v2708 = vadd.f32 %v2174, %v2655
        %v2709 = vadd.f32 %v2175, %v2659
        %v2710 = vadd.f32 %v2176, %v2663
        %v2711 = vadd.f32 %v2177, %v2667
        %v2712 = vadd.f32 %v2178, %v2655
        %v2713 = vadd.f32 %v2179, %v2659
        %v2714 = vadd.f32 %v2180, %v2663
        %v2715 = vadd.f32 %v2181, %v2667
        %v2716 = vadd.f32 %v2182, %v2655
        %v2717 = vadd.f32 %v2183, %v2659
        %v2718 = vadd.f32 %v2184, %v2663
        %v2719 = vadd.f32 %v2185, %v2667
        %v2720 = vadd.f32 %v2186, %v2655
        %v2721 = vadd.f32 %v2187, %v2659
        %v2722 = vadd.f32 %v2188, %v2663
        %v2723 = vadd.f32 %v2189, %v2667
        %v2724 = vadd.f32 %v2190, %v2655
        %v2725 = vadd.f32 %v2191, %v2659
        %v2726 = vadd.f32 %v2192, %v2663
        %v2727 = vadd.f32 %v2193, %v2667
        %v2728 = vadd.f32 %v2194, %v2655
        %v2729 = vadd.f32 %v2195, %v2659
        %v2730 = vadd.f32 %v2196, %v2663
        %v2731 = vadd.f32 %v2197, %v2667
        %v2732 = vadd.f32 %v2198, %v2655
        %v2733 = vadd.f32 %v2199, %v2659
        %v2734 = vadd.f32 %v2200, %v2663
        %v2735 = vadd.f32 %v2201, %v2667
        %v2736 = vadd.f32 %v2202, %v2655
        %v2737 = vadd.f32 %v2203, %v2659
        %v2738 = vadd.f32 %v2204, %v2663
        %v2739 = vadd.f32 %v2205, %v2667
        %v2740 = vadd.f32 %v2206, %v2655
        %v2741 = vadd.f32 %v2207, %v2659
        %v2742 = vadd.f32 %v2208, %v2663
        %v2743 = vadd.f32 %v2209, %v2667
        %v2744 = vadd.f32 %v2210, %v2655
        %v2745 = vadd.f32 %v2211, %v2659
        %v2746 = vadd.f32 %v2212, %v2663
        %v2747 = vadd.f32 %v2213, %v2667
        %v2748 = vadd.f32 %v2214, %v2655
        %v2749 = vadd.f32 %v2215, %v2659
        %v2750 = vadd.f32 %v2216, %v2663
        %v2751 = vadd.f32 %v2217, %v2667
        %v2752 = vadd.f32 %v2218, %v2655
        %v2753 = vadd.f32 %v2219, %v2659
        %v2754 = vadd.f32 %v2220, %v2663
        %v2755 = vadd.f32 %v2221, %v2667
        %v2756 = vadd.f32 %v2222, %v2655
        %v2757 = vadd.f32 %v2223, %v2659
        %v2758 = vadd.f32 %v2224, %v2663
        %v2759 = vadd.f32 %v2225, %v2667
        %v2760 = vadd.f32 %v2226, %v2655
        %v2761 = vadd.f32 %v2227, %v2659
        %v2762 = vadd.f32 %v2228, %v2663
        %v2763 = vadd.f32 %v2229, %v2667
        %v2764 = vadd.f32 %v2230, %v2655
        %v2765 = vadd.f32 %v2231, %v2659
        %v2766 = vadd.f32 %v2232, %v2663
        %v2767 = vadd.f32 %v2233, %v2667
        %v2768 = vadd.f32 %v2234, %v2655
        %v2769 = vadd.f32 %v2235, %v2659
        %v2770 = vadd.f32 %v2236, %v2663
        %v2771 = vadd.f32 %v2237, %v2667
        %v2772 = vadd.f32 %v2238, %v2655
        %v2773 = vadd.f32 %v2239, %v2659
        %v2774 = vadd.f32 %v2240, %v2663
        %v2775 = vadd.f32 %v2241, %v2667
        %v2776 = vadd.f32 %v2242, %v2655
        %v2777 = vadd.f32 %v2243, %v2659
        %v2778 = vadd.f32 %v2244, %v2663
        %v2779 = vadd.f32 %v2245, %v2667
        %v2780 = vadd.f32 %v2246, %v2655
        %v2781 = vadd.f32 %v2247, %v2659
        %v2782 = vadd.f32 %v2248, %v2663
        %v2783 = vadd.f32 %v2249, %v2667
        %v2784 = vadd.f32 %v2250, %v2655
        %v2785 = vadd.f32 %v2251, %v2659
        %v2786 = vadd.f32 %v2252, %v2663
        %v2787 = vadd.f32 %v2253, %v2667
        %v2788 = vadd.f32 %v2254, %v2655
        %v2789 = vadd.f32 %v2255, %v2659
        %v2790 = vadd.f32 %v2256, %v2663
        %v2791 = vadd.f32 %v2257, %v2667
        %v2792 = vadd.f32 %v2258, %v2655
        %v2793 = vadd.f32 %v2259, %v2659
        %v2794 = vadd.f32 %v2260, %v2663
        %v2795 = vadd.f32 %v2261, %v2667
        %v2796 = vadd.f32 %v2262, %v2655
        %v2797 = vadd.f32 %v2263, %v2659
        %v2798 = vadd.f32 %v2264, %v2663
        %v2799 = vadd.f32 %v2265, %v2667
        %v2800 = vadd.f32 %v2266, %v2655
        %v2801 = vadd.f32 %v2267, %v2659
        %v2802 = vadd.f32 %v2268, %v2663
        %v2803 = vadd.f32 %v2269, %v2667
        %v2804 = vadd.f32 %v2270, %v2655
        %v2805 = vadd.f32 %v2271, %v2659
        %v2806 = vadd.f32 %v2272, %v2663
        %v2807 = vadd.f32 %v2273, %v2667
        %v2808 = vadd.f32 %v2274, %v2655
        %v2809 = vadd.f32 %v2275, %v2659
        %v2810 = vadd.f32 %v2276, %v2663
        %v2811 = vadd.f32 %v2277, %v2667
        %v2812 = vadd.f32 %v2278, %v2655
        %v2813 = vadd.f32 %v2279, %v2659
        %v2814 = vadd.f32 %v2280, %v2663
        %v2815 = vadd.f32 %v2281, %v2667
        %v2816 = vadd.f32 %v2282, %v2655
        %v2817 = vadd.f32 %v2283, %v2659
        %v2818 = vadd.f32 %v2284, %v2663
        %v2819 = vadd.f32 %v2285, %v2667
        %v2820 = vadd.f32 %v2286, %v2655
        %v2821 = vadd.f32 %v2287, %v2659
        %v2822 = vadd.f32 %v2288, %v2663
        %v2823 = vadd.f32 %v2289, %v2667
        %v2824 = vadd.f32 %v2290, %v2655
        %v2825 = vadd.f32 %v2291, %v2659
        %v2826 = vadd.f32 %v2292, %v2663
        %v2827 = vadd.f32 %v2293, %v2667
        %v2828 = vadd.f32 %v2294, %v2655
        %v2829 = vadd.f32 %v2295, %v2659
        %v2830 = vadd.f32 %v2296, %v2663
        %v2831 = vadd.f32 %v2297, %v2667
        %v2832 = vadd.f32 %v2298, %v2655
        %v2833 = vadd.f32 %v2299, %v2659
        %v2834 = vadd.f32 %v2300, %v2663
        %v2835 = vadd.f32 %v2301, %v2667
        %v2836 = vadd.f32 %v2302, %v2655
        %v2837 = vadd.f32 %v2303, %v2659
        %v2838 = vadd.f32 %v2304, %v2663
        %v2839 = vadd.f32 %v2305, %v2667
        %v2840 = vadd.f32 %v2306, %v2655
        %v2841 = vadd.f32 %v2307, %v2659
        %v2842 = vadd.f32 %v2308, %v2663
        %v2843 = vadd.f32 %v2309, %v2667
        %v2844 = vadd.f32 %v2310, %v2655
        %v2845 = vadd.f32 %v2311, %v2659
        %v2846 = vadd.f32 %v2312, %v2663
        %v2847 = vadd.f32 %v2313, %v2667
        %v2848 = vadd.f32 %v2314, %v2655
        %v2849 = vadd.f32 %v2315, %v2659
        %v2850 = vadd.f32 %v2316, %v2663
        %v2851 = vadd.f32 %v2317, %v2667
        %v2852 = vadd.f32 %v2318, %v2655
        %v2853 = vadd.f32 %v2319, %v2659
        %v2854 = vadd.f32 %v2320, %v2663
        %v2855 = vadd.f32 %v2321, %v2667
        %v2856 = vadd.f32 %v2322, %v2655
        %v2857 = vadd.f32 %v2323, %v2659
        %v2858 = vadd.f32 %v2324, %v2663
        %v2859 = vadd.f32 %v2325, %v2667
        %v2860 = vadd.f32 %v2326, %v2655
        %v2861 = vadd.f32 %v2327, %v2659
        %v2862 = vadd.f32 %v2328, %v2663
        %v2863 = vadd.f32 %v2329, %v2667
        %v2864 = vadd.f32 %v2330, %v2655
        %v2865 = vadd.f32 %v2331, %v2659
        %v2866 = vadd.f32 %v2332, %v2663
        %v2867 = vadd.f32 %v2333, %v2667
        %v2868 = vadd.f32 %v2334, %v2655
        %v2869 = vadd.f32 %v2335, %v2659
        %v2870 = vadd.f32 %v2336, %v2663
        %v2871 = vadd.f32 %v2337, %v2667
        %v2872 = vadd.f32 %v2338, %v2655
        %v2873 = vadd.f32 %v2339, %v2659
        %v2874 = vadd.f32 %v2340, %v2663
        %v2875 = vadd.f32 %v2341, %v2667
        %v2876 = vadd.f32 %v2342, %v2655
        %v2877 = vadd.f32 %v2343, %v2659
        %v2878 = vadd.f32 %v2344, %v2663
        %v2879 = vadd.f32 %v2345, %v2667
        %v2880 = vadd.f32 %v2346, %v2655
        %v2881 = vadd.f32 %v2347, %v2659
        %v2882 = vadd.f32 %v2348, %v2663
        %v2883 = vadd.f32 %v2349, %v2667
        %v2884 = vadd.f32 %v2350, %v2655
        %v2885 = vadd.f32 %v2351, %v2659
        %v2886 = vadd.f32 %v2352, %v2663
        %v2887 = vadd.f32 %v2353, %v2667
        %v2888 = vadd.f32 %v2354, %v2655
        %v2889 = vadd.f32 %v2355, %v2659
        %v2890 = vadd.f32 %v2356, %v2663
        %v2891 = vadd.f32 %v2357, %v2667
        %v2892 = vadd.f32 %v2358, %v2655
        %v2893 = vadd.f32 %v2359, %v2659
        %v2894 = vadd.f32 %v2360, %v2663
        %v2895 = vadd.f32 %v2361, %v2667
        %v2896 = vadd.f32 %v2362, %v2655
        %v2897 = vadd.f32 %v2363, %v2659
        %v2898 = vadd.f32 %v2364, %v2663
        %v2899 = vadd.f32 %v2365, %v2667
        %v2900 = vadd.f32 %v2366, %v2655
        %v2901 = vadd.f32 %v2367, %v2659
        %v2902 = vadd.f32 %v2368, %v2663
        %v2903 = vadd.f32 %v2369, %v2667
        %v2904 = vadd.f32 %v2370, %v2655
        %v2905 = vadd.f32 %v2371, %v2659
        %v2906 = vadd.f32 %v2372, %v2663
        %v2907 = vadd.f32 %v2373, %v2667
        %v2908 = vadd.f32 %v2374, %v2655
        %v2909 = vadd.f32 %v2375, %v2659
        %v2910 = vadd.f32 %v2376, %v2663
        %v2911 = vadd.f32 %v2377, %v2667
        %v2912 = vadd.f32 %v2378, %v2655
        %v2913 = vadd.f32 %v2379, %v2659
        %v2914 = vadd.f32 %v2380, %v2663
        %v2915 = vadd.f32 %v2381, %v2667
        %v2916 = vadd.f32 %v2382, %v2655
        %v2917 = vadd.f32 %v2383, %v2659
        %v2918 = vadd.f32 %v2384, %v2663
        %v2919 = vadd.f32 %v2385, %v2667
        %v2920 = vadd.f32 %v2386, %v2655
        %v2921 = vadd.f32 %v2387, %v2659
        %v2922 = vadd.f32 %v2388, %v2663
        %v2923 = vadd.f32 %v2389, %v2667
        %v2924 = vadd.f32 %v2390, %v2655
        %v2925 = vadd.f32 %v2391, %v2659
        %v2926 = vadd.f32 %v2392, %v2663
        %v2927 = vadd.f32 %v2393, %v2667
        %v2928 = vadd.f32 %v2394, %v2655
        %v2929 = vadd.f32 %v2395, %v2659
        %v2930 = vadd.f32 %v2396, %v2663
        %v2931 = vadd.f32 %v2397, %v2667
        %v2932 = vadd.f32 %v2398, %v2655
        %v2933 = vadd.f32 %v2399, %v2659
        %v2934 = vadd.f32 %v2400, %v2663
        %v2935 = vadd.f32 %v2401, %v2667
        %v2936 = vadd.f32 %v2402, %v2655
        %v2937 = vadd.f32 %v2403, %v2659
        %v2938 = vadd.f32 %v2404, %v2663
        %v2939 = vadd.f32 %v2405, %v2667
        %v2940 = vadd.f32 %v2406, %v2655
        %v2941 = vadd.f32 %v2407, %v2659
        %v2942 = vadd.f32 %v2408, %v2663
        %v2943 = vadd.f32 %v2409, %v2667
        %v2944 = vadd.f32 %v2410, %v2655
        %v2945 = vadd.f32 %v2411, %v2659
        %v2946 = vadd.f32 %v2412, %v2663
        %v2947 = vadd.f32 %v2413, %v2667
        %v2948 = vadd.f32 %v2414, %v2655
        %v2949 = vadd.f32 %v2415, %v2659
        %v2950 = vadd.f32 %v2416, %v2663
        %v2951 = vadd.f32 %v2417, %v2667
        %v2952 = vadd.f32 %v2418, %v2655
        %v2953 = vadd.f32 %v2419, %v2659
        %v2954 = vadd.f32 %v2420, %v2663
        %v2955 = vadd.f32 %v2421, %v2667
        %v2956 = vadd.f32 %v2422, %v2655
        %v2957 = vadd.f32 %v2423, %v2659
        %v2958 = vadd.f32 %v2424, %v2663
        %v2959 = vadd.f32 %v2425, %v2667
        %v2960 = vadd.f32 %v2426, %v2655
        %v2961 = vadd.f32 %v2427, %v2659
        %v2962 = vadd.f32 %v2428, %v2663
        %v2963 = vadd.f32 %v2429, %v2667
        %v2964 = vadd.f32 %v2430, %v2655
        %v2965 = vadd.f32 %v2431, %v2659
        %v2966 = vadd.f32 %v2432, %v2663
        %v2967 = vadd.f32 %v2433, %v2667
        %v2968 = vadd.f32 %v2434, %v2655
        %v2969 = vadd.f32 %v2435, %v2659
        %v2970 = vadd.f32 %v2436, %v2663
        %v2971 = vadd.f32 %v2437, %v2667
        %v2972 = vadd.f32 %v2438, %v2655
        %v2973 = vadd.f32 %v2439, %v2659
        %v2974 = vadd.f32 %v2440, %v2663
        %v2975 = vadd.f32 %v2441, %v2667
        %v2976 = vadd.f32 %v2442, %v2655
        %v2977 = vadd.f32 %v2443, %v2659
        %v2978 = vadd.f32 %v2444, %v2663
        %v2979 = vadd.f32 %v2445, %v2667
        %v2980 = vadd.f32 %v2446, %v2655
        %v2981 = vadd.f32 %v2447, %v2659
        %v2982 = vadd.f32 %v2448, %v2663
        %v2983 = vadd.f32 %v2449, %v2667
        %v2984 = vadd.f32 %v2450, %v2655
        %v2985 = vadd.f32 %v2451, %v2659
        %v2986 = vadd.f32 %v2452, %v2663
        %v2987 = vadd.f32 %v2453, %v2667
        %v2988 = vadd.f32 %v2454, %v2655
        %v2989 = vadd.f32 %v2455, %v2659
        %v2990 = vadd.f32 %v2456, %v2663
        %v2991 = vadd.f32 %v2457, %v2667
        %v2992 = vadd.f32 %v2458, %v2655
        %v2993 = vadd.f32 %v2459, %v2659
        %v2994 = vadd.f32 %v2460, %v2663
        %v2995 = vadd.f32 %v2461, %v2667
        %v2996 = vadd.f32 %v2462, %v2655
        %v2997 = vadd.f32 %v2463, %v2659
        %v2998 = vadd.f32 %v2464, %v2663
        %v2999 = vadd.f32 %v2465, %v2667
        %v3000 = vadd.f32 %v2466, %v2655
        %v3001 = vadd.f32 %v2467, %v2659
        %v3002 = vadd.f32 %v2468, %v2663
        %v3003 = vadd.f32 %v2469, %v2667
        %v3004 = vadd.f32 %v2470, %v2655
        %v3005 = vadd.f32 %v2471, %v2659
        %v3006 = vadd.f32 %v2472, %v2663
        %v3007 = vadd.f32 %v2473, %v2667
        %v3008 = vadd.f32 %v2474, %v2655
        %v3009 = vadd.f32 %v2475, %v2659
        %v3010 = vadd.f32 %v2476, %v2663
        %v3011 = vadd.f32 %v2477, %v2667
        %v3012 = vadd.f32 %v2478, %v2655
        %v3013 = vadd.f32 %v2479, %v2659
        %v3014 = vadd.f32 %v2480, %v2663
        %v3015 = vadd.f32 %v2481, %v2667
        %v3016 = vadd.f32 %v2482, %v2655
        %v3017 = vadd.f32 %v2483, %v2659
        %v3018 = vadd.f32 %v2484, %v2663
        %v3019 = vadd.f32 %v2485, %v2667
        %v3020 = vadd.f32 %v2486, %v2655
        %v3021 = vadd.f32 %v2487, %v2659
        %v3022 = vadd.f32 %v2488, %v2663
        %v3023 = vadd.f32 %v2489, %v2667
        %v3024 = vadd.f32 %v2490, %v2655
        %v3025 = vadd.f32 %v2491, %v2659
        %v3026 = vadd.f32 %v2492, %v2663
        %v3027 = vadd.f32 %v2493, %v2667
        %v3028 = vadd.f32 %v2494, %v2655
        %v3029 = vadd.f32 %v2495, %v2659
        %v3030 = vadd.f32 %v2496, %v2663
        %v3031 = vadd.f32 %v2497, %v2667
        %v3032 = vadd.f32 %v2498, %v2655
        %v3033 = vadd.f32 %v2499, %v2659
        %v3034 = vadd.f32 %v2500, %v2663
        %v3035 = vadd.f32 %v2501, %v2667
        %v3036 = vadd.f32 %v2502, %v2655
        %v3037 = vadd.f32 %v2503, %v2659
        %v3038 = vadd.f32 %v2504, %v2663
        %v3039 = vadd.f32 %v2505, %v2667
        %v3040 = vadd.f32 %v2506, %v2655
        %v3041 = vadd.f32 %v2507, %v2659
        %v3042 = vadd.f32 %v2508, %v2663
        %v3043 = vadd.f32 %v2509, %v2667
        %v3044 = vadd.f32 %v2510, %v2655
        %v3045 = vadd.f32 %v2511, %v2659
        %v3046 = vadd.f32 %v2512, %v2663
        %v3047 = vadd.f32 %v2513, %v2667
        %v3048 = vadd.f32 %v2514, %v2655
        %v3049 = vadd.f32 %v2515, %v2659
        %v3050 = vadd.f32 %v2516, %v2663
        %v3051 = vadd.f32 %v2517, %v2667
        %v3052 = vadd.f32 %v2518, %v2655
        %v3053 = vadd.f32 %v2519, %v2659
        %v3054 = vadd.f32 %v2520, %v2663
        %v3055 = vadd.f32 %v2521, %v2667
        %v3056 = vadd.f32 %v2522, %v2655
        %v3057 = vadd.f32 %v2523, %v2659
        %v3058 = vadd.f32 %v2524, %v2663
        %v3059 = vadd.f32 %v2525, %v2667
        %v3060 = vadd.f32 %v2526, %v2655
        %v3061 = vadd.f32 %v2527, %v2659
        %v3062 = vadd.f32 %v2528, %v2663
        %v3063 = vadd.f32 %v2529, %v2667
        %v3064 = vadd.f32 %v2530, %v2655
        %v3065 = vadd.f32 %v2531, %v2659
        %v3066 = vadd.f32 %v2532, %v2663
        %v3067 = vadd.f32 %v2533, %v2667
        %v3068 = vadd.f32 %v2534, %v2655
        %v3069 = vadd.f32 %v2535, %v2659
        %v3070 = vadd.f32 %v2536, %v2663
        %v3071 = vadd.f32 %v2537, %v2667
        %v3072 = vadd.f32 %v2538, %v2655
        %v3073 = vadd.f32 %v2539, %v2659
        %v3074 = vadd.f32 %v2540, %v2663
        %v3075 = vadd.f32 %v2541, %v2667
        %v3076 = vadd.f32 %v2542, %v2655
        %v3077 = vadd.f32 %v2543, %v2659
        %v3078 = vadd.f32 %v2544, %v2663
        %v3079 = vadd.f32 %v2545, %v2667
        %v3080 = vadd.f32 %v2546, %v2655
        %v3081 = vadd.f32 %v2547, %v2659
        %v3082 = vadd.f32 %v2548, %v2663
        %v3083 = vadd.f32 %v2549, %v2667
        %v3084 = vadd.f32 %v2550, %v2655
        %v3085 = vadd.f32 %v2551, %v2659
        %v3086 = vadd.f32 %v2552, %v2663
        %v3087 = vadd.f32 %v2553, %v2667
        %v3088 = vadd.f32 %v2554, %v2655
        %v3089 = vadd.f32 %v2555, %v2659
        %v3090 = vadd.f32 %v2556, %v2663
        %v3091 = vadd.f32 %v2557, %v2667
        %v3092 = vadd.f32 %v2558, %v2655
        %v3093 = vadd.f32 %v2559, %v2659
        %v3094 = vadd.f32 %v2560, %v2663
        %v3095 = vadd.f32 %v2561, %v2667
        %v3096 = vadd.f32 %v2562, %v2655
        %v3097 = vadd.f32 %v2563, %v2659
        %v3098 = vadd.f32 %v2564, %v2663
        %v3099 = vadd.f32 %v2565, %v2667
        %v3100 = vadd.f32 %v2566, %v2655
        %v3101 = vadd.f32 %v2567, %v2659
        %v3102 = vadd.f32 %v2568, %v2663
        %v3103 = vadd.f32 %v2569, %v2667
        %v3104 = vadd.f32 %v2570, %v2655
        %v3105 = vadd.f32 %v2571, %v2659
        %v3106 = vadd.f32 %v2572, %v2663
        %v3107 = vadd.f32 %v2573, %v2667
        %v3108 = vadd.f32 %v2574, %v2655
        %v3109 = vadd.f32 %v2575, %v2659
        %v3110 = vadd.f32 %v2576, %v2663
        %v3111 = vadd.f32 %v2577, %v2667
        %v3112 = vadd.f32 %v2578, %v2655
        %v3113 = vadd.f32 %v2579, %v2659
        %v3114 = vadd.f32 %v2580, %v2663
        %v3115 = vadd.f32 %v2581, %v2667
        %v3116 = vadd.f32 %v2582, %v2655
        %v3117 = vadd.f32 %v2583, %v2659
        %v3118 = vadd.f32 %v2584, %v2663
        %v3119 = vadd.f32 %v2585, %v2667
        %v3120 = vadd.f32 %v2586, %v2655
        %v3121 = vadd.f32 %v2587, %v2659
        %v3122 = vadd.f32 %v2588, %v2663
        %v3123 = vadd.f32 %v2589, %v2667
        %v3124 = vadd.f32 %v2590, %v2655
        %v3125 = vadd.f32 %v2591, %v2659
        %v3126 = vadd.f32 %v2592, %v2663
        %v3127 = vadd.f32 %v2593, %v2667
        %v3128 = vadd.f32 %v2594, %v2655
        %v3129 = vadd.f32 %v2595, %v2659
        %v3130 = vadd.f32 %v2596, %v2663
        %v3131 = vadd.f32 %v2597, %v2667
        %v3132 = vadd.f32 %v2598, %v2655
        %v3133 = vadd.f32 %v2599, %v2659
        %v3134 = vadd.f32 %v2600, %v2663
        %v3135 = vadd.f32 %v2601, %v2667
        %v3136 = vadd.f32 %v2602, %v2655
        %v3137 = vadd.f32 %v2603, %v2659
        %v3138 = vadd.f32 %v2604, %v2663
        %v3139 = vadd.f32 %v2605, %v2667
        %v3140 = vadd.f32 %v2606, %v2655
        %v3141 = vadd.f32 %v2607, %v2659
        %v3142 = vadd.f32 %v2608, %v2663
        %v3143 = vadd.f32 %v2609, %v2667
        %v3144 = vadd.f32 %v2610, %v2655
        %v3145 = vadd.f32 %v2611, %v2659
        %v3146 = vadd.f32 %v2612, %v2663
        %v3147 = vadd.f32 %v2613, %v2667
        %v3148 = vadd.f32 %v2614, %v2655
        %v3149 = vadd.f32 %v2615, %v2659
        %v3150 = vadd.f32 %v2616, %v2663
        %v3151 = vadd.f32 %v2617, %v2667
        %v3152 = vadd.f32 %v2618, %v2655
        %v3153 = vadd.f32 %v2619, %v2659
        %v3154 = vadd.f32 %v2620, %v2663
        %v3155 = vadd.f32 %v2621, %v2667
        %v3156 = vadd.f32 %v2622, %v2655
        %v3157 = vadd.f32 %v2623, %v2659
        %v3158 = vadd.f32 %v2624, %v2663
        %v3159 = vadd.f32 %v2625, %v2667
        %v3160 = vadd.f32 %v2626, %v2655
        %v3161 = vadd.f32 %v2627, %v2659
        %v3162 = vadd.f32 %v2628, %v2663
        %v3163 = vadd.f32 %v2629, %v2667
        %v3164 = vadd.f32 %v2630, %v2655
        %v3165 = vadd.f32 %v2631, %v2659
        %v3166 = vadd.f32 %v2632, %v2663
        %v3167 = vadd.f32 %v2633, %v2667
        %v3168 = vadd.f32 %v2634, %v2655
        %v3169 = vadd.f32 %v2635, %v2659
        %v3170 = vadd.f32 %v2636, %v2663
        %v3171 = vadd.f32 %v2637, %v2667
        %v3172 = vadd.f32 %v2638, %v2655
        %v3173 = vadd.f32 %v2639, %v2659
        %v3174 = vadd.f32 %v2640, %v2663
        %v3175 = vadd.f32 %v2641, %v2667
        %v3176 = vadd.f32 %v2642, %v2655
        %v3177 = vadd.f32 %v2643, %v2659
        %v3178 = vadd.f32 %v2644, %v2663
        %v3179 = vadd.f32 %v2645, %v2667
        %v3180 = vadd.f32 %v2646, %v2655
        %v3181 = vadd.f32 %v2647, %v2659
        %v3182 = vadd.f32 %v2648, %v2663
        %v3183 = vadd.f32 %v2649, %v2667
        %v3184 = vmax.f32 %v2672, 0.0
        %v3185 = vmax.f32 %v2673, 0.0
        %v3186 = vmax.f32 %v2674, 0.0
        %v3187 = vmax.f32 %v2675, 0.0
        %v3188 = vmax.f32 %v2676, 0.0
        %v3189 = vmax.f32 %v2677, 0.0
        %v3190 = vmax.f32 %v2678, 0.0
        %v3191 = vmax.f32 %v2679, 0.0
        %v3192 = vmax.f32 %v2680, 0.0
        %v3193 = vmax.f32 %v2681, 0.0
        %v3194 = vmax.f32 %v2682, 0.0
        %v3195 = vmax.f32 %v2683, 0.0
        %v3196 = vmax.f32 %v2684, 0.0
        %v3197 = vmax.f32 %v2685, 0.0
        %v3198 = vmax.f32 %v2686, 0.0
        %v3199 = vmax.f32 %v2687, 0.0
        %v3200 = vmax.f32 %v2688, 0.0
        %v3201 = vmax.f32 %v2689, 0.0
        %v3202 = vmax.f32 %v2690, 0.0
        %v3203 = vmax.f32 %v2691, 0.0
        %v3204 = vmax.f32 %v2692, 0.0
        %v3205 = vmax.f32 %v2693, 0.0
        %v3206 = vmax.f32 %v2694, 0.0
        %v3207 = vmax.f32 %v2695, 0.0
        %v3208 = vmax.f32 %v2696, 0.0
        %v3209 = vmax.f32 %v2697, 0.0
        %v3210 = vmax.f32 %v2698, 0.0
        %v3211 = vmax.f32 %v2699, 0.0
        %v3212 = vmax.f32 %v2700, 0.0
        %v3213 = vmax.f32 %v2701, 0.0
        %v3214 = vmax.f32 %v2702, 0.0
        %v3215 = vmax.f32 %v2703, 0.0
        %v3216 = vmax.f32 %v2704, 0.0
        %v3217 = vmax.f32 %v2705, 0.0
        %v3218 = vmax.f32 %v2706, 0.0
        %v3219 = vmax.f32 %v2707, 0.0
        %v3220 = vmax.f32 %v2708, 0.0
        %v3221 = vmax.f32 %v2709, 0.0
        %v3222 = vmax.f32 %v2710, 0.0
        %v3223 = vmax.f32 %v2711, 0.0
        %v3224 = vmax.f32 %v2712, 0.0
        %v3225 = vmax.f32 %v2713, 0.0
        %v3226 = vmax.f32 %v2714, 0.0
        %v3227 = vmax.f32 %v2715, 0.0
        %v3228 = vmax.f32 %v2716, 0.0
        %v3229 = vmax.f32 %v2717, 0.0
        %v3230 = vmax.f32 %v2718, 0.0
        %v3231 = vmax.f32 %v2719, 0.0
        %v3232 = vmax.f32 %v2720, 0.0
        %v3233 = vmax.f32 %v2721, 0.0
        %v3234 = vmax.f32 %v2722, 0.0
        %v3235 = vmax.f32 %v2723, 0.0
        %v3236 = vmax.f32 %v2724, 0.0
        %v3237 = vmax.f32 %v2725, 0.0
        %v3238 = vmax.f32 %v2726, 0.0
        %v3239 = vmax.f32 %v2727, 0.0
        %v3240 = vmax.f32 %v2728, 0.0
        %v3241 = vmax.f32 %v2729, 0.0
        %v3242 = vmax.f32 %v2730, 0.0
        %v3243 = vmax.f32 %v2731, 0.0
        %v3244 = vmax.f32 %v2732, 0.0
        %v3245 = vmax.f32 %v2733, 0.0
        %v3246 = vmax.f32 %v2734, 0.0
        %v3247 = vmax.f32 %v2735, 0.0
        %v3248 = vmax.f32 %v2736, 0.0
        %v3249 = vmax.f32 %v2737, 0.0
        %v3250 = vmax.f32 %v2738, 0.0
        %v3251 = vmax.f32 %v2739, 0.0
        %v3252 = vmax.f32 %v2740, 0.0
        %v3253 = vmax.f32 %v2741, 0.0
        %v3254 = vmax.f32 %v2742, 0.0
        %v3255 = vmax.f32 %v2743, 0.0
        %v3256 = vmax.f32 %v2744, 0.0
        %v3257 = vmax.f32 %v2745, 0.0
        %v3258 = vmax.f32 %v2746, 0.0
        %v3259 = vmax.f32 %v2747, 0.0
        %v3260 = vmax.f32 %v2748, 0.0
        %v3261 = vmax.f32 %v2749, 0.0
        %v3262 = vmax.f32 %v2750, 0.0
        %v3263 = vmax.f32 %v2751, 0.0
        %v3264 = vmax.f32 %v2752, 0.0
        %v3265 = vmax.f32 %v2753, 0.0
        %v3266 = vmax.f32 %v2754, 0.0
        %v3267 = vmax.f32 %v2755, 0.0
        %v3268 = vmax.f32 %v2756, 0.0
        %v3269 = vmax.f32 %v2757, 0.0
        %v3270 = vmax.f32 %v2758, 0.0
        %v3271 = vmax.f32 %v2759, 0.0
        %v3272 = vmax.f32 %v2760, 0.0
        %v3273 = vmax.f32 %v2761, 0.0
        %v3274 = vmax.f32 %v2762, 0.0
        %v3275 = vmax.f32 %v2763, 0.0
        %v3276 = vmax.f32 %v2764, 0.0
        %v3277 = vmax.f32 %v2765, 0.0
        %v3278 = vmax.f32 %v2766, 0.0
        %v3279 = vmax.f32 %v2767, 0.0
        %v3280 = vmax.f32 %v2768, 0.0
        %v3281 = vmax.f32 %v2769, 0.0
        %v3282 = vmax.f32 %v2770, 0.0
        %v3283 = vmax.f32 %v2771, 0.0
        %v3284 = vmax.f32 %v2772, 0.0
        %v3285 = vmax.f32 %v2773, 0.0
        %v3286 = vmax.f32 %v2774, 0.0
        %v3287 = vmax.f32 %v2775, 0.0
        %v3288 = vmax.f32 %v2776, 0.0
        %v3289 = vmax.f32 %v2777, 0.0
        %v3290 = vmax.f32 %v2778, 0.0
        %v3291 = vmax.f32 %v2779, 0.0
        %v3292 = vmax.f32 %v2780, 0.0
        %v3293 = vmax.f32 %v2781, 0.0
        %v3294 = vmax.f32 %v2782, 0.0
        %v3295 = vmax.f32 %v2783, 0.0
        %v3296 = vmax.f32 %v2784, 0.0
        %v3297 = vmax.f32 %v2785, 0.0
        %v3298 = vmax.f32 %v2786, 0.0
        %v3299 = vmax.f32 %v2787, 0.0
        %v3300 = vmax.f32 %v2788, 0.0
        %v3301 = vmax.f32 %v2789, 0.0
        %v3302 = vmax.f32 %v2790, 0.0
        %v3303 = vmax.f32 %v2791, 0.0
        %v3304 = vmax.f32 %v2792, 0.0
        %v3305 = vmax.f32 %v2793, 0.0
        %v3306 = vmax.f32 %v2794, 0.0
        %v3307 = vmax.f32 %v2795, 0.0
        %v3308 = vmax.f32 %v2796, 0.0
        %v3309 = vmax.f32 %v2797, 0.0
        %v3310 = vmax.f32 %v2798, 0.0
        %v3311 = vmax.f32 %v2799, 0.0
        %v3312 = vmax.f32 %v2800, 0.0
        %v3313 = vmax.f32 %v2801, 0.0
        %v3314 = vmax.f32 %v2802, 0.0
        %v3315 = vmax.f32 %v2803, 0.0
        %v3316 = vmax.f32 %v2804, 0.0
        %v3317 = vmax.f32 %v2805, 0.0
        %v3318 = vmax.f32 %v2806, 0.0
        %v3319 = vmax.f32 %v2807, 0.0
        %v3320 = vmax.f32 %v2808, 0.0
        %v3321 = vmax.f32 %v2809, 0.0
        %v3322 = vmax.f32 %v2810, 0.0
        %v3323 = vmax.f32 %v2811, 0.0
        %v3324 = vmax.f32 %v2812, 0.0
        %v3325 = vmax.f32 %v2813, 0.0
        %v3326 = vmax.f32 %v2814, 0.0
        %v3327 = vmax.f32 %v2815, 0.0
        %v3328 = vmax.f32 %v2816, 0.0
        %v3329 = vmax.f32 %v2817, 0.0
        %v3330 = vmax.f32 %v2818, 0.0
        %v3331 = vmax.f32 %v2819, 0.0
        %v3332 = vmax.f32 %v2820, 0.0
        %v3333 = vmax.f32 %v2821, 0.0
        %v3334 = vmax.f32 %v2822, 0.0
        %v3335 = vmax.f32 %v2823, 0.0
        %v3336 = vmax.f32 %v2824, 0.0
        %v3337 = vmax.f32 %v2825, 0.0
        %v3338 = vmax.f32 %v2826, 0.0
        %v3339 = vmax.f32 %v2827, 0.0
        %v3340 = vmax.f32 %v2828, 0.0
        %v3341 = vmax.f32 %v2829, 0.0
        %v3342 = vmax.f32 %v2830, 0.0
        %v3343 = vmax.f32 %v2831, 0.0
        %v3344 = vmax.f32 %v2832, 0.0
        %v3345 = vmax.f32 %v2833, 0.0
        %v3346 = vmax.f32 %v2834, 0.0
        %v3347 = vmax.f32 %v2835, 0.0
        %v3348 = vmax.f32 %v2836, 0.0
        %v3349 = vmax.f32 %v2837, 0.0
        %v3350 = vmax.f32 %v2838, 0.0
        %v3351 = vmax.f32 %v2839, 0.0
        %v3352 = vmax.f32 %v2840, 0.0
        %v3353 = vmax.f32 %v2841, 0.0
        %v3354 = vmax.f32 %v2842, 0.0
        %v3355 = vmax.f32 %v2843, 0.0
        %v3356 = vmax.f32 %v2844, 0.0
        %v3357 = vmax.f32 %v2845, 0.0
        %v3358 = vmax.f32 %v2846, 0.0
        %v3359 = vmax.f32 %v2847, 0.0
        %v3360 = vmax.f32 %v2848, 0.0
        %v3361 = vmax.f32 %v2849, 0.0
        %v3362 = vmax.f32 %v2850, 0.0
        %v3363 = vmax.f32 %v2851, 0.0
        %v3364 = vmax.f32 %v2852, 0.0
        %v3365 = vmax.f32 %v2853, 0.0
        %v3366 = vmax.f32 %v2854, 0.0
        %v3367 = vmax.f32 %v2855, 0.0
        %v3368 = vmax.f32 %v2856, 0.0
        %v3369 = vmax.f32 %v2857, 0.0
        %v3370 = vmax.f32 %v2858, 0.0
        %v3371 = vmax.f32 %v2859, 0.0
        %v3372 = vmax.f32 %v2860, 0.0
        %v3373 = vmax.f32 %v2861, 0.0
        %v3374 = vmax.f32 %v2862, 0.0
        %v3375 = vmax.f32 %v2863, 0.0
        %v3376 = vmax.f32 %v2864, 0.0
        %v3377 = vmax.f32 %v2865, 0.0
        %v3378 = vmax.f32 %v2866, 0.0
        %v3379 = vmax.f32 %v2867, 0.0
        %v3380 = vmax.f32 %v2868, 0.0
        %v3381 = vmax.f32 %v2869, 0.0
        %v3382 = vmax.f32 %v2870, 0.0
        %v3383 = vmax.f32 %v2871, 0.0
        %v3384 = vmax.f32 %v2872, 0.0
        %v3385 = vmax.f32 %v2873, 0.0
        %v3386 = vmax.f32 %v2874, 0.0
        %v3387 = vmax.f32 %v2875, 0.0
        %v3388 = vmax.f32 %v2876, 0.0
        %v3389 = vmax.f32 %v2877, 0.0
        %v3390 = vmax.f32 %v2878, 0.0
        %v3391 = vmax.f32 %v2879, 0.0
        %v3392 = vmax.f32 %v2880, 0.0
        %v3393 = vmax.f32 %v2881, 0.0
        %v3394 = vmax.f32 %v2882, 0.0
        %v3395 = vmax.f32 %v2883, 0.0
        %v3396 = vmax.f32 %v2884, 0.0
        %v3397 = vmax.f32 %v2885, 0.0
        %v3398 = vmax.f32 %v2886, 0.0
        %v3399 = vmax.f32 %v2887, 0.0
        %v3400 = vmax.f32 %v2888, 0.0
        %v3401 = vmax.f32 %v2889, 0.0
        %v3402 = vmax.f32 %v2890, 0.0
        %v3403 = vmax.f32 %v2891, 0.0
        %v3404 = vmax.f32 %v2892, 0.0
        %v3405 = vmax.f32 %v2893, 0.0
        %v3406 = vmax.f32 %v2894, 0.0
        %v3407 = vmax.f32 %v2895, 0.0
        %v3408 = vmax.f32 %v2896, 0.0
        %v3409 = vmax.f32 %v2897, 0.0
        %v3410 = vmax.f32 %v2898, 0.0
        %v3411 = vmax.f32 %v2899, 0.0
        %v3412 = vmax.f32 %v2900, 0.0
        %v3413 = vmax.f32 %v2901, 0.0
        %v3414 = vmax.f32 %v2902, 0.0
        %v3415 = vmax.f32 %v2903, 0.0
        %v3416 = vmax.f32 %v2904, 0.0
        %v3417 = vmax.f32 %v2905, 0.0
        %v3418 = vmax.f32 %v2906, 0.0
        %v3419 = vmax.f32 %v2907, 0.0
        %v3420 = vmax.f32 %v2908, 0.0
        %v3421 = vmax.f32 %v2909, 0.0
        %v3422 = vmax.f32 %v2910, 0.0
        %v3423 = vmax.f32 %v2911, 0.0
        %v3424 = vmax.f32 %v2912, 0.0
        %v3425 = vmax.f32 %v2913, 0.0
        %v3426 = vmax.f32 %v2914, 0.0
        %v3427 = vmax.f32 %v2915, 0.0
        %v3428 = vmax.f32 %v2916, 0.0
        %v3429 = vmax.f32 %v2917, 0.0
        %v3430 = vmax.f32 %v2918, 0.0
        %v3431 = vmax.f32 %v2919, 0.0
        %v3432 = vmax.f32 %v2920, 0.0
        %v3433 = vmax.f32 %v2921, 0.0
        %v3434 = vmax.f32 %v2922, 0.0
        %v3435 = vmax.f32 %v2923, 0.0
        %v3436 = vmax.f32 %v2924, 0.0
        %v3437 = vmax.f32 %v2925, 0.0
        %v3438 = vmax.f32 %v2926, 0.0
        %v3439 = vmax.f32 %v2927, 0.0
        %v3440 = vmax.f32 %v2928, 0.0
        %v3441 = vmax.f32 %v2929, 0.0
        %v3442 = vmax.f32 %v2930, 0.0
        %v3443 = vmax.f32 %v2931, 0.0
        %v3444 = vmax.f32 %v2932, 0.0
        %v3445 = vmax.f32 %v2933, 0.0
        %v3446 = vmax.f32 %v2934, 0.0
        %v3447 = vmax.f32 %v2935, 0.0
        %v3448 = vmax.f32 %v2936, 0.0
        %v3449 = vmax.f32 %v2937, 0.0
        %v3450 = vmax.f32 %v2938, 0.0
        %v3451 = vmax.f32 %v2939, 0.0
        %v3452 = vmax.f32 %v2940, 0.0
        %v3453 = vmax.f32 %v2941, 0.0
        %v3454 = vmax.f32 %v2942, 0.0
        %v3455 = vmax.f32 %v2943, 0.0
        %v3456 = vmax.f32 %v2944, 0.0
        %v3457 = vmax.f32 %v2945, 0.0
        %v3458 = vmax.f32 %v2946, 0.0
        %v3459 = vmax.f32 %v2947, 0.0
        %v3460 = vmax.f32 %v2948, 0.0
        %v3461 = vmax.f32 %v2949, 0.0
        %v3462 = vmax.f32 %v2950, 0.0
        %v3463 = vmax.f32 %v2951, 0.0
        %v3464 = vmax.f32 %v2952, 0.0
        %v3465 = vmax.f32 %v2953, 0.0
        %v3466 = vmax.f32 %v2954, 0.0
        %v3467 = vmax.f32 %v2955, 0.0
        %v3468 = vmax.f32 %v2956, 0.0
        %v3469 = vmax.f32 %v2957, 0.0
        %v3470 = vmax.f32 %v2958, 0.0
        %v3471 = vmax.f32 %v2959, 0.0
        %v3472 = vmax.f32 %v2960, 0.0
        %v3473 = vmax.f32 %v2961, 0.0
        %v3474 = vmax.f32 %v2962, 0.0
        %v3475 = vmax.f32 %v2963, 0.0
        %v3476 = vmax.f32 %v2964, 0.0
        %v3477 = vmax.f32 %v2965, 0.0
        %v3478 = vmax.f32 %v2966, 0.0
        %v3479 = vmax.f32 %v2967, 0.0
        %v3480 = vmax.f32 %v2968, 0.0
        %v3481 = vmax.f32 %v2969, 0.0
        %v3482 = vmax.f32 %v2970, 0.0
        %v3483 = vmax.f32 %v2971, 0.0
        %v3484 = vmax.f32 %v2972, 0.0
        %v3485 = vmax.f32 %v2973, 0.0
        %v3486 = vmax.f32 %v2974, 0.0
        %v3487 = vmax.f32 %v2975, 0.0
        %v3488 = vmax.f32 %v2976, 0.0
        %v3489 = vmax.f32 %v2977, 0.0
        %v3490 = vmax.f32 %v2978, 0.0
        %v3491 = vmax.f32 %v2979, 0.0
        %v3492 = vmax.f32 %v2980, 0.0
        %v3493 = vmax.f32 %v2981, 0.0
        %v3494 = vmax.f32 %v2982, 0.0
        %v3495 = vmax.f32 %v2983, 0.0
        %v3496 = vmax.f32 %v2984, 0.0
        %v3497 = vmax.f32 %v2985, 0.0
        %v3498 = vmax.f32 %v2986, 0.0
        %v3499 = vmax.f32 %v2987, 0.0
        %v3500 = vmax.f32 %v2988, 0.0
        %v3501 = vmax.f32 %v2989, 0.0
        %v3502 = vmax.f32 %v2990, 0.0
        %v3503 = vmax.f32 %v2991, 0.0
        %v3504 = vmax.f32 %v2992, 0.0
        %v3505 = vmax.f32 %v2993, 0.0
        %v3506 = vmax.f32 %v2994, 0.0
        %v3507 = vmax.f32 %v2995, 0.0
        %v3508 = vmax.f32 %v2996, 0.0
        %v3509 = vmax.f32 %v2997, 0.0
        %v3510 = vmax.f32 %v2998, 0.0
        %v3511 = vmax.f32 %v2999, 0.0
        %v3512 = vmax.f32 %v3000, 0.0
        %v3513 = vmax.f32 %v3001, 0.0
        %v3514 = vmax.f32 %v3002, 0.0
        %v3515 = vmax.f32 %v3003, 0.0
        %v3516 = vmax.f32 %v3004, 0.0
        %v3517 = vmax.f32 %v3005, 0.0
        %v3518 = vmax.f32 %v3006, 0.0
        %v3519 = vmax.f32 %v3007, 0.0
        %v3520 = vmax.f32 %v3008, 0.0
        %v3521 = vmax.f32 %v3009, 0.0
        %v3522 = vmax.f32 %v3010, 0.0
        %v3523 = vmax.f32 %v3011, 0.0
        %v3524 = vmax.f32 %v3012, 0.0
        %v3525 = vmax.f32 %v3013, 0.0
        %v3526 = vmax.f32 %v3014, 0.0
        %v3527 = vmax.f32 %v3015, 0.0
        %v3528 = vmax.f32 %v3016, 0.0
        %v3529 = vmax.f32 %v3017, 0.0
        %v3530 = vmax.f32 %v3018, 0.0
        %v3531 = vmax.f32 %v3019, 0.0
        %v3532 = vmax.f32 %v3020, 0.0
        %v3533 = vmax.f32 %v3021, 0.0
        %v3534 = vmax.f32 %v3022, 0.0
        %v3535 = vmax.f32 %v3023, 0.0
        %v3536 = vmax.f32 %v3024, 0.0
        %v3537 = vmax.f32 %v3025, 0.0
        %v3538 = vmax.f32 %v3026, 0.0
        %v3539 = vmax.f32 %v3027, 0.0
        %v3540 = vmax.f32 %v3028, 0.0
        %v3541 = vmax.f32 %v3029, 0.0
        %v3542 = vmax.f32 %v3030, 0.0
        %v3543 = vmax.f32 %v3031, 0.0
        %v3544 = vmax.f32 %v3032, 0.0
        %v3545 = vmax.f32 %v3033, 0.0
        %v3546 = vmax.f32 %v3034, 0.0
        %v3547 = vmax.f32 %v3035, 0.0
        %v3548 = vmax.f32 %v3036, 0.0
        %v3549 = vmax.f32 %v3037, 0.0
        %v3550 = vmax.f32 %v3038, 0.0
        %v3551 = vmax.f32 %v3039, 0.0
        %v3552 = vmax.f32 %v3040, 0.0
        %v3553 = vmax.f32 %v3041, 0.0
        %v3554 = vmax.f32 %v3042, 0.0
        %v3555 = vmax.f32 %v3043, 0.0
        %v3556 = vmax.f32 %v3044, 0.0
        %v3557 = vmax.f32 %v3045, 0.0
        %v3558 = vmax.f32 %v3046, 0.0
        %v3559 = vmax.f32 %v3047, 0.0
        %v3560 = vmax.f32 %v3048, 0.0
        %v3561 = vmax.f32 %v3049, 0.0
        %v3562 = vmax.f32 %v3050, 0.0
        %v3563 = vmax.f32 %v3051, 0.0
        %v3564 = vmax.f32 %v3052, 0.0
        %v3565 = vmax.f32 %v3053, 0.0
        %v3566 = vmax.f32 %v3054, 0.0
        %v3567 = vmax.f32 %v3055, 0.0
        %v3568 = vmax.f32 %v3056, 0.0
        %v3569 = vmax.f32 %v3057, 0.0
        %v3570 = vmax.f32 %v3058, 0.0
        %v3571 = vmax.f32 %v3059, 0.0
        %v3572 = vmax.f32 %v3060, 0.0
        %v3573 = vmax.f32 %v3061, 0.0
        %v3574 = vmax.f32 %v3062, 0.0
        %v3575 = vmax.f32 %v3063, 0.0
        %v3576 = vmax.f32 %v3064, 0.0
        %v3577 = vmax.f32 %v3065, 0.0
        %v3578 = vmax.f32 %v3066, 0.0
        %v3579 = vmax.f32 %v3067, 0.0
        %v3580 = vmax.f32 %v3068, 0.0
        %v3581 = vmax.f32 %v3069, 0.0
        %v3582 = vmax.f32 %v3070, 0.0
        %v3583 = vmax.f32 %v3071, 0.0
        %v3584 = vmax.f32 %v3072, 0.0
        %v3585 = vmax.f32 %v3073, 0.0
        %v3586 = vmax.f32 %v3074, 0.0
        %v3587 = vmax.f32 %v3075, 0.0
        %v3588 = vmax.f32 %v3076, 0.0
        %v3589 = vmax.f32 %v3077, 0.0
        %v3590 = vmax.f32 %v3078, 0.0
        %v3591 = vmax.f32 %v3079, 0.0
        %v3592 = vmax.f32 %v3080, 0.0
        %v3593 = vmax.f32 %v3081, 0.0
        %v3594 = vmax.f32 %v3082, 0.0
        %v3595 = vmax.f32 %v3083, 0.0
        %v3596 = vmax.f32 %v3084, 0.0
        %v3597 = vmax.f32 %v3085, 0.0
        %v3598 = vmax.f32 %v3086, 0.0
        %v3599 = vmax.f32 %v3087, 0.0
        %v3600 = vmax.f32 %v3088, 0.0
        %v3601 = vmax.f32 %v3089, 0.0
        %v3602 = vmax.f32 %v3090, 0.0
        %v3603 = vmax.f32 %v3091, 0.0
        %v3604 = vmax.f32 %v3092, 0.0
        %v3605 = vmax.f32 %v3093, 0.0
        %v3606 = vmax.f32 %v3094, 0.0
        %v3607 = vmax.f32 %v3095, 0.0
        %v3608 = vmax.f32 %v3096, 0.0
        %v3609 = vmax.f32 %v3097, 0.0
        %v3610 = vmax.f32 %v3098, 0.0
        %v3611 = vmax.f32 %v3099, 0.0
        %v3612 = vmax.f32 %v3100, 0.0
        %v3613 = vmax.f32 %v3101, 0.0
        %v3614 = vmax.f32 %v3102, 0.0
        %v3615 = vmax.f32 %v3103, 0.0
        %v3616 = vmax.f32 %v3104, 0.0
        %v3617 = vmax.f32 %v3105, 0.0
        %v3618 = vmax.f32 %v3106, 0.0
        %v3619 = vmax.f32 %v3107, 0.0
        %v3620 = vmax.f32 %v3108, 0.0
        %v3621 = vmax.f32 %v3109, 0.0
        %v3622 = vmax.f32 %v3110, 0.0
        %v3623 = vmax.f32 %v3111, 0.0
        %v3624 = vmax.f32 %v3112, 0.0
        %v3625 = vmax.f32 %v3113, 0.0
        %v3626 = vmax.f32 %v3114, 0.0
        %v3627 = vmax.f32 %v3115, 0.0
        %v3628 = vmax.f32 %v3116, 0.0
        %v3629 = vmax.f32 %v3117, 0.0
        %v3630 = vmax.f32 %v3118, 0.0
        %v3631 = vmax.f32 %v3119, 0.0
        %v3632 = vmax.f32 %v3120, 0.0
        %v3633 = vmax.f32 %v3121, 0.0
        %v3634 = vmax.f32 %v3122, 0.0
        %v3635 = vmax.f32 %v3123, 0.0
        %v3636 = vmax.f32 %v3124, 0.0
        %v3637 = vmax.f32 %v3125, 0.0
        %v3638 = vmax.f32 %v3126, 0.0
        %v3639 = vmax.f32 %v3127, 0.0
        %v3640 = vmax.f32 %v3128, 0.0
        %v3641 = vmax.f32 %v3129, 0.0
        %v3642 = vmax.f32 %v3130, 0.0
        %v3643 = vmax.f32 %v3131, 0.0
        %v3644 = vmax.f32 %v3132, 0.0
        %v3645 = vmax.f32 %v3133, 0.0
        %v3646 = vmax.f32 %v3134, 0.0
        %v3647 = vmax.f32 %v3135, 0.0
        %v3648 = vmax.f32 %v3136, 0.0
        %v3649 = vmax.f32 %v3137, 0.0
        %v3650 = vmax.f32 %v3138, 0.0
        %v3651 = vmax.f32 %v3139, 0.0
        %v3652 = vmax.f32 %v3140, 0.0
        %v3653 = vmax.f32 %v3141, 0.0
        %v3654 = vmax.f32 %v3142, 0.0
        %v3655 = vmax.f32 %v3143, 0.0
        %v3656 = vmax.f32 %v3144, 0.0
        %v3657 = vmax.f32 %v3145, 0.0
        %v3658 = vmax.f32 %v3146, 0.0
        %v3659 = vmax.f32 %v3147, 0.0
        %v3660 = vmax.f32 %v3148, 0.0
        %v3661 = vmax.f32 %v3149, 0.0
        %v3662 = vmax.f32 %v3150, 0.0
        %v3663 = vmax.f32 %v3151, 0.0
        %v3664 = vmax.f32 %v3152, 0.0
        %v3665 = vmax.f32 %v3153, 0.0
        %v3666 = vmax.f32 %v3154, 0.0
        %v3667 = vmax.f32 %v3155, 0.0
        %v3668 = vmax.f32 %v3156, 0.0
        %v3669 = vmax.f32 %v3157, 0.0
        %v3670 = vmax.f32 %v3158, 0.0
        %v3671 = vmax.f32 %v3159, 0.0
        %v3672 = vmax.f32 %v3160, 0.0
        %v3673 = vmax.f32 %v3161, 0.0
        %v3674 = vmax.f32 %v3162, 0.0
        %v3675 = vmax.f32 %v3163, 0.0
        %v3676 = vmax.f32 %v3164, 0.0
        %v3677 = vmax.f32 %v3165, 0.0
        %v3678 = vmax.f32 %v3166, 0.0
        %v3679 = vmax.f32 %v3167, 0.0
        %v3680 = vmax.f32 %v3168, 0.0
        %v3681 = vmax.f32 %v3169, 0.0
        %v3682 = vmax.f32 %v3170, 0.0
        %v3683 = vmax.f32 %v3171, 0.0
        %v3684 = vmax.f32 %v3172, 0.0
        %v3685 = vmax.f32 %v3173, 0.0
        %v3686 = vmax.f32 %v3174, 0.0
        %v3687 = vmax.f32 %v3175, 0.0
        %v3688 = vmax.f32 %v3176, 0.0
        %v3689 = vmax.f32 %v3177, 0.0
        %v3690 = vmax.f32 %v3178, 0.0
        %v3691 = vmax.f32 %v3179, 0.0
        %v3692 = vmax.f32 %v3180, 0.0
        %v3693 = vmax.f32 %v3181, 0.0
        %v3694 = vmax.f32 %v3182, 0.0
        %v3695 = vmax.f32 %v3183, 0.0
        %3696 = vst [vmem:[%s255] sm:$0xff] %v3184
        %3697 = vst [vmem:[%s255 + $0x8] sm:$0xff] %v3185
        %3698 = vst [vmem:[%s255 + $0x10] sm:$0xff] %v3188
        %3699 = vst [vmem:[%s255 + $0x18] sm:$0xff] %v3189
        %3700 = vst [vmem:[%s255 + $0x20] sm:$0xff] %v3192
        %3701 = vst [vmem:[%s255 + $0x28] sm:$0xff] %v3193
        %3702 = vst [vmem:[%s255 + $0x30] sm:$0xff] %v3196
        %3703 = vst [vmem:[%s255 + $0x38] sm:$0xff] %v3197
        %3704 = vst [vmem:[%s255 + $0x80] sm:$0xff] %v3200
        %3705 = vst [vmem:[%s255 + $0x88] sm:$0xff] %v3201
        %3706 = vst [vmem:[%s255 + $0x90] sm:$0xff] %v3204
        %3707 = vst [vmem:[%s255 + $0x98] sm:$0xff] %v3205
        %3708 = vst [vmem:[%s255 + $0xa0] sm:$0xff] %v3208
        %3709 = vst [vmem:[%s255 + $0xa8] sm:$0xff] %v3209
        %3710 = vst [vmem:[%s255 + $0xb0] sm:$0xff] %v3212
        %3711 = vst [vmem:[%s255 + $0xb8] sm:$0xff] %v3213
        %3712 = vst [vmem:[%s255 + $0x100] sm:$0xff] %v3216
        %3713 = vst [vmem:[%s255 + $0x108] sm:$0xff] %v3217
        %3714 = vst [vmem:[%s255 + $0x110] sm:$0xff] %v3220
        %3715 = vst [vmem:[%s255 + $0x118] sm:$0xff] %v3221
        %3716 = vst [vmem:[%s255 + $0x120] sm:$0xff] %v3224
        %3717 = vst [vmem:[%s255 + $0x128] sm:$0xff] %v3225
        %3718 = vst [vmem:[%s255 + $0x130] sm:$0xff] %v3228
        %3719 = vst [vmem:[%s255 + $0x138] sm:$0xff] %v3229
        %3720 = vst [vmem:[%s255 + $0x180] sm:$0xff] %v3232
        %3721 = vst [vmem:[%s255 + $0x188] sm:$0xff] %v3233
        %3722 = vst [vmem:[%s255 + $0x190] sm:$0xff] %v3236
        %3723 = vst [vmem:[%s255 + $0x198] sm:$0xff] %v3237
        %3724 = vst [vmem:[%s255 + $0x1a0] sm:$0xff] %v3240
        %3725 = vst [vmem:[%s255 + $0x1a8] sm:$0xff] %v3241
        %3726 = vst [vmem:[%s255 + $0x1b0] sm:$0xff] %v3244
        %3727 = vst [vmem:[%s255 + $0x1b8] sm:$0xff] %v3245
        %3728 = vst [vmem:[%s255 + $0x200] sm:$0xff] %v3248
        %3729 = vst [vmem:[%s255 + $0x208] sm:$0xff] %v3249
        %3730 = vst [vmem:[%s255 + $0x210] sm:$0xff] %v3252
        %3731 = vst [vmem:[%s255 + $0x218] sm:$0xff] %v3253
        %3732 = vst [vmem:[%s255 + $0x220] sm:$0xff] %v3256
        %3733 = vst [vmem:[%s255 + $0x228] sm:$0xff] %v3257
        %3734 = vst [vmem:[%s255 + $0x230] sm:$0xff] %v3260
        %3735 = vst [vmem:[%s255 + $0x238] sm:$0xff] %v3261
        %3736 = vst [vmem:[%s255 + $0x280] sm:$0xff] %v3264
        %3737 = vst [vmem:[%s255 + $0x288] sm:$0xff] %v3265
        %3738 = vst [vmem:[%s255 + $0x290] sm:$0xff] %v3268
        %3739 = vst [vmem:[%s255 + $0x298] sm:$0xff] %v3269
        %3740 = vst [vmem:[%s255 + $0x2a0] sm:$0xff] %v3272
        %3741 = vst [vmem:[%s255 + $0x2a8] sm:$0xff] %v3273
        %3742 = vst [vmem:[%s255 + $0x2b0] sm:$0xff] %v3276
        %3743 = vst [vmem:[%s255 + $0x2b8] sm:$0xff] %v3277
        %3744 = vst [vmem:[%s255 + $0x300] sm:$0xff] %v3280
        %3745 = vst [vmem:[%s255 + $0x308] sm:$0xff] %v3281
        %3746 = vst [vmem:[%s255 + $0x310] sm:$0xff] %v3284
        %3747 = vst [vmem:[%s255 + $0x318] sm:$0xff] %v3285
        %3748 = vst [vmem:[%s255 + $0x320] sm:$0xff] %v3288
        %3749 = vst [vmem:[%s255 + $0x328] sm:$0xff] %v3289
        %3750 = vst [vmem:[%s255 + $0x330] sm:$0xff] %v3292
        %3751 = vst [vmem:[%s255 + $0x338] sm:$0xff] %v3293
        %3752 = vst [vmem:[%s255 + $0x380] sm:$0xff] %v3296
        %3753 = vst [vmem:[%s255 + $0x388] sm:$0xff] %v3297
        %3754 = vst [vmem:[%s255 + $0x390] sm:$0xff] %v3300
        %3755 = vst [vmem:[%s255 + $0x398] sm:$0xff] %v3301
        %3756 = vst [vmem:[%s255 + $0x3a0] sm:$0xff] %v3304
        %3757 = vst [vmem:[%s255 + $0x3a8] sm:$0xff] %v3305
        %3758 = vst [vmem:[%s255 + $0x3b0] sm:$0xff] %v3308
        %3759 = vst [vmem:[%s255 + $0x3b8] sm:$0xff] %v3309
        %3760 = vst [vmem:[%s255 + $0x400] sm:$0xff] %v3312
        %3761 = vst [vmem:[%s255 + $0x408] sm:$0xff] %v3313
        %3762 = vst [vmem:[%s255 + $0x410] sm:$0xff] %v3316
        %3763 = vst [vmem:[%s255 + $0x418] sm:$0xff] %v3317
        %3764 = vst [vmem:[%s255 + $0x420] sm:$0xff] %v3320
        %3765 = vst [vmem:[%s255 + $0x428] sm:$0xff] %v3321
        %3766 = vst [vmem:[%s255 + $0x430] sm:$0xff] %v3324
        %3767 = vst [vmem:[%s255 + $0x438] sm:$0xff] %v3325
        %3768 = vst [vmem:[%s255 + $0x480] sm:$0xff] %v3328
        %3769 = vst [vmem:[%s255 + $0x488] sm:$0xff] %v3329
        %3770 = vst [vmem:[%s255 + $0x490] sm:$0xff] %v3332
        %3771 = vst [vmem:[%s255 + $0x498] sm:$0xff] %v3333
        %3772 = vst [vmem:[%s255 + $0x4a0] sm:$0xff] %v3336
        %3773 = vst [vmem:[%s255 + $0x4a8] sm:$0xff] %v3337
        %3774 = vst [vmem:[%s255 + $0x4b0] sm:$0xff] %v3340
        %3775 = vst [vmem:[%s255 + $0x4b8] sm:$0xff] %v3341
        %3776 = vst [vmem:[%s255 + $0x500] sm:$0xff] %v3344
        %3777 = vst [vmem:[%s255 + $0x508] sm:$0xff] %v3345
        %3778 = vst [vmem:[%s255 + $0x510] sm:$0xff] %v3348
        %3779 = vst [vmem:[%s255 + $0x518] sm:$0xff] %v3349
        %3780 = vst [vmem:[%s255 + $0x520] sm:$0xff] %v3352
        %3781 = vst [vmem:[%s255 + $0x528] sm:$0xff] %v3353
        %3782 = vst [vmem:[%s255 + $0x530] sm:$0xff] %v3356
        %3783 = vst [vmem:[%s255 + $0x538] sm:$0xff] %v3357
        %3784 = vst [vmem:[%s255 + $0x580] sm:$0xff] %v3360
        %3785 = vst [vmem:[%s255 + $0x588] sm:$0xff] %v3361
        %3786 = vst [vmem:[%s255 + $0x590] sm:$0xff] %v3364
        %3787 = vst [vmem:[%s255 + $0x598] sm:$0xff] %v3365
        %3788 = vst [vmem:[%s255 + $0x5a0] sm:$0xff] %v3368
        %3789 = vst [vmem:[%s255 + $0x5a8] sm:$0xff] %v3369
        %3790 = vst [vmem:[%s255 + $0x5b0] sm:$0xff] %v3372
        %3791 = vst [vmem:[%s255 + $0x5b8] sm:$0xff] %v3373
        %3792 = vst [vmem:[%s255 + $0x600] sm:$0xff] %v3376
        %3793 = vst [vmem:[%s255 + $0x608] sm:$0xff] %v3377
        %3794 = vst [vmem:[%s255 + $0x610] sm:$0xff] %v3380
        %3795 = vst [vmem:[%s255 + $0x618] sm:$0xff] %v3381
        %3796 = vst [vmem:[%s255 + $0x620] sm:$0xff] %v3384
        %3797 = vst [vmem:[%s255 + $0x628] sm:$0xff] %v3385
        %3798 = vst [vmem:[%s255 + $0x630] sm:$0xff] %v3388
        %3799 = vst [vmem:[%s255 + $0x638] sm:$0xff] %v3389
        %3800 = vst [vmem:[%s255 + $0x680] sm:$0xff] %v3392
        %3801 = vst [vmem:[%s255 + $0x688] sm:$0xff] %v3393
        %3802 = vst [vmem:[%s255 + $0x690] sm:$0xff] %v3396
        %3803 = vst [vmem:[%s255 + $0x698] sm:$0xff] %v3397
        %3804 = vst [vmem:[%s255 + $0x6a0] sm:$0xff] %v3400
        %3805 = vst [vmem:[%s255 + $0x6a8] sm:$0xff] %v3401
        %3806 = vst [vmem:[%s255 + $0x6b0] sm:$0xff] %v3404
        %3807 = vst [vmem:[%s255 + $0x6b8] sm:$0xff] %v3405
        %3808 = vst [vmem:[%s255 + $0x700] sm:$0xff] %v3408
        %3809 = vst [vmem:[%s255 + $0x708] sm:$0xff] %v3409
        %3810 = vst [vmem:[%s255 + $0x710] sm:$0xff] %v3412
        %3811 = vst [vmem:[%s255 + $0x718] sm:$0xff] %v3413
        %3812 = vst [vmem:[%s255 + $0x720] sm:$0xff] %v3416
        %3813 = vst [vmem:[%s255 + $0x728] sm:$0xff] %v3417
        %3814 = vst [vmem:[%s255 + $0x730] sm:$0xff] %v3420
        %3815 = vst [vmem:[%s255 + $0x738] sm:$0xff] %v3421
        %3816 = vst [vmem:[%s255 + $0x780] sm:$0xff] %v3424
        %3817 = vst [vmem:[%s255 + $0x788] sm:$0xff] %v3425
        %3818 = vst [vmem:[%s255 + $0x790] sm:$0xff] %v3428
        %3819 = vst [vmem:[%s255 + $0x798] sm:$0xff] %v3429
        %3820 = vst [vmem:[%s255 + $0x7a0] sm:$0xff] %v3432
        %3821 = vst [vmem:[%s255 + $0x7a8] sm:$0xff] %v3433
        %3822 = vst [vmem:[%s255 + $0x7b0] sm:$0xff] %v3436
        %3823 = vst [vmem:[%s255 + $0x7b8] sm:$0xff] %v3437
        %3824 = vst [vmem:[%s255 + $0x800] sm:$0xff] %v3440
        %3825 = vst [vmem:[%s255 + $0x808] sm:$0xff] %v3441
        %3826 = vst [vmem:[%s255 + $0x810] sm:$0xff] %v3444
        %3827 = vst [vmem:[%s255 + $0x818] sm:$0xff] %v3445
        %3828 = vst [vmem:[%s255 + $0x820] sm:$0xff] %v3448
        %3829 = vst [vmem:[%s255 + $0x828] sm:$0xff] %v3449
        %3830 = vst [vmem:[%s255 + $0x830] sm:$0xff] %v3452
        %3831 = vst [vmem:[%s255 + $0x838] sm:$0xff] %v3453
        %3832 = vst [vmem:[%s255 + $0x880] sm:$0xff] %v3456
        %3833 = vst [vmem:[%s255 + $0x888] sm:$0xff] %v3457
        %3834 = vst [vmem:[%s255 + $0x890] sm:$0xff] %v3460
        %3835 = vst [vmem:[%s255 + $0x898] sm:$0xff] %v3461
        %3836 = vst [vmem:[%s255 + $0x8a0] sm:$0xff] %v3464
        %3837 = vst [vmem:[%s255 + $0x8a8] sm:$0xff] %v3465
        %3838 = vst [vmem:[%s255 + $0x8b0] sm:$0xff] %v3468
        %3839 = vst [vmem:[%s255 + $0x8b8] sm:$0xff] %v3469
        %3840 = vst [vmem:[%s255 + $0x900] sm:$0xff] %v3472
        %3841 = vst [vmem:[%s255 + $0x908] sm:$0xff] %v3473
        %3842 = vst [vmem:[%s255 + $0x910] sm:$0xff] %v3476
        %3843 = vst [vmem:[%s255 + $0x918] sm:$0xff] %v3477
        %3844 = vst [vmem:[%s255 + $0x920] sm:$0xff] %v3480
        %3845 = vst [vmem:[%s255 + $0x928] sm:$0xff] %v3481
        %3846 = vst [vmem:[%s255 + $0x930] sm:$0xff] %v3484
        %3847 = vst [vmem:[%s255 + $0x938] sm:$0xff] %v3485
        %3848 = vst [vmem:[%s255 + $0x980] sm:$0xff] %v3488
        %3849 = vst [vmem:[%s255 + $0x988] sm:$0xff] %v3489
        %3850 = vst [vmem:[%s255 + $0x990] sm:$0xff] %v3492
        %3851 = vst [vmem:[%s255 + $0x998] sm:$0xff] %v3493
        %3852 = vst [vmem:[%s255 + $0x9a0] sm:$0xff] %v3496
        %3853 = vst [vmem:[%s255 + $0x9a8] sm:$0xff] %v3497
        %3854 = vst [vmem:[%s255 + $0x9b0] sm:$0xff] %v3500
        %3855 = vst [vmem:[%s255 + $0x9b8] sm:$0xff] %v3501
        %3856 = vst [vmem:[%s255 + $0xa00] sm:$0xff] %v3504
        %3857 = vst [vmem:[%s255 + $0xa08] sm:$0xff] %v3505
        %3858 = vst [vmem:[%s255 + $0xa10] sm:$0xff] %v3508
        %3859 = vst [vmem:[%s255 + $0xa18] sm:$0xff] %v3509
        %3860 = vst [vmem:[%s255 + $0xa20] sm:$0xff] %v3512
        %3861 = vst [vmem:[%s255 + $0xa28] sm:$0xff] %v3513
        %3862 = vst [vmem:[%s255 + $0xa30] sm:$0xff] %v3516
        %3863 = vst [vmem:[%s255 + $0xa38] sm:$0xff] %v3517
        %3864 = vst [vmem:[%s255 + $0xa80] sm:$0xff] %v3520
        %3865 = vst [vmem:[%s255 + $0xa88] sm:$0xff] %v3521
        %3866 = vst [vmem:[%s255 + $0xa90] sm:$0xff] %v3524
        %3867 = vst [vmem:[%s255 + $0xa98] sm:$0xff] %v3525
        %3868 = vst [vmem:[%s255 + $0xaa0] sm:$0xff] %v3528
        %3869 = vst [vmem:[%s255 + $0xaa8] sm:$0xff] %v3529
        %3870 = vst [vmem:[%s255 + $0xab0] sm:$0xff] %v3532
        %3871 = vst [vmem:[%s255 + $0xab8] sm:$0xff] %v3533
        %3872 = vst [vmem:[%s255 + $0xb00] sm:$0xff] %v3536
        %3873 = vst [vmem:[%s255 + $0xb08] sm:$0xff] %v3537
        %3874 = vst [vmem:[%s255 + $0xb10] sm:$0xff] %v3540
        %3875 = vst [vmem:[%s255 + $0xb18] sm:$0xff] %v3541
        %3876 = vst [vmem:[%s255 + $0xb20] sm:$0xff] %v3544
        %3877 = vst [vmem:[%s255 + $0xb28] sm:$0xff] %v3545
        %3878 = vst [vmem:[%s255 + $0xb30] sm:$0xff] %v3548
        %3879 = vst [vmem:[%s255 + $0xb38] sm:$0xff] %v3549
        %3880 = vst [vmem:[%s255 + $0xb80] sm:$0xff] %v3552
        %3881 = vst [vmem:[%s255 + $0xb88] sm:$0xff] %v3553
        %3882 = vst [vmem:[%s255 + $0xb90] sm:$0xff] %v3556
        %3883 = vst [vmem:[%s255 + $0xb98] sm:$0xff] %v3557
        %3884 = vst [vmem:[%s255 + $0xba0] sm:$0xff] %v3560
        %3885 = vst [vmem:[%s255 + $0xba8] sm:$0xff] %v3561
        %3886 = vst [vmem:[%s255 + $0xbb0] sm:$0xff] %v3564
        %3887 = vst [vmem:[%s255 + $0xbb8] sm:$0xff] %v3565
        %3888 = vst [vmem:[%s255 + $0xc00] sm:$0xff] %v3568
        %3889 = vst [vmem:[%s255 + $0xc08] sm:$0xff] %v3569
        %3890 = vst [vmem:[%s255 + $0xc10] sm:$0xff] %v3572
        %3891 = vst [vmem:[%s255 + $0xc18] sm:$0xff] %v3573
        %3892 = vst [vmem:[%s255 + $0xc20] sm:$0xff] %v3576
        %3893 = vst [vmem:[%s255 + $0xc28] sm:$0xff] %v3577
        %3894 = vst [vmem:[%s255 + $0xc30] sm:$0xff] %v3580
        %3895 = vst [vmem:[%s255 + $0xc38] sm:$0xff] %v3581
        %3896 = vst [vmem:[%s255 + $0xc80] sm:$0xff] %v3584
        %3897 = vst [vmem:[%s255 + $0xc88] sm:$0xff] %v3585
        %3898 = vst [vmem:[%s255 + $0xc90] sm:$0xff] %v3588
        %3899 = vst [vmem:[%s255 + $0xc98] sm:$0xff] %v3589
        %3900 = vst [vmem:[%s255 + $0xca0] sm:$0xff] %v3592
        %3901 = vst [vmem:[%s255 + $0xca8] sm:$0xff] %v3593
        %3902 = vst [vmem:[%s255 + $0xcb0] sm:$0xff] %v3596
        %3903 = vst [vmem:[%s255 + $0xcb8] sm:$0xff] %v3597
        %3904 = vst [vmem:[%s255 + $0xd00] sm:$0xff] %v3600
        %3905 = vst [vmem:[%s255 + $0xd08] sm:$0xff] %v3601
        %3906 = vst [vmem:[%s255 + $0xd10] sm:$0xff] %v3604
        %3907 = vst [vmem:[%s255 + $0xd18] sm:$0xff] %v3605
        %3908 = vst [vmem:[%s255 + $0xd20] sm:$0xff] %v3608
        %3909 = vst [vmem:[%s255 + $0xd28] sm:$0xff] %v3609
        %3910 = vst [vmem:[%s255 + $0xd30] sm:$0xff] %v3612
        %3911 = vst [vmem:[%s255 + $0xd38] sm:$0xff] %v3613
        %3912 = vst [vmem:[%s255 + $0xd80] sm:$0xff] %v3616
        %3913 = vst [vmem:[%s255 + $0xd88] sm:$0xff] %v3617
        %3914 = vst [vmem:[%s255 + $0xd90] sm:$0xff] %v3620
        %3915 = vst [vmem:[%s255 + $0xd98] sm:$0xff] %v3621
        %3916 = vst [vmem:[%s255 + $0xda0] sm:$0xff] %v3624
        %3917 = vst [vmem:[%s255 + $0xda8] sm:$0xff] %v3625
        %3918 = vst [vmem:[%s255 + $0xdb0] sm:$0xff] %v3628
        %3919 = vst [vmem:[%s255 + $0xdb8] sm:$0xff] %v3629
        %3920 = vst [vmem:[%s255 + $0xe00] sm:$0xff] %v3632
        %3921 = vst [vmem:[%s255 + $0xe08] sm:$0xff] %v3633
        %3922 = vst [vmem:[%s255 + $0xe10] sm:$0xff] %v3636
        %3923 = vst [vmem:[%s255 + $0xe18] sm:$0xff] %v3637
        %3924 = vst [vmem:[%s255 + $0xe20] sm:$0xff] %v3640
        %3925 = vst [vmem:[%s255 + $0xe28] sm:$0xff] %v3641
        %3926 = vst [vmem:[%s255 + $0xe30] sm:$0xff] %v3644
        %3927 = vst [vmem:[%s255 + $0xe38] sm:$0xff] %v3645
        %3928 = vst [vmem:[%s255 + $0xe80] sm:$0xff] %v3648
        %3929 = vst [vmem:[%s255 + $0xe88] sm:$0xff] %v3649
        %3930 = vst [vmem:[%s255 + $0xe90] sm:$0xff] %v3652
        %3931 = vst [vmem:[%s255 + $0xe98] sm:$0xff] %v3653
        %3932 = vst [vmem:[%s255 + $0xea0] sm:$0xff] %v3656
        %3933 = vst [vmem:[%s255 + $0xea8] sm:$0xff] %v3657
        %3934 = vst [vmem:[%s255 + $0xeb0] sm:$0xff] %v3660
        %3935 = vst [vmem:[%s255 + $0xeb8] sm:$0xff] %v3661
        %3936 = vst [vmem:[%s255 + $0xf00] sm:$0xff] %v3664
        %3937 = vst [vmem:[%s255 + $0xf08] sm:$0xff] %v3665
        %3938 = vst [vmem:[%s255 + $0xf10] sm:$0xff] %v3668
        %3939 = vst [vmem:[%s255 + $0xf18] sm:$0xff] %v3669
        %3940 = vst [vmem:[%s255 + $0xf20] sm:$0xff] %v3672
        %3941 = vst [vmem:[%s255 + $0xf28] sm:$0xff] %v3673
        %3942 = vst [vmem:[%s255 + $0xf30] sm:$0xff] %v3676
        %3943 = vst [vmem:[%s255 + $0xf38] sm:$0xff] %v3677
        %3944 = vst [vmem:[%s255 + $0xf80] sm:$0xff] %v3680
        %3945 = vst [vmem:[%s255 + $0xf88] sm:$0xff] %v3681
        %3946 = vst [vmem:[%s255 + $0xf90] sm:$0xff] %v3684
        %3947 = vst [vmem:[%s255 + $0xf98] sm:$0xff] %v3685
        %3948 = vst [vmem:[%s255 + $0xfa0] sm:$0xff] %v3688
        %3949 = vst [vmem:[%s255 + $0xfa8] sm:$0xff] %v3689
        %3950 = vst [vmem:[%s255 + $0xfb0] sm:$0xff] %v3692
        %3951 = vst [vmem:[%s255 + $0xfb8] sm:$0xff] %v3693
        %s3952 = scalar_lea.vmem %s255, 64 [#allocation10]
        %3953 = vst [vmem:[%s3952] sm:$0xff] %v3186
        %3954 = vst [vmem:[%s3952 + $0x8] sm:$0xff] %v3187
        %3955 = vst [vmem:[%s3952 + $0x10] sm:$0xff] %v3190
        %3956 = vst [vmem:[%s3952 + $0x18] sm:$0xff] %v3191
        %3957 = vst [vmem:[%s3952 + $0x20] sm:$0xff] %v3194
        %3958 = vst [vmem:[%s3952 + $0x28] sm:$0xff] %v3195
        %3959 = vst [vmem:[%s3952 + $0x30] sm:$0xff] %v3198
        %3960 = vst [vmem:[%s3952 + $0x38] sm:$0xff] %v3199
        %3961 = vst [vmem:[%s3952 + $0x80] sm:$0xff] %v3202
        %3962 = vst [vmem:[%s3952 + $0x88] sm:$0xff] %v3203
        %3963 = vst [vmem:[%s3952 + $0x90] sm:$0xff] %v3206
        %3964 = vst [vmem:[%s3952 + $0x98] sm:$0xff] %v3207
        %3965 = vst [vmem:[%s3952 + $0xa0] sm:$0xff] %v3210
        %3966 = vst [vmem:[%s3952 + $0xa8] sm:$0xff] %v3211
        %3967 = vst [vmem:[%s3952 + $0xb0] sm:$0xff] %v3214
        %3968 = vst [vmem:[%s3952 + $0xb8] sm:$0xff] %v3215
        %3969 = vst [vmem:[%s3952 + $0x100] sm:$0xff] %v3218
        %3970 = vst [vmem:[%s3952 + $0x108] sm:$0xff] %v3219
        %3971 = vst [vmem:[%s3952 + $0x110] sm:$0xff] %v3222
        %3972 = vst [vmem:[%s3952 + $0x118] sm:$0xff] %v3223
        %3973 = vst [vmem:[%s3952 + $0x120] sm:$0xff] %v3226
        %3974 = vst [vmem:[%s3952 + $0x128] sm:$0xff] %v3227
        %3975 = vst [vmem:[%s3952 + $0x130] sm:$0xff] %v3230
        %3976 = vst [vmem:[%s3952 + $0x138] sm:$0xff] %v3231
        %3977 = vst [vmem:[%s3952 + $0x180] sm:$0xff] %v3234
        %3978 = vst [vmem:[%s3952 + $0x188] sm:$0xff] %v3235
        %3979 = vst [vmem:[%s3952 + $0x190] sm:$0xff] %v3238
        %3980 = vst [vmem:[%s3952 + $0x198] sm:$0xff] %v3239
        %3981 = vst [vmem:[%s3952 + $0x1a0] sm:$0xff] %v3242
        %3982 = vst [vmem:[%s3952 + $0x1a8] sm:$0xff] %v3243
        %3983 = vst [vmem:[%s3952 + $0x1b0] sm:$0xff] %v3246
        %3984 = vst [vmem:[%s3952 + $0x1b8] sm:$0xff] %v3247
        %3985 = vst [vmem:[%s3952 + $0x200] sm:$0xff] %v3250
        %3986 = vst [vmem:[%s3952 + $0x208] sm:$0xff] %v3251
        %3987 = vst [vmem:[%s3952 + $0x210] sm:$0xff] %v3254
        %3988 = vst [vmem:[%s3952 + $0x218] sm:$0xff] %v3255
        %3989 = vst [vmem:[%s3952 + $0x220] sm:$0xff] %v3258
        %3990 = vst [vmem:[%s3952 + $0x228] sm:$0xff] %v3259
        %3991 = vst [vmem:[%s3952 + $0x230] sm:$0xff] %v3262
        %3992 = vst [vmem:[%s3952 + $0x238] sm:$0xff] %v3263
        %3993 = vst [vmem:[%s3952 + $0x280] sm:$0xff] %v3266
        %3994 = vst [vmem:[%s3952 + $0x288] sm:$0xff] %v3267
        %3995 = vst [vmem:[%s3952 + $0x290] sm:$0xff] %v3270
        %3996 = vst [vmem:[%s3952 + $0x298] sm:$0xff] %v3271
        %3997 = vst [vmem:[%s3952 + $0x2a0] sm:$0xff] %v3274
        %3998 = vst [vmem:[%s3952 + $0x2a8] sm:$0xff] %v3275
        %3999 = vst [vmem:[%s3952 + $0x2b0] sm:$0xff] %v3278
        %4000 = vst [vmem:[%s3952 + $0x2b8] sm:$0xff] %v3279
        %4001 = vst [vmem:[%s3952 + $0x300] sm:$0xff] %v3282
        %4002 = vst [vmem:[%s3952 + $0x308] sm:$0xff] %v3283
        %4003 = vst [vmem:[%s3952 + $0x310] sm:$0xff] %v3286
        %4004 = vst [vmem:[%s3952 + $0x318] sm:$0xff] %v3287
        %4005 = vst [vmem:[%s3952 + $0x320] sm:$0xff] %v3290
        %4006 = vst [vmem:[%s3952 + $0x328] sm:$0xff] %v3291
        %4007 = vst [vmem:[%s3952 + $0x330] sm:$0xff] %v3294
        %4008 = vst [vmem:[%s3952 + $0x338] sm:$0xff] %v3295
        %4009 = vst [vmem:[%s3952 + $0x380] sm:$0xff] %v3298
        %4010 = vst [vmem:[%s3952 + $0x388] sm:$0xff] %v3299
        %4011 = vst [vmem:[%s3952 + $0x390] sm:$0xff] %v3302
        %4012 = vst [vmem:[%s3952 + $0x398] sm:$0xff] %v3303
        %4013 = vst [vmem:[%s3952 + $0x3a0] sm:$0xff] %v3306
        %4014 = vst [vmem:[%s3952 + $0x3a8] sm:$0xff] %v3307
        %4015 = vst [vmem:[%s3952 + $0x3b0] sm:$0xff] %v3310
        %4016 = vst [vmem:[%s3952 + $0x3b8] sm:$0xff] %v3311
        %4017 = vst [vmem:[%s3952 + $0x400] sm:$0xff] %v3314
        %4018 = vst [vmem:[%s3952 + $0x408] sm:$0xff] %v3315
        %4019 = vst [vmem:[%s3952 + $0x410] sm:$0xff] %v3318
        %4020 = vst [vmem:[%s3952 + $0x418] sm:$0xff] %v3319
        %4021 = vst [vmem:[%s3952 + $0x420] sm:$0xff] %v3322
        %4022 = vst [vmem:[%s3952 + $0x428] sm:$0xff] %v3323
        %4023 = vst [vmem:[%s3952 + $0x430] sm:$0xff] %v3326
        %4024 = vst [vmem:[%s3952 + $0x438] sm:$0xff] %v3327
        %4025 = vst [vmem:[%s3952 + $0x480] sm:$0xff] %v3330
        %4026 = vst [vmem:[%s3952 + $0x488] sm:$0xff] %v3331
        %4027 = vst [vmem:[%s3952 + $0x490] sm:$0xff] %v3334
        %4028 = vst [vmem:[%s3952 + $0x498] sm:$0xff] %v3335
        %4029 = vst [vmem:[%s3952 + $0x4a0] sm:$0xff] %v3338
        %4030 = vst [vmem:[%s3952 + $0x4a8] sm:$0xff] %v3339
        %4031 = vst [vmem:[%s3952 + $0x4b0] sm:$0xff] %v3342
        %4032 = vst [vmem:[%s3952 + $0x4b8] sm:$0xff] %v3343
        %4033 = vst [vmem:[%s3952 + $0x500] sm:$0xff] %v3346
        %4034 = vst [vmem:[%s3952 + $0x508] sm:$0xff] %v3347
        %4035 = vst [vmem:[%s3952 + $0x510] sm:$0xff] %v3350
        %4036 = vst [vmem:[%s3952 + $0x518] sm:$0xff] %v3351
        %4037 = vst [vmem:[%s3952 + $0x520] sm:$0xff] %v3354
        %4038 = vst [vmem:[%s3952 + $0x528] sm:$0xff] %v3355
        %4039 = vst [vmem:[%s3952 + $0x530] sm:$0xff] %v3358
        %4040 = vst [vmem:[%s3952 + $0x538] sm:$0xff] %v3359
        %4041 = vst [vmem:[%s3952 + $0x580] sm:$0xff] %v3362
        %4042 = vst [vmem:[%s3952 + $0x588] sm:$0xff] %v3363
        %4043 = vst [vmem:[%s3952 + $0x590] sm:$0xff] %v3366
        %4044 = vst [vmem:[%s3952 + $0x598] sm:$0xff] %v3367
        %4045 = vst [vmem:[%s3952 + $0x5a0] sm:$0xff] %v3370
        %4046 = vst [vmem:[%s3952 + $0x5a8] sm:$0xff] %v3371
        %4047 = vst [vmem:[%s3952 + $0x5b0] sm:$0xff] %v3374
        %4048 = vst [vmem:[%s3952 + $0x5b8] sm:$0xff] %v3375
        %4049 = vst [vmem:[%s3952 + $0x600] sm:$0xff] %v3378
        %4050 = vst [vmem:[%s3952 + $0x608] sm:$0xff] %v3379
        %4051 = vst [vmem:[%s3952 + $0x610] sm:$0xff] %v3382
        %4052 = vst [vmem:[%s3952 + $0x618] sm:$0xff] %v3383
        %4053 = vst [vmem:[%s3952 + $0x620] sm:$0xff] %v3386
        %4054 = vst [vmem:[%s3952 + $0x628] sm:$0xff] %v3387
        %4055 = vst [vmem:[%s3952 + $0x630] sm:$0xff] %v3390
        %4056 = vst [vmem:[%s3952 + $0x638] sm:$0xff] %v3391
        %4057 = vst [vmem:[%s3952 + $0x680] sm:$0xff] %v3394
        %4058 = vst [vmem:[%s3952 + $0x688] sm:$0xff] %v3395
        %4059 = vst [vmem:[%s3952 + $0x690] sm:$0xff] %v3398
        %4060 = vst [vmem:[%s3952 + $0x698] sm:$0xff] %v3399
        %4061 = vst [vmem:[%s3952 + $0x6a0] sm:$0xff] %v3402
        %4062 = vst [vmem:[%s3952 + $0x6a8] sm:$0xff] %v3403
        %4063 = vst [vmem:[%s3952 + $0x6b0] sm:$0xff] %v3406
        %4064 = vst [vmem:[%s3952 + $0x6b8] sm:$0xff] %v3407
        %4065 = vst [vmem:[%s3952 + $0x700] sm:$0xff] %v3410
        %4066 = vst [vmem:[%s3952 + $0x708] sm:$0xff] %v3411
        %4067 = vst [vmem:[%s3952 + $0x710] sm:$0xff] %v3414
        %4068 = vst [vmem:[%s3952 + $0x718] sm:$0xff] %v3415
        %4069 = vst [vmem:[%s3952 + $0x720] sm:$0xff] %v3418
        %4070 = vst [vmem:[%s3952 + $0x728] sm:$0xff] %v3419
        %4071 = vst [vmem:[%s3952 + $0x730] sm:$0xff] %v3422
        %4072 = vst [vmem:[%s3952 + $0x738] sm:$0xff] %v3423
        %4073 = vst [vmem:[%s3952 + $0x780] sm:$0xff] %v3426
        %4074 = vst [vmem:[%s3952 + $0x788] sm:$0xff] %v3427
        %4075 = vst [vmem:[%s3952 + $0x790] sm:$0xff] %v3430
        %4076 = vst [vmem:[%s3952 + $0x798] sm:$0xff] %v3431
        %4077 = vst [vmem:[%s3952 + $0x7a0] sm:$0xff] %v3434
        %4078 = vst [vmem:[%s3952 + $0x7a8] sm:$0xff] %v3435
        %4079 = vst [vmem:[%s3952 + $0x7b0] sm:$0xff] %v3438
        %4080 = vst [vmem:[%s3952 + $0x7b8] sm:$0xff] %v3439
        %4081 = vst [vmem:[%s3952 + $0x800] sm:$0xff] %v3442
        %4082 = vst [vmem:[%s3952 + $0x808] sm:$0xff] %v3443
        %4083 = vst [vmem:[%s3952 + $0x810] sm:$0xff] %v3446
        %4084 = vst [vmem:[%s3952 + $0x818] sm:$0xff] %v3447
        %4085 = vst [vmem:[%s3952 + $0x820] sm:$0xff] %v3450
        %4086 = vst [vmem:[%s3952 + $0x828] sm:$0xff] %v3451
        %4087 = vst [vmem:[%s3952 + $0x830] sm:$0xff] %v3454
        %4088 = vst [vmem:[%s3952 + $0x838] sm:$0xff] %v3455
        %4089 = vst [vmem:[%s3952 + $0x880] sm:$0xff] %v3458
        %4090 = vst [vmem:[%s3952 + $0x888] sm:$0xff] %v3459
        %4091 = vst [vmem:[%s3952 + $0x890] sm:$0xff] %v3462
        %4092 = vst [vmem:[%s3952 + $0x898] sm:$0xff] %v3463
        %4093 = vst [vmem:[%s3952 + $0x8a0] sm:$0xff] %v3466
        %4094 = vst [vmem:[%s3952 + $0x8a8] sm:$0xff] %v3467
        %4095 = vst [vmem:[%s3952 + $0x8b0] sm:$0xff] %v3470
        %4096 = vst [vmem:[%s3952 + $0x8b8] sm:$0xff] %v3471
        %4097 = vst [vmem:[%s3952 + $0x900] sm:$0xff] %v3474
        %4098 = vst [vmem:[%s3952 + $0x908] sm:$0xff] %v3475
        %4099 = vst [vmem:[%s3952 + $0x910] sm:$0xff] %v3478
        %4100 = vst [vmem:[%s3952 + $0x918] sm:$0xff] %v3479
        %4101 = vst [vmem:[%s3952 + $0x920] sm:$0xff] %v3482
        %4102 = vst [vmem:[%s3952 + $0x928] sm:$0xff] %v3483
        %4103 = vst [vmem:[%s3952 + $0x930] sm:$0xff] %v3486
        %4104 = vst [vmem:[%s3952 + $0x938] sm:$0xff] %v3487
        %4105 = vst [vmem:[%s3952 + $0x980] sm:$0xff] %v3490
        %4106 = vst [vmem:[%s3952 + $0x988] sm:$0xff] %v3491
        %4107 = vst [vmem:[%s3952 + $0x990] sm:$0xff] %v3494
        %4108 = vst [vmem:[%s3952 + $0x998] sm:$0xff] %v3495
        %4109 = vst [vmem:[%s3952 + $0x9a0] sm:$0xff] %v3498
        %4110 = vst [vmem:[%s3952 + $0x9a8] sm:$0xff] %v3499
        %4111 = vst [vmem:[%s3952 + $0x9b0] sm:$0xff] %v3502
        %4112 = vst [vmem:[%s3952 + $0x9b8] sm:$0xff] %v3503
        %4113 = vst [vmem:[%s3952 + $0xa00] sm:$0xff] %v3506
        %4114 = vst [vmem:[%s3952 + $0xa08] sm:$0xff] %v3507
        %4115 = vst [vmem:[%s3952 + $0xa10] sm:$0xff] %v3510
        %4116 = vst [vmem:[%s3952 + $0xa18] sm:$0xff] %v3511
        %4117 = vst [vmem:[%s3952 + $0xa20] sm:$0xff] %v3514
        %4118 = vst [vmem:[%s3952 + $0xa28] sm:$0xff] %v3515
        %4119 = vst [vmem:[%s3952 + $0xa30] sm:$0xff] %v3518
        %4120 = vst [vmem:[%s3952 + $0xa38] sm:$0xff] %v3519
        %4121 = vst [vmem:[%s3952 + $0xa80] sm:$0xff] %v3522
        %4122 = vst [vmem:[%s3952 + $0xa88] sm:$0xff] %v3523
        %4123 = vst [vmem:[%s3952 + $0xa90] sm:$0xff] %v3526
        %4124 = vst [vmem:[%s3952 + $0xa98] sm:$0xff] %v3527
        %4125 = vst [vmem:[%s3952 + $0xaa0] sm:$0xff] %v3530
        %4126 = vst [vmem:[%s3952 + $0xaa8] sm:$0xff] %v3531
        %4127 = vst [vmem:[%s3952 + $0xab0] sm:$0xff] %v3534
        %4128 = vst [vmem:[%s3952 + $0xab8] sm:$0xff] %v3535
        %4129 = vst [vmem:[%s3952 + $0xb00] sm:$0xff] %v3538
        %4130 = vst [vmem:[%s3952 + $0xb08] sm:$0xff] %v3539
        %4131 = vst [vmem:[%s3952 + $0xb10] sm:$0xff] %v3542
        %4132 = vst [vmem:[%s3952 + $0xb18] sm:$0xff] %v3543
        %4133 = vst [vmem:[%s3952 + $0xb20] sm:$0xff] %v3546
        %4134 = vst [vmem:[%s3952 + $0xb28] sm:$0xff] %v3547
        %4135 = vst [vmem:[%s3952 + $0xb30] sm:$0xff] %v3550
        %4136 = vst [vmem:[%s3952 + $0xb38] sm:$0xff] %v3551
        %4137 = vst [vmem:[%s3952 + $0xb80] sm:$0xff] %v3554
        %4138 = vst [vmem:[%s3952 + $0xb88] sm:$0xff] %v3555
        %4139 = vst [vmem:[%s3952 + $0xb90] sm:$0xff] %v3558
        %4140 = vst [vmem:[%s3952 + $0xb98] sm:$0xff] %v3559
        %4141 = vst [vmem:[%s3952 + $0xba0] sm:$0xff] %v3562
        %4142 = vst [vmem:[%s3952 + $0xba8] sm:$0xff] %v3563
        %4143 = vst [vmem:[%s3952 + $0xbb0] sm:$0xff] %v3566
        %4144 = vst [vmem:[%s3952 + $0xbb8] sm:$0xff] %v3567
        %4145 = vst [vmem:[%s3952 + $0xc00] sm:$0xff] %v3570
        %4146 = vst [vmem:[%s3952 + $0xc08] sm:$0xff] %v3571
        %4147 = vst [vmem:[%s3952 + $0xc10] sm:$0xff] %v3574
        %4148 = vst [vmem:[%s3952 + $0xc18] sm:$0xff] %v3575
        %4149 = vst [vmem:[%s3952 + $0xc20] sm:$0xff] %v3578
        %4150 = vst [vmem:[%s3952 + $0xc28] sm:$0xff] %v3579
        %4151 = vst [vmem:[%s3952 + $0xc30] sm:$0xff] %v3582
        %4152 = vst [vmem:[%s3952 + $0xc38] sm:$0xff] %v3583
        %4153 = vst [vmem:[%s3952 + $0xc80] sm:$0xff] %v3586
        %4154 = vst [vmem:[%s3952 + $0xc88] sm:$0xff] %v3587
        %4155 = vst [vmem:[%s3952 + $0xc90] sm:$0xff] %v3590
        %4156 = vst [vmem:[%s3952 + $0xc98] sm:$0xff] %v3591
        %4157 = vst [vmem:[%s3952 + $0xca0] sm:$0xff] %v3594
        %4158 = vst [vmem:[%s3952 + $0xca8] sm:$0xff] %v3595
        %4159 = vst [vmem:[%s3952 + $0xcb0] sm:$0xff] %v3598
        %4160 = vst [vmem:[%s3952 + $0xcb8] sm:$0xff] %v3599
        %4161 = vst [vmem:[%s3952 + $0xd00] sm:$0xff] %v3602
        %4162 = vst [vmem:[%s3952 + $0xd08] sm:$0xff] %v3603
        %4163 = vst [vmem:[%s3952 + $0xd10] sm:$0xff] %v3606
        %4164 = vst [vmem:[%s3952 + $0xd18] sm:$0xff] %v3607
        %4165 = vst [vmem:[%s3952 + $0xd20] sm:$0xff] %v3610
        %4166 = vst [vmem:[%s3952 + $0xd28] sm:$0xff] %v3611
        %4167 = vst [vmem:[%s3952 + $0xd30] sm:$0xff] %v3614
        %4168 = vst [vmem:[%s3952 + $0xd38] sm:$0xff] %v3615
        %4169 = vst [vmem:[%s3952 + $0xd80] sm:$0xff] %v3618
        %4170 = vst [vmem:[%s3952 + $0xd88] sm:$0xff] %v3619
        %4171 = vst [vmem:[%s3952 + $0xd90] sm:$0xff] %v3622
        %4172 = vst [vmem:[%s3952 + $0xd98] sm:$0xff] %v3623
        %4173 = vst [vmem:[%s3952 + $0xda0] sm:$0xff] %v3626
        %4174 = vst [vmem:[%s3952 + $0xda8] sm:$0xff] %v3627
        %4175 = vst [vmem:[%s3952 + $0xdb0] sm:$0xff] %v3630
        %4176 = vst [vmem:[%s3952 + $0xdb8] sm:$0xff] %v3631
        %4177 = vst [vmem:[%s3952 + $0xe00] sm:$0xff] %v3634
        %4178 = vst [vmem:[%s3952 + $0xe08] sm:$0xff] %v3635
        %4179 = vst [vmem:[%s3952 + $0xe10] sm:$0xff] %v3638
        %4180 = vst [vmem:[%s3952 + $0xe18] sm:$0xff] %v3639
        %4181 = vst [vmem:[%s3952 + $0xe20] sm:$0xff] %v3642
        %4182 = vst [vmem:[%s3952 + $0xe28] sm:$0xff] %v3643
        %4183 = vst [vmem:[%s3952 + $0xe30] sm:$0xff] %v3646
        %4184 = vst [vmem:[%s3952 + $0xe38] sm:$0xff] %v3647
        %4185 = vst [vmem:[%s3952 + $0xe80] sm:$0xff] %v3650
        %4186 = vst [vmem:[%s3952 + $0xe88] sm:$0xff] %v3651
        %4187 = vst [vmem:[%s3952 + $0xe90] sm:$0xff] %v3654
        %4188 = vst [vmem:[%s3952 + $0xe98] sm:$0xff] %v3655
        %4189 = vst [vmem:[%s3952 + $0xea0] sm:$0xff] %v3658
        %4190 = vst [vmem:[%s3952 + $0xea8] sm:$0xff] %v3659
        %4191 = vst [vmem:[%s3952 + $0xeb0] sm:$0xff] %v3662
        %4192 = vst [vmem:[%s3952 + $0xeb8] sm:$0xff] %v3663
        %4193 = vst [vmem:[%s3952 + $0xf00] sm:$0xff] %v3666
        %4194 = vst [vmem:[%s3952 + $0xf08] sm:$0xff] %v3667
        %4195 = vst [vmem:[%s3952 + $0xf10] sm:$0xff] %v3670
        %4196 = vst [vmem:[%s3952 + $0xf18] sm:$0xff] %v3671
        %4197 = vst [vmem:[%s3952 + $0xf20] sm:$0xff] %v3674
        %4198 = vst [vmem:[%s3952 + $0xf28] sm:$0xff] %v3675
        %4199 = vst [vmem:[%s3952 + $0xf30] sm:$0xff] %v3678
        %4200 = vst [vmem:[%s3952 + $0xf38] sm:$0xff] %v3679
        %4201 = vst [vmem:[%s3952 + $0xf80] sm:$0xff] %v3682
        %4202 = vst [vmem:[%s3952 + $0xf88] sm:$0xff] %v3683
        %4203 = vst [vmem:[%s3952 + $0xf90] sm:$0xff] %v3686
        %4204 = vst [vmem:[%s3952 + $0xf98] sm:$0xff] %v3687
        %4205 = vst [vmem:[%s3952 + $0xfa0] sm:$0xff] %v3690
        %4206 = vst [vmem:[%s3952 + $0xfa8] sm:$0xff] %v3691
        %4207 = vst [vmem:[%s3952 + $0xfb0] sm:$0xff] %v3694
        %4208 = vst [vmem:[%s3952 + $0xfb8] sm:$0xff] %v3695
        %s4209 = sand.u32 %s120, 1
        %s4210 = scalar_lea.sflag [#allocation4], %s4209
        %s4211 = sand.u32 %s120, 1
        %s4212 = smul.addr %s4211, 4096
        %s4213 = scalar_lea.vmem [#allocation10], %s4212
        // Predicated region
        $region53: #{tpu_custom_call.1} parent=35 // pred_check
          %p4214 = pneg %p130
        $region54: #{tpu_custom_call.1} parent=35 // pred_check_branch
          %4216 = sbr.rel (%p4214) target = $region56
        $region55: #{tpu_custom_call.1} parent=35 // pred_region
          %s4217 = smul.u32 32, %s23
          %s4219 = ssub.s32 65536, 65536
          %4220 = vsyncadd %s4210, %s4219
          %s4221 = smul.addr %s4217, 16
          %s4222 = smul.addr %s4221, 128
          %s4223 = scalar_lea.hbm %s4, %s4222
          %s4224 = sshll.u32 %s4213, 4
          %s4225 = int_to_ptr.vmem [resolvable:$true] %s4224
          %4230 = dma.vmem_to_hbm [thread:$0]  %s4225, 65536, %s4223, %s4210, 256, 256, 16
        $region56: #{tpu_custom_call.1} parent=35 // pred_fallthru
          _
      $region36: #{tpu_custom_call.1} parent=5 // pred_fallthru
        _
      %p4231 = scmp.le.s32.totalorder 2, %s18
      // Predicated region
      $region57: #{tpu_custom_call.1} parent=5 // pred_check
        %p4232 = pneg %p4231
      $region58: #{tpu_custom_call.1} parent=5 // pred_check_branch
        %4234 = sbr.rel (%p4232) target = $region60
      $region59: #{tpu_custom_call.1} parent=5 // pred_region
        %s4235 = ssub.s32 %s18, 2
        // Predicated region
        $region61: #{tpu_custom_call.1} parent=59 // pred_check
          %p4236 = pneg %p136
        $region62: #{tpu_custom_call.1} parent=59 // pred_check_branch
          %4238 = sbr.rel (%p4236) target = $region64
        $region63: #{tpu_custom_call.1} parent=59 // pred_region
          %s4239 = sand.u32 %s121, 1
          %s4240 = scalar_lea.sflag [#allocation4], %s4239
          %s4241 = sand.u32 %s121, 1
          %s4242 = smul.addr %s4241, 4096
          %s4243 = scalar_lea.vmem [#allocation10], %s4242
          %4244 = dma.done %s4240, 65536
        $region64: #{tpu_custom_call.1} parent=59 // pred_fallthru
          _
      $region60: #{tpu_custom_call.1} parent=5 // pred_fallthru
        _
    $region6: #{tpu_custom_call.1} parent=1 // loop_footer
      %s22 = sadd.s32 1, %s18
    $region7: #{tpu_custom_call.1} parent=1 // loop_footer_branch
      %17 = sbr.rel target = $region3
    $region8: #{tpu_custom_call.1} parent=1 // loop_exit
      _
    %4245 = vsyncpa [#allocation3], 1
    %s4246 = scalar_lea.sflag [#allocation3], 1
    %4247 = vsyncpa %s4246, 1
    %4248 = vsyncpa [#allocation6], 1
    %4249 = vsyncpa [#allocation9], 1
    %4250 = vsyncpa [#allocation4], 1
    %s4251 = scalar_lea.sflag [#allocation4], 1
    %4252 = vsyncpa %s4251, 1

</llo_original>
